<compile_context>
chip_gen: v5e
topology: v5e:2x2
jax: 0.10.0
libtpu: 0.0.40
codegen_flags: <defaults>
</compile_context>

<pallas_src>
import jax
import jax.numpy as jnp
from jax import lax
from jax.experimental import pallas as pl
from jax.experimental.pallas import tpu as pltpu


def _round_up(x, m):
    return (x + m - 1) // m * m


def _vmem_limit_bytes():
    cap = 64 * 1024 * 1024
    try:
        cap = int(pltpu.get_tpu_info().vmem_capacity_bytes)
    except Exception:
        pass
    # ~96 MiB on 128 MiB parts (v5e/v6e), ~48 MiB on 64 MiB parts (v7x).
    return min(100 * 1024 * 1024, (cap * 3) // 4)


def _invariant_spec(shape, index_map):
    """BlockSpec for a grid-invariant input: request single buffering."""
    try:
        return pl.BlockSpec(shape, index_map, pipeline_mode=pl.Buffered(1))
    except Exception:
        return pl.BlockSpec(shape, index_map)


# ----------------------------- GRU kernel ---------------------------------
def gru_kernel(len_ref, x_ref, h0_ref, wih_ref, whh_ref, bih_ref, bhh_ref,
               out_ref, hfin_ref, h_scr):
    # Grid: (batch_shards "parallel", Tp//tt "arbitrary").
    # len_ref : (Bs, 1)  int32     valid lengths (0 for padded batch rows)
    # x_ref   : (tt, Bs, Ep) bf16  time-major embedded inputs, this time block
    # h0_ref  : (Bs, Hp) f32       initial hidden (this batch shard)
    # wih_ref : (Ep, 3*Hp) bf16    gate order [r | z | n], each gate lane-padded to Hp
    # whh_ref : (Hp, 3*Hp) bf16
    # bih_ref : (1, 3*Hp) f32
    # bhh_ref : (1, 3*Hp) f32
    # out_ref : (tt, Bs, Hp) bf16  per-step outputs (zero past each length)
    # hfin_ref: (Bs, Hp) f32       hidden at each sequence's last valid step
    # h_scr   : VMEM (Bs, Hp) f32  hidden carried across time blocks
    tt, bp, _ = x_ref.shape
    hp = h0_ref.shape[1]
    tb = pl.program_id(1)
    nt = pl.num_programs(1)

    @pl.when(tb == 0)
    def _():
        h_scr[...] = h0_ref[...]

    # Hoisted input projection: one (tt*Bs, Ep) x (Ep, 3Hp) MXU matmul per time block.
    gi = jnp.dot(x_ref[...].reshape(tt * bp, -1), wih_ref[...],
                 preferred_element_type=jnp.float32) + bih_ref[...]   # (tt*Bs, 3Hp) f32

    whh = whh_ref[...]
    bhh = bhh_ref[...]
    t0 = tb * tt
    # Build the validity mask once per block (JAX does not CSE broadcast_in_dim).
    valid_blk = len_ref[...] > (
        t0 + lax.broadcasted_iota(jnp.int32, (bp, tt), 1))            # (Bs, tt) bool

    h = h_scr[...]
    outs = []
    # Fully unrolled recurrence over the (small, static) time block; only the small
    # h @ W_hh matmul stays inside the loop.
    for i in range(tt):
        gh = jnp.dot(h.astype(whh.dtype), whh,
                     preferred_element_type=jnp.float32) + bhh        # (Bs, 3Hp) f32
        g = gi[i * bp:(i + 1) * bp]                                   # leading-dim slice
        r = jax.nn.sigmoid(g[:, :hp] + gh[:, :hp])
        z = jax.nn.sigmoid(g[:, hp:2 * hp] + gh[:, hp:2 * hp])
        n = jnp.tanh(g[:, 2 * hp:] + r * gh[:, 2 * hp:])
        h_new = (1.0 - z) * n + z * h
        valid = valid_blk[:, i:i + 1]                                 # (Bs, 1)
        outs.append(jnp.where(valid, h_new, 0.0))
        h = jnp.where(valid, h_new, h)

    # Single dense store per time block (no per-step masked sublane writes).
    out_ref[...] = jnp.stack(outs, axis=0).astype(out_ref.dtype)
    h_scr[...] = h

    @pl.when(tb == nt - 1)
    def _():
        hfin_ref[...] = h


def run_gru(x_tbe, lengths, h0, wih, whh, bih, bhh, *, tt, batch_shards=1):
    Tp, Bp, Ep = x_tbe.shape
    Hp = h0.shape[1]
    assert Tp % tt == 0 and Bp % (8 * batch_shards) == 0
    Bs = Bp // batch_shards
    grid = (batch_shards, Tp // tt)

    flops = 2 * Bp * Tp * (Ep + Hp) * 3 * Hp
    transcendentals = 3 * Bp * Tp * Hp
    bytes_accessed = (Bp * Tp * Ep * 2 + Bp * Tp * Hp * 2
                      + (Ep + Hp) * 3 * Hp * 2 + 2 * 3 * Hp * 4
                      + 2 * Bp * Hp * 4 + Bp * 4)

    grid_spec = pltpu.PrefetchScalarGridSpec(
        num_scalar_prefetch=0,
        grid=grid,
        in_specs=[
            pl.BlockSpec((Bs, 1), lambda c, t: (c, 0)),             # lengths
            pl.BlockSpec((tt, Bs, Ep), lambda c, t: (t, c, 0)),     # x time block
            pl.BlockSpec((Bs, Hp), lambda c, t: (c, 0)),            # h0
            _invariant_spec((Ep, 3 * Hp), lambda c, t: (0, 0)),     # W_ih (single-buffered)
            _invariant_spec((Hp, 3 * Hp), lambda c, t: (0, 0)),     # W_hh (single-buffered)
            _invariant_spec((1, 3 * Hp), lambda c, t: (0, 0)),      # b_ih
            _invariant_spec((1, 3 * Hp), lambda c, t: (0, 0)),      # b_hh
        ],
        out_specs=[
            pl.BlockSpec((tt, Bs, Hp), lambda c, t: (t, c, 0)),     # per-step outputs
            pl.BlockSpec((Bs, Hp), lambda c, t: (c, 0)),            # final hidden
        ],
        scratch_shapes=[pltpu.VMEM((Bs, Hp), jnp.float32)],
    )
    return pl.pallas_call(
        gru_kernel,
        grid_spec=grid_spec,
        out_shape=(
            jax.ShapeDtypeStruct((Tp, Bp, Hp), jnp.bfloat16),
            jax.ShapeDtypeStruct((Bp, Hp), jnp.float32),
        ),
        compiler_params=pltpu.CompilerParams(
            dimension_semantics=("parallel", "arbitrary"),
            vmem_limit_bytes=_vmem_limit_bytes(),
        ),
        cost_estimate=pl.CostEstimate(
            flops=flops, transcendentals=transcendentals,
            bytes_accessed=bytes_accessed),
    )(lengths, x_tbe, h0, wih, whh, bih, bhh)


# ------------------------ FC + log_softmax kernels --------------------------
def _fc_resident_kernel(x_ref, w_ref, b_ref, o_ref):
    # x_ref: (tn, Hp) bf16; w_ref: (Hp, Vp) bf16; b_ref: (1, Vp) f32 (pad cols = -1e30)
    logits = jnp.dot(x_ref[...], w_ref[...],
                     preferred_element_type=jnp.float32) + b_ref[...]
    m = jnp.max(logits, axis=-1, keepdims=True)
    lse = m + jnp.log(jnp.sum(jnp.exp(logits - m), axis=-1, keepdims=True))
    # TODO(synk): optionally emit bf16 log-probs here to halve the dominant HBM write
    # if the downstream loss tolerates it.
    o_ref[...] = logits - lse


def _fc_tiled_kernel(x_ref, w_ref, b_ref, o_ref, m_scr, l_scr):
    # Grid (rows "parallel", pass "arbitrary", V-tile "arbitrary").
    # Pass 0: online logsumexp over V tiles into scratch; pass 1: recompute + normalize.
    p = pl.program_id(1)
    j = pl.program_id(2)

    @pl.when(jnp.logical_and(p == 0, j == 0))
    def _():
        m_scr[...] = jnp.full_like(m_scr, -jnp.inf)
        l_scr[...] = jnp.zeros_like(l_scr)

    logits = jnp.dot(x_ref[...], w_ref[...],
                     preferred_element_type=jnp.float32) + b_ref[...]

    @pl.when(p == 0)
    def _():
        m_new = jnp.maximum(m_scr[...], jnp.max(logits, axis=-1, keepdims=True))
        l_scr[...] = (l_scr[...] * jnp.exp(m_scr[...] - m_new)
                      + jnp.sum(jnp.exp(logits - m_new), axis=-1, keepdims=True))
        m_scr[...] = m_new

    @pl.when(p == 1)
    def _():
        o_ref[...] = logits - (m_scr[...] + jnp.log(l_scr[...]))


def _fc_resident(x, w, b, *, tn, vmem_limit):
    Np, Hp = x.shape
    Vp = w.shape[1]
    assert Np % tn == 0
    return pl.pallas_call(
        _fc_resident_kernel,
        grid_spec=pltpu.PrefetchScalarGridSpec(
            num_scalar_prefetch=0,
            grid=(Np // tn,),
            in_specs=[
                pl.BlockSpec((tn, Hp), lambda i: (i, 0)),
                _invariant_spec((Hp, Vp), lambda i: (0, 0)),        # weight single-buffered
                _invariant_spec((1, Vp), lambda i: (0, 0)),
            ],
            out_specs=pl.BlockSpec((tn, Vp), lambda i: (i, 0)),
        ),
        out_shape=jax.ShapeDtypeStruct((Np, Vp), jnp.float32),
        compiler_params=pltpu.CompilerParams(
            dimension_semantics=("parallel",),
            vmem_limit_bytes=vmem_limit),
        cost_estimate=pl.CostEstimate(
            flops=2 * Np * Hp * Vp, transcendentals=Np * Vp,
            bytes_accessed=Np * Hp * 2 + Hp * Vp * 2 + Vp * 4 + Np * Vp * 4),
    )(x, w, b)


def _fc_tiled(x, w, b, *, tn, tv, vmem_limit):
    Np, Hp = x.shape
    Vp = w.shape[1]
    assert Np % tn == 0 and Vp % tv == 0
    nv = Vp // tv
    return pl.pallas_call(
        _fc_tiled_kernel,
        grid_spec=pltpu.PrefetchScalarGridSpec(
            num_scalar_prefetch=0,
            grid=(Np // tn, 2, nv),
            in_specs=[
                pl.BlockSpec((tn, Hp), lambda i, p, j: (i, 0)),
                pl.BlockSpec((Hp, tv), lambda i, p, j: (0, j)),
                pl.BlockSpec((1, tv), lambda i, p, j: (0, j)),
            ],
            # During the LSE pass the output index is pinned to (i, 0), so no output
            # block is written back before pass 1 has filled it with normalized values.
            out_specs=pl.BlockSpec((tn, tv), lambda i, p, j: (i, p * j)),
            scratch_shapes=[pltpu.VMEM((tn, 1), jnp.float32),
                            pltpu.VMEM((tn, 1), jnp.float32)],
        ),
        out_shape=jax.ShapeDtypeStruct((Np, Vp), jnp.float32),
        compiler_params=pltpu.CompilerParams(
            dimension_semantics=("parallel", "arbitrary", "arbitrary"),
            vmem_limit_bytes=vmem_limit),
        cost_estimate=pl.CostEstimate(
            flops=4 * Np * Hp * Vp, transcendentals=Np * Vp,
            bytes_accessed=Np * Hp * 2 + 2 * (Hp * Vp * 2 + Vp * 4) + Np * Vp * 4),
    )(x, w, b)


def run_fc_logsoftmax(x, w, b, *, mode="auto"):
    Np, Hp = x.shape
    Vp = w.shape[1]
    assert Np % 128 == 0
    vmem_limit = _vmem_limit_bytes()
    tn = 256 if Np % 256 == 0 else 128
    if mode == "auto":
        resident_bytes = (Hp * Vp * 2 + Vp * 4          # weight + bias (single-buffered)
                          + 2 * tn * Hp * 2             # x blocks (double-buffered)
                          + 2 * tn * Vp * 4             # output blocks
                          + 2 * tn * Vp * 4)            # logits temp + headroom
        mode = "resident" if resident_bytes <= (vmem_limit * 3) // 5 else "tiled"
    if mode == "resident":
        return _fc_resident(x, w, b, tn=tn, vmem_limit=vmem_limit)
    tv = 512 if Vp % 512 == 0 else (256 if Vp % 256 == 0 else 128)
    return _fc_tiled(x, w, b, tn=tn, tv=tv, vmem_limit=vmem_limit)


# ---------------------------- PlainDecoder ---------------------------------
def plain_decoder_forward(params, text, seq_lengths, hid, *, vocab_size,
                          t_out=None, tt=None, batch_shards=1, fc_mode="auto"):
    """text: (B, T) int32; seq_lengths: (B,) int32; hid: (1, B, H) f32.

    t_out is static (PyTorch returns max(seq_lengths) steps; pass that statically if
    needed, default T).  batch_shards splits the GRU batch across TensorCores (set 2 on
    v7x when B rounds to a multiple of 16).  Pad positions hold log_softmax(b_fc),
    exactly like pad_packed_sequence + Linear + log_softmax.
    """
    B, T = text.shape
    H = hid.shape[-1]
    Hp = params["w_hh"].shape[0]
    if t_out is None:
        t_out = T

    Bp = _round_up(B, 8 * batch_shards)
    if tt is None:
        # tt multiple of 16 (bf16 packing); grow toward a >=256-row hoisted matmul
        # per block where the sequence length allows it.
        tt = 16
        while (Bp // batch_shards) * tt < 256 and tt < _round_up(T, 16):
            tt *= 2
    Tp = _round_up(T, tt)

    # Pad batch/time; padded rows get length 0 so the GRU freezes their hidden.
    text_p = jnp.zeros((Bp, Tp), jnp.int32).at[:B, :T].set(text)
    len_p = jnp.zeros((Bp, 1), jnp.int32).at[:B, 0].set(seq_lengths.astype(jnp.int32))
    h0_p = jnp.zeros((Bp, Hp), jnp.float32).at[:B, :H].set(hid[0])

    # Embedding lookup, TIME-MAJOR: contiguous per-time-block DMA in the GRU.
    x = jnp.take(params["embedding"], text_p.T, axis=0)        # (Tp, Bp, Ep) bf16

    out_tbh, h_fin = run_gru(x, len_p, h0_p,
                             params["w_ih"], params["w_hh"],
                             params["b_ih"], params["b_hh"],
                             tt=tt, batch_shards=batch_shards)

    # FC + log_softmax directly on the GRU output: leading-dim reshape is free (no
    # slice / zero-pad copy through HBM between the two kernels).
    act = out_tbh.reshape(Tp * Bp, Hp)
    logp = run_fc_logsoftmax(act, params["w_fc"], params["b_fc"], mode=fc_mode)
    output = logp.reshape(Tp, Bp, -1)[:t_out, :B, :vocab_size].transpose(1, 0, 2)
    hid_out = h_fin[:B, :H][None]                               # (1, B, H)
    return output, hid_out


def init_params(key, vocab_size, embed_size, hidden_size):
    Ep = _round_up(embed_size, 128)
    Hp = _round_up(hidden_size, 128)
    Vp = _round_up(vocab_size, 128)
    ks = jax.random.split(key, 7)
    s = hidden_size ** -0.5
    u = lambda k, shape: jax.random.uniform(k, shape, jnp.float32, -s, s)

    emb = jax.random.normal(ks[0], (vocab_size, embed_size), jnp.float32)
    emb_p = jnp.zeros((vocab_size, Ep), jnp.bfloat16).at[:, :embed_size].set(
        emb.astype(jnp.bfloat16))

    # GRU weights, gate order [r | z | n]; each gate lane-padded to Hp (pre-transposed).
    def pad_gates(w, in_dim, in_pad):
        out = jnp.zeros((in_pad, 3 * Hp), jnp.bfloat16)
        for g in range(3):
            out = out.at[:in_dim, g * Hp:g * Hp + hidden_size].set(
                w[:, g * hidden_size:(g + 1) * hidden_size].astype(jnp.bfloat16))
        return out

    def pad_bias(b):
        out = jnp.zeros((1, 3 * Hp), jnp.float32)
        for g in range(3):
            out = out.at[0, g * Hp:g * Hp + hidden_size].set(
                b[g * hidden_size:(g + 1) * hidden_size])
        return out

    w_ih = pad_gates(u(ks[1], (embed_size, 3 * hidden_size)), embed_size, Ep)
    w_hh = pad_gates(u(ks[2], (hidden_size, 3 * hidden_size)), hidden_size, Hp)
    b_ih = pad_bias(u(ks[3], (3 * hidden_size,)))
    b_hh = pad_bias(u(ks[4], (3 * hidden_size,)))

    # Linear(hidden -> vocab), pre-transposed; padded vocab cols get bias -1e30 so they
    # contribute nothing to the softmax denominator.
    w_fc = jnp.zeros((Hp, Vp), jnp.bfloat16).at[:hidden_size, :vocab_size].set(
        u(ks[5], (hidden_size, vocab_size)).astype(jnp.bfloat16))
    b_fc = jnp.full((1, Vp), -1e30, jnp.float32).at[0, :vocab_size].set(
        u(ks[6], (vocab_size,)))

    return {
        "embedding": emb_p,
        "w_ih": w_ih, "w_hh": w_hh, "b_ih": b_ih, "b_hh": b_hh,
        "w_fc": w_fc, "b_fc": b_fc,
    }


if __name__ == "__main__":
    vocab_size, embed_size, hidden_size = 64, 32, 32
    batch, seq = 2, 8

    key = jax.random.PRNGKey(0)
    k_par, k_txt, k_hid = jax.random.split(key, 3)

    params = init_params(k_par, vocab_size, embed_size, hidden_size)

    text = jax.random.randint(k_txt, (batch, seq), 0, vocab_size, dtype=jnp.int32)
    seq_lengths = jnp.array([seq, 5], dtype=jnp.int32)   # variable lengths, padded input
    hid = jax.random.normal(k_hid, (1, batch, hidden_size), jnp.float32)

    fwd = jax.jit(plain_decoder_forward,
                  static_argnames=("vocab_size", "t_out", "tt",
                                   "batch_shards", "fc_mode"))

    output, hid_out = fwd(params, text, seq_lengths, hid, vocab_size=vocab_size)
    jax.block_until_ready((output, hid_out))

    assert output.shape == (batch, seq, vocab_size)      # max(seq_lengths) == seq here
    assert hid_out.shape == (1, batch, hidden_size)
    # log_softmax rows must sum to ~1 in prob space.
    assert bool(jnp.allclose(jnp.exp(output).sum(-1), 1.0, atol=1e-4))

    # Also exercise the megacore batch-shard GRU path and the V-tiled two-pass FC path
    # (correct on any core count); results must agree with the default path.
    out2, hid2 = fwd(params, text, seq_lengths, hid, vocab_size=vocab_size,
                     batch_shards=2, fc_mode="tiled")
    jax.block_until_ready((out2, hid2))
    assert bool(jnp.allclose(out2, output, atol=1e-4, rtol=1e-4))
    assert bool(jnp.allclose(hid2, hid_out, atol=1e-5, rtol=1e-5))

    print("KERNEL_OK")
</pallas_src>

<mosaic_0001>
module attributes {stable_mosaic.version = 11 : i64} {
  func.func @_fc_resident_kernel(%arg0: i32, %arg1: memref<128x128xbf16, #tpu.memory_space<vmem>>, %arg2: memref<128x128xbf16, #tpu.memory_space<vmem>>, %arg3: memref<1x128xf32, #tpu.memory_space<vmem>>, %arg4: memref<128x128xf32, #tpu.memory_space<vmem>>) attributes {dimension_semantics = [#tpu.dimension_semantics<parallel>], iteration_bounds = array<i64: 1>, scalar_prefetch = 0 : i64, scratch_operands = 0 : i64, tpu.core_type = #tpu.core_type<tc>, window_params = [{transform_indices = @transform_0, window_bounds = array<i64: 128, 128>}, {pipeline_mode = #tpu.pipeline_mode<synchronous>, transform_indices = @transform_1, window_bounds = array<i64: 128, 128>}, {pipeline_mode = #tpu.pipeline_mode<synchronous>, transform_indices = @transform_2, window_bounds = array<i64: 1, 128>}, {transform_indices = @transform_3, window_bounds = array<i64: 128, 128>}]} {
    %c0 = arith.constant 0 : index
    %c0_0 = arith.constant 0 : index
    %0 = vector.load %arg1[%c0, %c0_0] : memref<128x128xbf16, #tpu.memory_space<vmem>>, vector<128x128xbf16>
    %c0_1 = arith.constant 0 : index
    %c0_2 = arith.constant 0 : index
    %1 = vector.load %arg2[%c0_1, %c0_2] : memref<128x128xbf16, #tpu.memory_space<vmem>>, vector<128x128xbf16>
    %cst = arith.constant dense<0.000000e+00> : vector<128x128xf32>
    %2 = tpu.matmul %0, %1, %cst {dimension_numbers = #tpu.dot_dimension_numbers<[1], [0], [0], [1], [0, 0, 1, 1], [], []>} : vector<128x128xbf16>, vector<128x128xbf16>, vector<128x128xf32> -> vector<128x128xf32>
    %c0_3 = arith.constant 0 : index
    %c0_4 = arith.constant 0 : index
    %3 = vector.load %arg3[%c0_3, %c0_4] : memref<1x128xf32, #tpu.memory_space<vmem>>, vector<1x128xf32>
    %4 = vector.broadcast %3 : vector<1x128xf32> to vector<128x128xf32>
    %5 = arith.addf %2, %4 : vector<128x128xf32>
    %cst_5 = arith.constant dense<0xFF800000> : vector<128xf32>
    %6 = vector.multi_reduction <maximumf>, %5, %cst_5 [1] : vector<128x128xf32> to vector<128xf32>
    %7 = vector.shape_cast %6 : vector<128xf32> to vector<128x1xf32>
    %8 = vector.broadcast %7 : vector<128x1xf32> to vector<128x128xf32>
    %9 = arith.subf %5, %8 : vector<128x128xf32>
    %10 = math.exp %9 : vector<128x128xf32>
    %cst_6 = arith.constant dense<0.000000e+00> : vector<128xf32>
    %11 = vector.multi_reduction <add>, %10, %cst_6 [1] : vector<128x128xf32> to vector<128xf32>
    %12 = vector.shape_cast %11 : vector<128xf32> to vector<128x1xf32>
    %13 = math.log %12 : vector<128x1xf32>
    %14 = arith.addf %7, %13 : vector<128x1xf32>
    %15 = vector.broadcast %14 : vector<128x1xf32> to vector<128x128xf32>
    %16 = arith.subf %5, %15 : vector<128x128xf32>
    %c0_7 = arith.constant 0 : index
    %c0_8 = arith.constant 0 : index
    %17 = vector.load %arg4[%c0_7, %c0_8] : memref<128x128xf32, #tpu.memory_space<vmem>>, vector<128x128xf32>
    tpu.vector_store %arg4[%c0_7, %c0_8], %16 {strides = array<i32>} : memref<128x128xf32, #tpu.memory_space<vmem>>, vector<128x128xf32>,
    return
  }
  func.func @transform_0(%arg0: i32) -> (i32, i32) {
    %c0_i32 = arith.constant 0 : i32
    %c0_i32_0 = arith.constant 0 : i32
    return %arg0, %c0_i32 : i32, i32
  }
  func.func @transform_1(%arg0: i32) -> (i32, i32) {
    %c0_i32 = arith.constant 0 : i32
    %c0_i32_0 = arith.constant 0 : i32
    %c0_i32_1 = arith.constant 0 : i32
    return %c0_i32, %c0_i32_0 : i32, i32
  }
  func.func @transform_2(%arg0: i32) -> (i32, i32) {
    %c0_i32 = arith.constant 0 : i32
    %c0_i32_0 = arith.constant 0 : i32
    %c0_i32_1 = arith.constant 0 : i32
    return %c0_i32, %c0_i32_0 : i32, i32
  }
  func.func @transform_3(%arg0: i32) -> (i32, i32) {
    %c0_i32 = arith.constant 0 : i32
    %c0_i32_0 = arith.constant 0 : i32
    return %arg0, %c0_i32 : i32, i32
  }
}

module attributes {stable_mosaic.version = 11 : i64} {
  func.func @gru_kernel(%arg0: i32, %arg1: i32, %arg2: memref<8x1xi32, #tpu.memory_space<vmem>>, %arg3: memref<16x8x128xbf16, #tpu.memory_space<vmem>>, %arg4: memref<8x128xf32, #tpu.memory_space<vmem>>, %arg5: memref<128x384xbf16, #tpu.memory_space<vmem>>, %arg6: memref<128x384xbf16, #tpu.memory_space<vmem>>, %arg7: memref<1x384xf32, #tpu.memory_space<vmem>>, %arg8: memref<1x384xf32, #tpu.memory_space<vmem>>, %arg9: memref<16x8x128xbf16, #tpu.memory_space<vmem>>, %arg10: memref<8x128xf32, #tpu.memory_space<vmem>>, %arg11: memref<8x128xf32, #tpu.memory_space<vmem>>) attributes {dimension_semantics = [#tpu.dimension_semantics<parallel>, #tpu.dimension_semantics<arbitrary>], iteration_bounds = array<i64: 1, 1>, scalar_prefetch = 0 : i64, scratch_operands = 1 : i64, tpu.core_type = #tpu.core_type<tc>, window_params = [{transform_indices = @transform_0, window_bounds = array<i64: 8, 1>}, {transform_indices = @transform_1, window_bounds = array<i64: 16, 8, 128>}, {transform_indices = @transform_2, window_bounds = array<i64: 8, 128>}, {pipeline_mode = #tpu.pipeline_mode<synchronous>, transform_indices = @transform_3, window_bounds = array<i64: 128, 384>}, {pipeline_mode = #tpu.pipeline_mode<synchronous>, transform_indices = @transform_4, window_bounds = array<i64: 128, 384>}, {pipeline_mode = #tpu.pipeline_mode<synchronous>, transform_indices = @transform_5, window_bounds = array<i64: 1, 384>}, {pipeline_mode = #tpu.pipeline_mode<synchronous>, transform_indices = @transform_6, window_bounds = array<i64: 1, 384>}, {transform_indices = @transform_7, window_bounds = array<i64: 16, 8, 128>}, {transform_indices = @transform_8, window_bounds = array<i64: 8, 128>}]} {
    %c0_i32 = arith.constant 0 : i32
    %0 = arith.cmpi eq, %arg1, %c0_i32 : i32
    %1 = arith.extui %0 : i1 to i32
    %c0_i32_0 = arith.constant 0 : i32
    %2 = arith.cmpi ne, %1, %c0_i32_0 : i32
    scf.if %2 {
      %c0_102 = arith.constant 0 : index
      %c0_103 = arith.constant 0 : index
      %667 = vector.load %arg4[%c0_102, %c0_103] : memref<8x128xf32, #tpu.memory_space<vmem>>, vector<8x128xf32>
      %c0_104 = arith.constant 0 : index
      %c0_105 = arith.constant 0 : index
      %668 = vector.load %arg11[%c0_104, %c0_105] : memref<8x128xf32, #tpu.memory_space<vmem>>, vector<8x128xf32>
      tpu.vector_store %arg11[%c0_104, %c0_105], %667 {strides = array<i32>} : memref<8x128xf32, #tpu.memory_space<vmem>>, vector<8x128xf32>,
    } else {
    }
    %c0 = arith.constant 0 : index
    %c0_1 = arith.constant 0 : index
    %c0_2 = arith.constant 0 : index
    %3 = vector.load %arg3[%c0, %c0_1, %c0_2] : memref<16x8x128xbf16, #tpu.memory_space<vmem>>, vector<16x8x128xbf16>
    %4 = vector.shape_cast %3 : vector<16x8x128xbf16> to vector<128x128xbf16>
    %c0_3 = arith.constant 0 : index
    %c0_4 = arith.constant 0 : index
    %5 = vector.load %arg5[%c0_3, %c0_4] : memref<128x384xbf16, #tpu.memory_space<vmem>>, vector<128x384xbf16>
    %cst = arith.constant dense<0.000000e+00> : vector<128x384xf32>
    %6 = tpu.matmul %4, %5, %cst {dimension_numbers = #tpu.dot_dimension_numbers<[1], [0], [0], [1], [0, 0, 1, 1], [], []>} : vector<128x128xbf16>, vector<128x384xbf16>, vector<128x384xf32> -> vector<128x384xf32>
    %c0_5 = arith.constant 0 : index
    %c0_6 = arith.constant 0 : index
    %7 = vector.load %arg7[%c0_5, %c0_6] : memref<1x384xf32, #tpu.memory_space<vmem>>, vector<1x384xf32>
    %8 = vector.broadcast %7 : vector<1x384xf32> to vector<128x384xf32>
    %9 = arith.addf %6, %8 : vector<128x384xf32>
    %c0_7 = arith.constant 0 : index
    %c0_8 = arith.constant 0 : index
    %10 = vector.load %arg6[%c0_7, %c0_8] : memref<128x384xbf16, #tpu.memory_space<vmem>>, vector<128x384xbf16>
    %c0_9 = arith.constant 0 : index
    %c0_10 = arith.constant 0 : index
    %11 = vector.load %arg8[%c0_9, %c0_10] : memref<1x384xf32, #tpu.memory_space<vmem>>, vector<1x384xf32>
    %c16_i32 = arith.constant 16 : i32
    %12 = arith.muli %arg1, %c16_i32 : i32
    %c0_11 = arith.constant 0 : index
    %c0_12 = arith.constant 0 : index
    %13 = vector.load %arg2[%c0_11, %c0_12] : memref<8x1xi32, #tpu.memory_space<vmem>>, vector<8x1xi32>
    %14 = tpu.iota {dimensions = array<i32: 1>} : vector<8x16xi32>
    %15 = vector.broadcast %12 : i32 to vector<8x16xi32>
    %16 = arith.addi %15, %14 : vector<8x16xi32>
    %17 = vector.broadcast %13 : vector<8x1xi32> to vector<8x16xi32>
    %18 = arith.cmpi sgt, %17, %16 : vector<8x16xi32>
    %c0_13 = arith.constant 0 : index
    %c0_14 = arith.constant 0 : index
    %19 = vector.load %arg11[%c0_13, %c0_14] : memref<8x128xf32, #tpu.memory_space<vmem>>, vector<8x128xf32>
    %20 = arith.truncf %19 : vector<8x128xf32> to vector<8x128xbf16>
    %cst_15 = arith.constant dense<0.000000e+00> : vector<8x384xf32>
    %21 = tpu.matmul %20, %10, %cst_15 {dimension_numbers = #tpu.dot_dimension_numbers<[1], [0], [0], [1], [0, 0, 1, 1], [], []>} : vector<8x128xbf16>, vector<128x384xbf16>, vector<8x384xf32> -> vector<8x384xf32>
    %22 = vector.broadcast %11 : vector<1x384xf32> to vector<8x384xf32>
    %23 = arith.addf %21, %22 : vector<8x384xf32>
    %24 = vector.extract_strided_slice %9 {offsets = [0, 0], sizes = [8, 384], strides = [1, 1]} : vector<128x384xf32> to vector<8x384xf32>
    %25 = vector.extract_strided_slice %24 {offsets = [0, 0], sizes = [8, 128], strides = [1, 1]} : vector<8x384xf32> to vector<8x128xf32>
    %26 = vector.extract_strided_slice %23 {offsets = [0, 0], sizes = [8, 128], strides = [1, 1]} : vector<8x384xf32> to vector<8x128xf32>
    %27 = arith.addf %25, %26 : vector<8x128xf32>
    %28 = arith.negf %27 : vector<8x128xf32>
    %29 = math.exp %28 : vector<8x128xf32>
    %cst_16 = arith.constant 1.000000e+00 : f32
    %30 = vector.broadcast %cst_16 : f32 to vector<8x128xf32>
    %31 = arith.addf %30, %29 : vector<8x128xf32>
    %32 = arith.divf %30, %31 : vector<8x128xf32>
    %33 = vector.extract_strided_slice %24 {offsets = [0, 128], sizes = [8, 128], strides = [1, 1]} : vector<8x384xf32> to vector<8x128xf32>
    %34 = vector.extract_strided_slice %23 {offsets = [0, 128], sizes = [8, 128], strides = [1, 1]} : vector<8x384xf32> to vector<8x128xf32>
    %35 = arith.addf %33, %34 : vector<8x128xf32>
    %36 = arith.negf %35 : vector<8x128xf32>
    %37 = math.exp %36 : vector<8x128xf32>
    %cst_17 = arith.constant 1.000000e+00 : f32
    %38 = vector.broadcast %cst_17 : f32 to vector<8x128xf32>
    %39 = arith.addf %38, %37 : vector<8x128xf32>
    %40 = arith.divf %38, %39 : vector<8x128xf32>
    %41 = vector.extract_strided_slice %24 {offsets = [0, 256], sizes = [8, 128], strides = [1, 1]} : vector<8x384xf32> to vector<8x128xf32>
    %42 = vector.extract_strided_slice %23 {offsets = [0, 256], sizes = [8, 128], strides = [1, 1]} : vector<8x384xf32> to vector<8x128xf32>
    %43 = arith.mulf %32, %42 : vector<8x128xf32>
    %44 = arith.addf %41, %43 : vector<8x128xf32>
    %45 = math.tanh %44 : vector<8x128xf32>
    %cst_18 = arith.constant 1.000000e+00 : f32
    %46 = vector.broadcast %cst_18 : f32 to vector<8x128xf32>
    %47 = arith.subf %46, %40 : vector<8x128xf32>
    %48 = arith.mulf %47, %45 : vector<8x128xf32>
    %49 = arith.mulf %40, %19 : vector<8x128xf32>
    %50 = arith.addf %48, %49 : vector<8x128xf32>
    %51 = vector.extract_strided_slice %18 {offsets = [0, 0], sizes = [8, 1], strides = [1, 1]} : vector<8x16xi1> to vector<8x1xi1>
    %cst_19 = arith.constant 0.000000e+00 : f32
    %52 = vector.shape_cast %51 : vector<8x1xi1> to vector<8x1xi1>
    %53 = vector.broadcast %52 : vector<8x1xi1> to vector<8x128xi1>
    %54 = vector.broadcast %cst_19 : f32 to vector<8x128xf32>
    %55 = arith.select %53, %50, %54 : vector<8x128xi1>, vector<8x128xf32>
    %56 = vector.shape_cast %51 : vector<8x1xi1> to vector<8x1xi1>
    %57 = vector.broadcast %56 : vector<8x1xi1> to vector<8x128xi1>
    %58 = arith.select %57, %50, %19 : vector<8x128xi1>, vector<8x128xf32>
    %59 = arith.truncf %58 : vector<8x128xf32> to vector<8x128xbf16>
    %cst_20 = arith.constant dense<0.000000e+00> : vector<8x384xf32>
    %60 = tpu.matmul %59, %10, %cst_20 {dimension_numbers = #tpu.dot_dimension_numbers<[1], [0], [0], [1], [0, 0, 1, 1], [], []>} : vector<8x128xbf16>, vector<128x384xbf16>, vector<8x384xf32> -> vector<8x384xf32>
    %61 = vector.broadcast %11 : vector<1x384xf32> to vector<8x384xf32>
    %62 = arith.addf %60, %61 : vector<8x384xf32>
    %63 = vector.extract_strided_slice %9 {offsets = [8, 0], sizes = [8, 384], strides = [1, 1]} : vector<128x384xf32> to vector<8x384xf32>
    %64 = vector.extract_strided_slice %63 {offsets = [0, 0], sizes = [8, 128], strides = [1, 1]} : vector<8x384xf32> to vector<8x128xf32>
    %65 = vector.extract_strided_slice %62 {offsets = [0, 0], sizes = [8, 128], strides = [1, 1]} : vector<8x384xf32> to vector<8x128xf32>
    %66 = arith.addf %64, %65 : vector<8x128xf32>
    %67 = arith.negf %66 : vector<8x128xf32>
    %68 = math.exp %67 : vector<8x128xf32>
    %cst_21 = arith.constant 1.000000e+00 : f32
    %69 = vector.broadcast %cst_21 : f32 to vector<8x128xf32>
    %70 = arith.addf %69, %68 : vector<8x128xf32>
    %71 = arith.divf %69, %70 : vector<8x128xf32>
    %72 = vector.extract_strided_slice %63 {offsets = [0, 128], sizes = [8, 128], strides = [1, 1]} : vector<8x384xf32> to vector<8x128xf32>
    %73 = vector.extract_strided_slice %62 {offsets = [0, 128], sizes = [8, 128], strides = [1, 1]} : vector<8x384xf32> to vector<8x128xf32>
    %74 = arith.addf %72, %73 : vector<8x128xf32>
    %75 = arith.negf %74 : vector<8x128xf32>
    %76 = math.exp %75 : vector<8x128xf32>
    %cst_22 = arith.constant 1.000000e+00 : f32
    %77 = vector.broadcast %cst_22 : f32 to vector<8x128xf32>
    %78 = arith.addf %77, %76 : vector<8x128xf32>
    %79 = arith.divf %77, %78 : vector<8x128xf32>
    %80 = vector.extract_strided_slice %63 {offsets = [0, 256], sizes = [8, 128], strides = [1, 1]} : vector<8x384xf32> to vector<8x128xf32>
    %81 = vector.extract_strided_slice %62 {offsets = [0, 256], sizes = [8, 128], strides = [1, 1]} : vector<8x384xf32> to vector<8x128xf32>
    %82 = arith.mulf %71, %81 : vector<8x128xf32>
    %83 = arith.addf %80, %82 : vector<8x128xf32>
    %84 = math.tanh %83 : vector<8x128xf32>
    %cst_23 = arith.constant 1.000000e+00 : f32
    %85 = vector.broadcast %cst_23 : f32 to vector<8x128xf32>
    %86 = arith.subf %85, %79 : vector<8x128xf32>
    %87 = arith.mulf %86, %84 : vector<8x128xf32>
    %88 = arith.mulf %79, %58 : vector<8x128xf32>
    %89 = arith.addf %87, %88 : vector<8x128xf32>
    %90 = vector.extract_strided_slice %18 {offsets = [0, 1], sizes = [8, 1], strides = [1, 1]} : vector<8x16xi1> to vector<8x1xi1>
    %cst_24 = arith.constant 0.000000e+00 : f32
    %91 = vector.shape_cast %90 : vector<8x1xi1> to vector<8x1xi1>
    %92 = vector.broadcast %91 : vector<8x1xi1> to vector<8x128xi1>
    %93 = vector.broadcast %cst_24 : f32 to vector<8x128xf32>
    %94 = arith.select %92, %89, %93 : vector<8x128xi1>, vector<8x128xf32>
    %95 = vector.shape_cast %90 : vector<8x1xi1> to vector<8x1xi1>
    %96 = vector.broadcast %95 : vector<8x1xi1> to vector<8x128xi1>
    %97 = arith.select %96, %89, %58 : vector<8x128xi1>, vector<8x128xf32>
    %98 = arith.truncf %97 : vector<8x128xf32> to vector<8x128xbf16>
    %cst_25 = arith.constant dense<0.000000e+00> : vector<8x384xf32>
    %99 = tpu.matmul %98, %10, %cst_25 {dimension_numbers = #tpu.dot_dimension_numbers<[1], [0], [0], [1], [0, 0, 1, 1], [], []>} : vector<8x128xbf16>, vector<128x384xbf16>, vector<8x384xf32> -> vector<8x384xf32>
    %100 = vector.broadcast %11 : vector<1x384xf32> to vector<8x384xf32>
    %101 = arith.addf %99, %100 : vector<8x384xf32>
    %102 = vector.extract_strided_slice %9 {offsets = [16, 0], sizes = [8, 384], strides = [1, 1]} : vector<128x384xf32> to vector<8x384xf32>
    %103 = vector.extract_strided_slice %102 {offsets = [0, 0], sizes = [8, 128], strides = [1, 1]} : vector<8x384xf32> to vector<8x128xf32>
    %104 = vector.extract_strided_slice %101 {offsets = [0, 0], sizes = [8, 128], strides = [1, 1]} : vector<8x384xf32> to vector<8x128xf32>
    %105 = arith.addf %103, %104 : vector<8x128xf32>
    %106 = arith.negf %105 : vector<8x128xf32>
    %107 = math.exp %106 : vector<8x128xf32>
    %cst_26 = arith.constant 1.000000e+00 : f32
    %108 = vector.broadcast %cst_26 : f32 to vector<8x128xf32>
    %109 = arith.addf %108, %107 : vector<8x128xf32>
    %110 = arith.divf %108, %109 : vector<8x128xf32>
    %111 = vector.extract_strided_slice %102 {offsets = [0, 128], sizes = [8, 128], strides = [1, 1]} : vector<8x384xf32> to vector<8x128xf32>
    %112 = vector.extract_strided_slice %101 {offsets = [0, 128], sizes = [8, 128], strides = [1, 1]} : vector<8x384xf32> to vector<8x128xf32>
    %113 = arith.addf %111, %112 : vector<8x128xf32>
    %114 = arith.negf %113 : vector<8x128xf32>
    %115 = math.exp %114 : vector<8x128xf32>
    %cst_27 = arith.constant 1.000000e+00 : f32
    %116 = vector.broadcast %cst_27 : f32 to vector<8x128xf32>
    %117 = arith.addf %116, %115 : vector<8x128xf32>
    %118 = arith.divf %116, %117 : vector<8x128xf32>
    %119 = vector.extract_strided_slice %102 {offsets = [0, 256], sizes = [8, 128], strides = [1, 1]} : vector<8x384xf32> to vector<8x128xf32>
    %120 = vector.extract_strided_slice %101 {offsets = [0, 256], sizes = [8, 128], strides = [1, 1]} : vector<8x384xf32> to vector<8x128xf32>
    %121 = arith.mulf %110, %120 : vector<8x128xf32>
    %122 = arith.addf %119, %121 : vector<8x128xf32>
    %123 = math.tanh %122 : vector<8x128xf32>
    %cst_28 = arith.constant 1.000000e+00 : f32
    %124 = vector.broadcast %cst_28 : f32 to vector<8x128xf32>
    %125 = arith.subf %124, %118 : vector<8x128xf32>
    %126 = arith.mulf %125, %123 : vector<8x128xf32>
    %127 = arith.mulf %118, %97 : vector<8x128xf32>
    %128 = arith.addf %126, %127 : vector<8x128xf32>
    %129 = vector.extract_strided_slice %18 {offsets = [0, 2], sizes = [8, 1], strides = [1, 1]} : vector<8x16xi1> to vector<8x1xi1>
    %cst_29 = arith.constant 0.000000e+00 : f32
    %130 = vector.shape_cast %129 : vector<8x1xi1> to vector<8x1xi1>
    %131 = vector.broadcast %130 : vector<8x1xi1> to vector<8x128xi1>
    %132 = vector.broadcast %cst_29 : f32 to vector<8x128xf32>
    %133 = arith.select %131, %128, %132 : vector<8x128xi1>, vector<8x128xf32>
    %134 = vector.shape_cast %129 : vector<8x1xi1> to vector<8x1xi1>
    %135 = vector.broadcast %134 : vector<8x1xi1> to vector<8x128xi1>
    %136 = arith.select %135, %128, %97 : vector<8x128xi1>, vector<8x128xf32>
    %137 = arith.truncf %136 : vector<8x128xf32> to vector<8x128xbf16>
    %cst_30 = arith.constant dense<0.000000e+00> : vector<8x384xf32>
    %138 = tpu.matmul %137, %10, %cst_30 {dimension_numbers = #tpu.dot_dimension_numbers<[1], [0], [0], [1], [0, 0, 1, 1], [], []>} : vector<8x128xbf16>, vector<128x384xbf16>, vector<8x384xf32> -> vector<8x384xf32>
    %139 = vector.broadcast %11 : vector<1x384xf32> to vector<8x384xf32>
    %140 = arith.addf %138, %139 : vector<8x384xf32>
    %141 = vector.extract_strided_slice %9 {offsets = [24, 0], sizes = [8, 384], strides = [1, 1]} : vector<128x384xf32> to vector<8x384xf32>
    %142 = vector.extract_strided_slice %141 {offsets = [0, 0], sizes = [8, 128], strides = [1, 1]} : vector<8x384xf32> to vector<8x128xf32>
    %143 = vector.extract_strided_slice %140 {offsets = [0, 0], sizes = [8, 128], strides = [1, 1]} : vector<8x384xf32> to vector<8x128xf32>
    %144 = arith.addf %142, %143 : vector<8x128xf32>
    %145 = arith.negf %144 : vector<8x128xf32>
    %146 = math.exp %145 : vector<8x128xf32>
    %cst_31 = arith.constant 1.000000e+00 : f32
    %147 = vector.broadcast %cst_31 : f32 to vector<8x128xf32>
    %148 = arith.addf %147, %146 : vector<8x128xf32>
    %149 = arith.divf %147, %148 : vector<8x128xf32>
    %150 = vector.extract_strided_slice %141 {offsets = [0, 128], sizes = [8, 128], strides = [1, 1]} : vector<8x384xf32> to vector<8x128xf32>
    %151 = vector.extract_strided_slice %140 {offsets = [0, 128], sizes = [8, 128], strides = [1, 1]} : vector<8x384xf32> to vector<8x128xf32>
    %152 = arith.addf %150, %151 : vector<8x128xf32>
    %153 = arith.negf %152 : vector<8x128xf32>
    %154 = math.exp %153 : vector<8x128xf32>
    %cst_32 = arith.constant 1.000000e+00 : f32
    %155 = vector.broadcast %cst_32 : f32 to vector<8x128xf32>
    %156 = arith.addf %155, %154 : vector<8x128xf32>
    %157 = arith.divf %155, %156 : vector<8x128xf32>
    %158 = vector.extract_strided_slice %141 {offsets = [0, 256], sizes = [8, 128], strides = [1, 1]} : vector<8x384xf32> to vector<8x128xf32>
    %159 = vector.extract_strided_slice %140 {offsets = [0, 256], sizes = [8, 128], strides = [1, 1]} : vector<8x384xf32> to vector<8x128xf32>
    %160 = arith.mulf %149, %159 : vector<8x128xf32>
    %161 = arith.addf %158, %160 : vector<8x128xf32>
    %162 = math.tanh %161 : vector<8x128xf32>
    %cst_33 = arith.constant 1.000000e+00 : f32
    %163 = vector.broadcast %cst_33 : f32 to vector<8x128xf32>
    %164 = arith.subf %163, %157 : vector<8x128xf32>
    %165 = arith.mulf %164, %162 : vector<8x128xf32>
    %166 = arith.mulf %157, %136 : vector<8x128xf32>
    %167 = arith.addf %165, %166 : vector<8x128xf32>
    %168 = vector.extract_strided_slice %18 {offsets = [0, 3], sizes = [8, 1], strides = [1, 1]} : vector<8x16xi1> to vector<8x1xi1>
    %cst_34 = arith.constant 0.000000e+00 : f32
    %169 = vector.shape_cast %168 : vector<8x1xi1> to vector<8x1xi1>
    %170 = vector.broadcast %169 : vector<8x1xi1> to vector<8x128xi1>
    %171 = vector.broadcast %cst_34 : f32 to vector<8x128xf32>
    %172 = arith.select %170, %167, %171 : vector<8x128xi1>, vector<8x128xf32>
    %173 = vector.shape_cast %168 : vector<8x1xi1> to vector<8x1xi1>
    %174 = vector.broadcast %173 : vector<8x1xi1> to vector<8x128xi1>
    %175 = arith.select %174, %167, %136 : vector<8x128xi1>, vector<8x128xf32>
    %176 = arith.truncf %175 : vector<8x128xf32> to vector<8x128xbf16>
    %cst_35 = arith.constant dense<0.000000e+00> : vector<8x384xf32>
    %177 = tpu.matmul %176, %10, %cst_35 {dimension_numbers = #tpu.dot_dimension_numbers<[1], [0], [0], [1], [0, 0, 1, 1], [], []>} : vector<8x128xbf16>, vector<128x384xbf16>, vector<8x384xf32> -> vector<8x384xf32>
    %178 = vector.broadcast %11 : vector<1x384xf32> to vector<8x384xf32>
    %179 = arith.addf %177, %178 : vector<8x384xf32>
    %180 = vector.extract_strided_slice %9 {offsets = [32, 0], sizes = [8, 384], strides = [1, 1]} : vector<128x384xf32> to vector<8x384xf32>
    %181 = vector.extract_strided_slice %180 {offsets = [0, 0], sizes = [8, 128], strides = [1, 1]} : vector<8x384xf32> to vector<8x128xf32>
    %182 = vector.extract_strided_slice %179 {offsets = [0, 0], sizes = [8, 128], strides = [1, 1]} : vector<8x384xf32> to vector<8x128xf32>
    %183 = arith.addf %181, %182 : vector<8x128xf32>
    %184 = arith.negf %183 : vector<8x128xf32>
    %185 = math.exp %184 : vector<8x128xf32>
    %cst_36 = arith.constant 1.000000e+00 : f32
    %186 = vector.broadcast %cst_36 : f32 to vector<8x128xf32>
    %187 = arith.addf %186, %185 : vector<8x128xf32>
    %188 = arith.divf %186, %187 : vector<8x128xf32>
    %189 = vector.extract_strided_slice %180 {offsets = [0, 128], sizes = [8, 128], strides = [1, 1]} : vector<8x384xf32> to vector<8x128xf32>
    %190 = vector.extract_strided_slice %179 {offsets = [0, 128], sizes = [8, 128], strides = [1, 1]} : vector<8x384xf32> to vector<8x128xf32>
    %191 = arith.addf %189, %190 : vector<8x128xf32>
    %192 = arith.negf %191 : vector<8x128xf32>
    %193 = math.exp %192 : vector<8x128xf32>
    %cst_37 = arith.constant 1.000000e+00 : f32
    %194 = vector.broadcast %cst_37 : f32 to vector<8x128xf32>
    %195 = arith.addf %194, %193 : vector<8x128xf32>
    %196 = arith.divf %194, %195 : vector<8x128xf32>
    %197 = vector.extract_strided_slice %180 {offsets = [0, 256], sizes = [8, 128], strides = [1, 1]} : vector<8x384xf32> to vector<8x128xf32>
    %198 = vector.extract_strided_slice %179 {offsets = [0, 256], sizes = [8, 128], strides = [1, 1]} : vector<8x384xf32> to vector<8x128xf32>
    %199 = arith.mulf %188, %198 : vector<8x128xf32>
    %200 = arith.addf %197, %199 : vector<8x128xf32>
    %201 = math.tanh %200 : vector<8x128xf32>
    %cst_38 = arith.constant 1.000000e+00 : f32
    %202 = vector.broadcast %cst_38 : f32 to vector<8x128xf32>
    %203 = arith.subf %202, %196 : vector<8x128xf32>
    %204 = arith.mulf %203, %201 : vector<8x128xf32>
    %205 = arith.mulf %196, %175 : vector<8x128xf32>
    %206 = arith.addf %204, %205 : vector<8x128xf32>
    %207 = vector.extract_strided_slice %18 {offsets = [0, 4], sizes = [8, 1], strides = [1, 1]} : vector<8x16xi1> to vector<8x1xi1>
    %cst_39 = arith.constant 0.000000e+00 : f32
    %208 = vector.shape_cast %207 : vector<8x1xi1> to vector<8x1xi1>
    %209 = vector.broadcast %208 : vector<8x1xi1> to vector<8x128xi1>
    %210 = vector.broadcast %cst_39 : f32 to vector<8x128xf32>
    %211 = arith.select %209, %206, %210 : vector<8x128xi1>, vector<8x128xf32>
    %212 = vector.shape_cast %207 : vector<8x1xi1> to vector<8x1xi1>
    %213 = vector.broadcast %212 : vector<8x1xi1> to vector<8x128xi1>
    %214 = arith.select %213, %206, %175 : vector<8x128xi1>, vector<8x128xf32>
    %215 = arith.truncf %214 : vector<8x128xf32> to vector<8x128xbf16>
    %cst_40 = arith.constant dense<0.000000e+00> : vector<8x384xf32>
    %216 = tpu.matmul %215, %10, %cst_40 {dimension_numbers = #tpu.dot_dimension_numbers<[1], [0], [0], [1], [0, 0, 1, 1], [], []>} : vector<8x128xbf16>, vector<128x384xbf16>, vector<8x384xf32> -> vector<8x384xf32>
    %217 = vector.broadcast %11 : vector<1x384xf32> to vector<8x384xf32>
    %218 = arith.addf %216, %217 : vector<8x384xf32>
    %219 = vector.extract_strided_slice %9 {offsets = [40, 0], sizes = [8, 384], strides = [1, 1]} : vector<128x384xf32> to vector<8x384xf32>
    %220 = vector.extract_strided_slice %219 {offsets = [0, 0], sizes = [8, 128], strides = [1, 1]} : vector<8x384xf32> to vector<8x128xf32>
    %221 = vector.extract_strided_slice %218 {offsets = [0, 0], sizes = [8, 128], strides = [1, 1]} : vector<8x384xf32> to vector<8x128xf32>
    %222 = arith.addf %220, %221 : vector<8x128xf32>
    %223 = arith.negf %222 : vector<8x128xf32>
    %224 = math.exp %223 : vector<8x128xf32>
    %cst_41 = arith.constant 1.000000e+00 : f32
    %225 = vector.broadcast %cst_41 : f32 to vector<8x128xf32>
    %226 = arith.addf %225, %224 : vector<8x128xf32>
    %227 = arith.divf %225, %226 : vector<8x128xf32>
    %228 = vector.extract_strided_slice %219 {offsets = [0, 128], sizes = [8, 128], strides = [1, 1]} : vector<8x384xf32> to vector<8x128xf32>
    %229 = vector.extract_strided_slice %218 {offsets = [0, 128], sizes = [8, 128], strides = [1, 1]} : vector<8x384xf32> to vector<8x128xf32>
    %230 = arith.addf %228, %229 : vector<8x128xf32>
    %231 = arith.negf %230 : vector<8x128xf32>
    %232 = math.exp %231 : vector<8x128xf32>
    %cst_42 = arith.constant 1.000000e+00 : f32
    %233 = vector.broadcast %cst_42 : f32 to vector<8x128xf32>
    %234 = arith.addf %233, %232 : vector<8x128xf32>
    %235 = arith.divf %233, %234 : vector<8x128xf32>
    %236 = vector.extract_strided_slice %219 {offsets = [0, 256], sizes = [8, 128], strides = [1, 1]} : vector<8x384xf32> to vector<8x128xf32>
    %237 = vector.extract_strided_slice %218 {offsets = [0, 256], sizes = [8, 128], strides = [1, 1]} : vector<8x384xf32> to vector<8x128xf32>
    %238 = arith.mulf %227, %237 : vector<8x128xf32>
    %239 = arith.addf %236, %238 : vector<8x128xf32>
    %240 = math.tanh %239 : vector<8x128xf32>
    %cst_43 = arith.constant 1.000000e+00 : f32
    %241 = vector.broadcast %cst_43 : f32 to vector<8x128xf32>
    %242 = arith.subf %241, %235 : vector<8x128xf32>
    %243 = arith.mulf %242, %240 : vector<8x128xf32>
    %244 = arith.mulf %235, %214 : vector<8x128xf32>
    %245 = arith.addf %243, %244 : vector<8x128xf32>
    %246 = vector.extract_strided_slice %18 {offsets = [0, 5], sizes = [8, 1], strides = [1, 1]} : vector<8x16xi1> to vector<8x1xi1>
    %cst_44 = arith.constant 0.000000e+00 : f32
    %247 = vector.shape_cast %246 : vector<8x1xi1> to vector<8x1xi1>
    %248 = vector.broadcast %247 : vector<8x1xi1> to vector<8x128xi1>
    %249 = vector.broadcast %cst_44 : f32 to vector<8x128xf32>
    %250 = arith.select %248, %245, %249 : vector<8x128xi1>, vector<8x128xf32>
    %251 = vector.shape_cast %246 : vector<8x1xi1> to vector<8x1xi1>
    %252 = vector.broadcast %251 : vector<8x1xi1> to vector<8x128xi1>
    %253 = arith.select %252, %245, %214 : vector<8x128xi1>, vector<8x128xf32>
    %254 = arith.truncf %253 : vector<8x128xf32> to vector<8x128xbf16>
    %cst_45 = arith.constant dense<0.000000e+00> : vector<8x384xf32>
    %255 = tpu.matmul %254, %10, %cst_45 {dimension_numbers = #tpu.dot_dimension_numbers<[1], [0], [0], [1], [0, 0, 1, 1], [], []>} : vector<8x128xbf16>, vector<128x384xbf16>, vector<8x384xf32> -> vector<8x384xf32>
    %256 = vector.broadcast %11 : vector<1x384xf32> to vector<8x384xf32>
    %257 = arith.addf %255, %256 : vector<8x384xf32>
    %258 = vector.extract_strided_slice %9 {offsets = [48, 0], sizes = [8, 384], strides = [1, 1]} : vector<128x384xf32> to vector<8x384xf32>
    %259 = vector.extract_strided_slice %258 {offsets = [0, 0], sizes = [8, 128], strides = [1, 1]} : vector<8x384xf32> to vector<8x128xf32>
    %260 = vector.extract_strided_slice %257 {offsets = [0, 0], sizes = [8, 128], strides = [1, 1]} : vector<8x384xf32> to vector<8x128xf32>
    %261 = arith.addf %259, %260 : vector<8x128xf32>
    %262 = arith.negf %261 : vector<8x128xf32>
    %263 = math.exp %262 : vector<8x128xf32>
    %cst_46 = arith.constant 1.000000e+00 : f32
    %264 = vector.broadcast %cst_46 : f32 to vector<8x128xf32>
    %265 = arith.addf %264, %263 : vector<8x128xf32>
    %266 = arith.divf %264, %265 : vector<8x128xf32>
    %267 = vector.extract_strided_slice %258 {offsets = [0, 128], sizes = [8, 128], strides = [1, 1]} : vector<8x384xf32> to vector<8x128xf32>
    %268 = vector.extract_strided_slice %257 {offsets = [0, 128], sizes = [8, 128], strides = [1, 1]} : vector<8x384xf32> to vector<8x128xf32>
    %269 = arith.addf %267, %268 : vector<8x128xf32>
    %270 = arith.negf %269 : vector<8x128xf32>
    %271 = math.exp %270 : vector<8x128xf32>
    %cst_47 = arith.constant 1.000000e+00 : f32
    %272 = vector.broadcast %cst_47 : f32 to vector<8x128xf32>
    %273 = arith.addf %272, %271 : vector<8x128xf32>
    %274 = arith.divf %272, %273 : vector<8x128xf32>
    %275 = vector.extract_strided_slice %258 {offsets = [0, 256], sizes = [8, 128], strides = [1, 1]} : vector<8x384xf32> to vector<8x128xf32>
    %276 = vector.extract_strided_slice %257 {offsets = [0, 256], sizes = [8, 128], strides = [1, 1]} : vector<8x384xf32> to vector<8x128xf32>
    %277 = arith.mulf %266, %276 : vector<8x128xf32>
    %278 = arith.addf %275, %277 : vector<8x128xf32>
    %279 = math.tanh %278 : vector<8x128xf32>
    %cst_48 = arith.constant 1.000000e+00 : f32
    %280 = vector.broadcast %cst_48 : f32 to vector<8x128xf32>
    %281 = arith.subf %280, %274 : vector<8x128xf32>
    %282 = arith.mulf %281, %279 : vector<8x128xf32>
    %283 = arith.mulf %274, %253 : vector<8x128xf32>
    %284 = arith.addf %282, %283 : vector<8x128xf32>
    %285 = vector.extract_strided_slice %18 {offsets = [0, 6], sizes = [8, 1], strides = [1, 1]} : vector<8x16xi1> to vector<8x1xi1>
    %cst_49 = arith.constant 0.000000e+00 : f32
    %286 = vector.shape_cast %285 : vector<8x1xi1> to vector<8x1xi1>
    %287 = vector.broadcast %286 : vector<8x1xi1> to vector<8x128xi1>
    %288 = vector.broadcast %cst_49 : f32 to vector<8x128xf32>
    %289 = arith.select %287, %284, %288 : vector<8x128xi1>, vector<8x128xf32>
    %290 = vector.shape_cast %285 : vector<8x1xi1> to vector<8x1xi1>
    %291 = vector.broadcast %290 : vector<8x1xi1> to vector<8x128xi1>
    %292 = arith.select %291, %284, %253 : vector<8x128xi1>, vector<8x128xf32>
    %293 = arith.truncf %292 : vector<8x128xf32> to vector<8x128xbf16>
    %cst_50 = arith.constant dense<0.000000e+00> : vector<8x384xf32>
    %294 = tpu.matmul %293, %10, %cst_50 {dimension_numbers = #tpu.dot_dimension_numbers<[1], [0], [0], [1], [0, 0, 1, 1], [], []>} : vector<8x128xbf16>, vector<128x384xbf16>, vector<8x384xf32> -> vector<8x384xf32>
    %295 = vector.broadcast %11 : vector<1x384xf32> to vector<8x384xf32>
    %296 = arith.addf %294, %295 : vector<8x384xf32>
    %297 = vector.extract_strided_slice %9 {offsets = [56, 0], sizes = [8, 384], strides = [1, 1]} : vector<128x384xf32> to vector<8x384xf32>
    %298 = vector.extract_strided_slice %297 {offsets = [0, 0], sizes = [8, 128], strides = [1, 1]} : vector<8x384xf32> to vector<8x128xf32>
    %299 = vector.extract_strided_slice %296 {offsets = [0, 0], sizes = [8, 128], strides = [1, 1]} : vector<8x384xf32> to vector<8x128xf32>
    %300 = arith.addf %298, %299 : vector<8x128xf32>
    %301 = arith.negf %300 : vector<8x128xf32>
    %302 = math.exp %301 : vector<8x128xf32>
    %cst_51 = arith.constant 1.000000e+00 : f32
    %303 = vector.broadcast %cst_51 : f32 to vector<8x128xf32>
    %304 = arith.addf %303, %302 : vector<8x128xf32>
    %305 = arith.divf %303, %304 : vector<8x128xf32>
    %306 = vector.extract_strided_slice %297 {offsets = [0, 128], sizes = [8, 128], strides = [1, 1]} : vector<8x384xf32> to vector<8x128xf32>
    %307 = vector.extract_strided_slice %296 {offsets = [0, 128], sizes = [8, 128], strides = [1, 1]} : vector<8x384xf32> to vector<8x128xf32>
    %308 = arith.addf %306, %307 : vector<8x128xf32>
    %309 = arith.negf %308 : vector<8x128xf32>
    %310 = math.exp %309 : vector<8x128xf32>
    %cst_52 = arith.constant 1.000000e+00 : f32
    %311 = vector.broadcast %cst_52 : f32 to vector<8x128xf32>
    %312 = arith.addf %311, %310 : vector<8x128xf32>
    %313 = arith.divf %311, %312 : vector<8x128xf32>
    %314 = vector.extract_strided_slice %297 {offsets = [0, 256], sizes = [8, 128], strides = [1, 1]} : vector<8x384xf32> to vector<8x128xf32>
    %315 = vector.extract_strided_slice %296 {offsets = [0, 256], sizes = [8, 128], strides = [1, 1]} : vector<8x384xf32> to vector<8x128xf32>
    %316 = arith.mulf %305, %315 : vector<8x128xf32>
    %317 = arith.addf %314, %316 : vector<8x128xf32>
    %318 = math.tanh %317 : vector<8x128xf32>
    %cst_53 = arith.constant 1.000000e+00 : f32
    %319 = vector.broadcast %cst_53 : f32 to vector<8x128xf32>
    %320 = arith.subf %319, %313 : vector<8x128xf32>
    %321 = arith.mulf %320, %318 : vector<8x128xf32>
    %322 = arith.mulf %313, %292 : vector<8x128xf32>
    %323 = arith.addf %321, %322 : vector<8x128xf32>
    %324 = vector.extract_strided_slice %18 {offsets = [0, 7], sizes = [8, 1], strides = [1, 1]} : vector<8x16xi1> to vector<8x1xi1>
    %cst_54 = arith.constant 0.000000e+00 : f32
    %325 = vector.shape_cast %324 : vector<8x1xi1> to vector<8x1xi1>
    %326 = vector.broadcast %325 : vector<8x1xi1> to vector<8x128xi1>
    %327 = vector.broadcast %cst_54 : f32 to vector<8x128xf32>
    %328 = arith.select %326, %323, %327 : vector<8x128xi1>, vector<8x128xf32>
    %329 = vector.shape_cast %324 : vector<8x1xi1> to vector<8x1xi1>
    %330 = vector.broadcast %329 : vector<8x1xi1> to vector<8x128xi1>
    %331 = arith.select %330, %323, %292 : vector<8x128xi1>, vector<8x128xf32>
    %332 = arith.truncf %331 : vector<8x128xf32> to vector<8x128xbf16>
    %cst_55 = arith.constant dense<0.000000e+00> : vector<8x384xf32>
    %333 = tpu.matmul %332, %10, %cst_55 {dimension_numbers = #tpu.dot_dimension_numbers<[1], [0], [0], [1], [0, 0, 1, 1], [], []>} : vector<8x128xbf16>, vector<128x384xbf16>, vector<8x384xf32> -> vector<8x384xf32>
    %334 = vector.broadcast %11 : vector<1x384xf32> to vector<8x384xf32>
    %335 = arith.addf %333, %334 : vector<8x384xf32>
    %336 = vector.extract_strided_slice %9 {offsets = [64, 0], sizes = [8, 384], strides = [1, 1]} : vector<128x384xf32> to vector<8x384xf32>
    %337 = vector.extract_strided_slice %336 {offsets = [0, 0], sizes = [8, 128], strides = [1, 1]} : vector<8x384xf32> to vector<8x128xf32>
    %338 = vector.extract_strided_slice %335 {offsets = [0, 0], sizes = [8, 128], strides = [1, 1]} : vector<8x384xf32> to vector<8x128xf32>
    %339 = arith.addf %337, %338 : vector<8x128xf32>
    %340 = arith.negf %339 : vector<8x128xf32>
    %341 = math.exp %340 : vector<8x128xf32>
    %cst_56 = arith.constant 1.000000e+00 : f32
    %342 = vector.broadcast %cst_56 : f32 to vector<8x128xf32>
    %343 = arith.addf %342, %341 : vector<8x128xf32>
    %344 = arith.divf %342, %343 : vector<8x128xf32>
    %345 = vector.extract_strided_slice %336 {offsets = [0, 128], sizes = [8, 128], strides = [1, 1]} : vector<8x384xf32> to vector<8x128xf32>
    %346 = vector.extract_strided_slice %335 {offsets = [0, 128], sizes = [8, 128], strides = [1, 1]} : vector<8x384xf32> to vector<8x128xf32>
    %347 = arith.addf %345, %346 : vector<8x128xf32>
    %348 = arith.negf %347 : vector<8x128xf32>
    %349 = math.exp %348 : vector<8x128xf32>
    %cst_57 = arith.constant 1.000000e+00 : f32
    %350 = vector.broadcast %cst_57 : f32 to vector<8x128xf32>
    %351 = arith.addf %350, %349 : vector<8x128xf32>
    %352 = arith.divf %350, %351 : vector<8x128xf32>
    %353 = vector.extract_strided_slice %336 {offsets = [0, 256], sizes = [8, 128], strides = [1, 1]} : vector<8x384xf32> to vector<8x128xf32>
    %354 = vector.extract_strided_slice %335 {offsets = [0, 256], sizes = [8, 128], strides = [1, 1]} : vector<8x384xf32> to vector<8x128xf32>
    %355 = arith.mulf %344, %354 : vector<8x128xf32>
    %356 = arith.addf %353, %355 : vector<8x128xf32>
    %357 = math.tanh %356 : vector<8x128xf32>
    %cst_58 = arith.constant 1.000000e+00 : f32
    %358 = vector.broadcast %cst_58 : f32 to vector<8x128xf32>
    %359 = arith.subf %358, %352 : vector<8x128xf32>
    %360 = arith.mulf %359, %357 : vector<8x128xf32>
    %361 = arith.mulf %352, %331 : vector<8x128xf32>
    %362 = arith.addf %360, %361 : vector<8x128xf32>
    %363 = vector.extract_strided_slice %18 {offsets = [0, 8], sizes = [8, 1], strides = [1, 1]} : vector<8x16xi1> to vector<8x1xi1>
    %cst_59 = arith.constant 0.000000e+00 : f32
    %364 = vector.shape_cast %363 : vector<8x1xi1> to vector<8x1xi1>
    %365 = vector.broadcast %364 : vector<8x1xi1> to vector<8x128xi1>
    %366 = vector.broadcast %cst_59 : f32 to vector<8x128xf32>
    %367 = arith.select %365, %362, %366 : vector<8x128xi1>, vector<8x128xf32>
    %368 = vector.shape_cast %363 : vector<8x1xi1> to vector<8x1xi1>
    %369 = vector.broadcast %368 : vector<8x1xi1> to vector<8x128xi1>
    %370 = arith.select %369, %362, %331 : vector<8x128xi1>, vector<8x128xf32>
    %371 = arith.truncf %370 : vector<8x128xf32> to vector<8x128xbf16>
    %cst_60 = arith.constant dense<0.000000e+00> : vector<8x384xf32>
    %372 = tpu.matmul %371, %10, %cst_60 {dimension_numbers = #tpu.dot_dimension_numbers<[1], [0], [0], [1], [0, 0, 1, 1], [], []>} : vector<8x128xbf16>, vector<128x384xbf16>, vector<8x384xf32> -> vector<8x384xf32>
    %373 = vector.broadcast %11 : vector<1x384xf32> to vector<8x384xf32>
    %374 = arith.addf %372, %373 : vector<8x384xf32>
    %375 = vector.extract_strided_slice %9 {offsets = [72, 0], sizes = [8, 384], strides = [1, 1]} : vector<128x384xf32> to vector<8x384xf32>
    %376 = vector.extract_strided_slice %375 {offsets = [0, 0], sizes = [8, 128], strides = [1, 1]} : vector<8x384xf32> to vector<8x128xf32>
    %377 = vector.extract_strided_slice %374 {offsets = [0, 0], sizes = [8, 128], strides = [1, 1]} : vector<8x384xf32> to vector<8x128xf32>
    %378 = arith.addf %376, %377 : vector<8x128xf32>
    %379 = arith.negf %378 : vector<8x128xf32>
    %380 = math.exp %379 : vector<8x128xf32>
    %cst_61 = arith.constant 1.000000e+00 : f32
    %381 = vector.broadcast %cst_61 : f32 to vector<8x128xf32>
    %382 = arith.addf %381, %380 : vector<8x128xf32>
    %383 = arith.divf %381, %382 : vector<8x128xf32>
    %384 = vector.extract_strided_slice %375 {offsets = [0, 128], sizes = [8, 128], strides = [1, 1]} : vector<8x384xf32> to vector<8x128xf32>
    %385 = vector.extract_strided_slice %374 {offsets = [0, 128], sizes = [8, 128], strides = [1, 1]} : vector<8x384xf32> to vector<8x128xf32>
    %386 = arith.addf %384, %385 : vector<8x128xf32>
    %387 = arith.negf %386 : vector<8x128xf32>
    %388 = math.exp %387 : vector<8x128xf32>
    %cst_62 = arith.constant 1.000000e+00 : f32
    %389 = vector.broadcast %cst_62 : f32 to vector<8x128xf32>
    %390 = arith.addf %389, %388 : vector<8x128xf32>
    %391 = arith.divf %389, %390 : vector<8x128xf32>
    %392 = vector.extract_strided_slice %375 {offsets = [0, 256], sizes = [8, 128], strides = [1, 1]} : vector<8x384xf32> to vector<8x128xf32>
    %393 = vector.extract_strided_slice %374 {offsets = [0, 256], sizes = [8, 128], strides = [1, 1]} : vector<8x384xf32> to vector<8x128xf32>
    %394 = arith.mulf %383, %393 : vector<8x128xf32>
    %395 = arith.addf %392, %394 : vector<8x128xf32>
    %396 = math.tanh %395 : vector<8x128xf32>
    %cst_63 = arith.constant 1.000000e+00 : f32
    %397 = vector.broadcast %cst_63 : f32 to vector<8x128xf32>
    %398 = arith.subf %397, %391 : vector<8x128xf32>
    %399 = arith.mulf %398, %396 : vector<8x128xf32>
    %400 = arith.mulf %391, %370 : vector<8x128xf32>
    %401 = arith.addf %399, %400 : vector<8x128xf32>
    %402 = vector.extract_strided_slice %18 {offsets = [0, 9], sizes = [8, 1], strides = [1, 1]} : vector<8x16xi1> to vector<8x1xi1>
    %cst_64 = arith.constant 0.000000e+00 : f32
    %403 = vector.shape_cast %402 : vector<8x1xi1> to vector<8x1xi1>
    %404 = vector.broadcast %403 : vector<8x1xi1> to vector<8x128xi1>
    %405 = vector.broadcast %cst_64 : f32 to vector<8x128xf32>
    %406 = arith.select %404, %401, %405 : vector<8x128xi1>, vector<8x128xf32>
    %407 = vector.shape_cast %402 : vector<8x1xi1> to vector<8x1xi1>
    %408 = vector.broadcast %407 : vector<8x1xi1> to vector<8x128xi1>
    %409 = arith.select %408, %401, %370 : vector<8x128xi1>, vector<8x128xf32>
    %410 = arith.truncf %409 : vector<8x128xf32> to vector<8x128xbf16>
    %cst_65 = arith.constant dense<0.000000e+00> : vector<8x384xf32>
    %411 = tpu.matmul %410, %10, %cst_65 {dimension_numbers = #tpu.dot_dimension_numbers<[1], [0], [0], [1], [0, 0, 1, 1], [], []>} : vector<8x128xbf16>, vector<128x384xbf16>, vector<8x384xf32> -> vector<8x384xf32>
    %412 = vector.broadcast %11 : vector<1x384xf32> to vector<8x384xf32>
    %413 = arith.addf %411, %412 : vector<8x384xf32>
    %414 = vector.extract_strided_slice %9 {offsets = [80, 0], sizes = [8, 384], strides = [1, 1]} : vector<128x384xf32> to vector<8x384xf32>
    %415 = vector.extract_strided_slice %414 {offsets = [0, 0], sizes = [8, 128], strides = [1, 1]} : vector<8x384xf32> to vector<8x128xf32>
    %416 = vector.extract_strided_slice %413 {offsets = [0, 0], sizes = [8, 128], strides = [1, 1]} : vector<8x384xf32> to vector<8x128xf32>
    %417 = arith.addf %415, %416 : vector<8x128xf32>
    %418 = arith.negf %417 : vector<8x128xf32>
    %419 = math.exp %418 : vector<8x128xf32>
    %cst_66 = arith.constant 1.000000e+00 : f32
    %420 = vector.broadcast %cst_66 : f32 to vector<8x128xf32>
    %421 = arith.addf %420, %419 : vector<8x128xf32>
    %422 = arith.divf %420, %421 : vector<8x128xf32>
    %423 = vector.extract_strided_slice %414 {offsets = [0, 128], sizes = [8, 128], strides = [1, 1]} : vector<8x384xf32> to vector<8x128xf32>
    %424 = vector.extract_strided_slice %413 {offsets = [0, 128], sizes = [8, 128], strides = [1, 1]} : vector<8x384xf32> to vector<8x128xf32>
    %425 = arith.addf %423, %424 : vector<8x128xf32>
    %426 = arith.negf %425 : vector<8x128xf32>
    %427 = math.exp %426 : vector<8x128xf32>
    %cst_67 = arith.constant 1.000000e+00 : f32
    %428 = vector.broadcast %cst_67 : f32 to vector<8x128xf32>
    %429 = arith.addf %428, %427 : vector<8x128xf32>
    %430 = arith.divf %428, %429 : vector<8x128xf32>
    %431 = vector.extract_strided_slice %414 {offsets = [0, 256], sizes = [8, 128], strides = [1, 1]} : vector<8x384xf32> to vector<8x128xf32>
    %432 = vector.extract_strided_slice %413 {offsets = [0, 256], sizes = [8, 128], strides = [1, 1]} : vector<8x384xf32> to vector<8x128xf32>
    %433 = arith.mulf %422, %432 : vector<8x128xf32>
    %434 = arith.addf %431, %433 : vector<8x128xf32>
    %435 = math.tanh %434 : vector<8x128xf32>
    %cst_68 = arith.constant 1.000000e+00 : f32
    %436 = vector.broadcast %cst_68 : f32 to vector<8x128xf32>
    %437 = arith.subf %436, %430 : vector<8x128xf32>
    %438 = arith.mulf %437, %435 : vector<8x128xf32>
    %439 = arith.mulf %430, %409 : vector<8x128xf32>
    %440 = arith.addf %438, %439 : vector<8x128xf32>
    %441 = vector.extract_strided_slice %18 {offsets = [0, 10], sizes = [8, 1], strides = [1, 1]} : vector<8x16xi1> to vector<8x1xi1>
    %cst_69 = arith.constant 0.000000e+00 : f32
    %442 = vector.shape_cast %441 : vector<8x1xi1> to vector<8x1xi1>
    %443 = vector.broadcast %442 : vector<8x1xi1> to vector<8x128xi1>
    %444 = vector.broadcast %cst_69 : f32 to vector<8x128xf32>
    %445 = arith.select %443, %440, %444 : vector<8x128xi1>, vector<8x128xf32>
    %446 = vector.shape_cast %441 : vector<8x1xi1> to vector<8x1xi1>
    %447 = vector.broadcast %446 : vector<8x1xi1> to vector<8x128xi1>
    %448 = arith.select %447, %440, %409 : vector<8x128xi1>, vector<8x128xf32>
    %449 = arith.truncf %448 : vector<8x128xf32> to vector<8x128xbf16>
    %cst_70 = arith.constant dense<0.000000e+00> : vector<8x384xf32>
    %450 = tpu.matmul %449, %10, %cst_70 {dimension_numbers = #tpu.dot_dimension_numbers<[1], [0], [0], [1], [0, 0, 1, 1], [], []>} : vector<8x128xbf16>, vector<128x384xbf16>, vector<8x384xf32> -> vector<8x384xf32>
    %451 = vector.broadcast %11 : vector<1x384xf32> to vector<8x384xf32>
    %452 = arith.addf %450, %451 : vector<8x384xf32>
    %453 = vector.extract_strided_slice %9 {offsets = [88, 0], sizes = [8, 384], strides = [1, 1]} : vector<128x384xf32> to vector<8x384xf32>
    %454 = vector.extract_strided_slice %453 {offsets = [0, 0], sizes = [8, 128], strides = [1, 1]} : vector<8x384xf32> to vector<8x128xf32>
    %455 = vector.extract_strided_slice %452 {offsets = [0, 0], sizes = [8, 128], strides = [1, 1]} : vector<8x384xf32> to vector<8x128xf32>
    %456 = arith.addf %454, %455 : vector<8x128xf32>
    %457 = arith.negf %456 : vector<8x128xf32>
    %458 = math.exp %457 : vector<8x128xf32>
    %cst_71 = arith.constant 1.000000e+00 : f32
    %459 = vector.broadcast %cst_71 : f32 to vector<8x128xf32>
    %460 = arith.addf %459, %458 : vector<8x128xf32>
    %461 = arith.divf %459, %460 : vector<8x128xf32>
    %462 = vector.extract_strided_slice %453 {offsets = [0, 128], sizes = [8, 128], strides = [1, 1]} : vector<8x384xf32> to vector<8x128xf32>
    %463 = vector.extract_strided_slice %452 {offsets = [0, 128], sizes = [8, 128], strides = [1, 1]} : vector<8x384xf32> to vector<8x128xf32>
    %464 = arith.addf %462, %463 : vector<8x128xf32>
    %465 = arith.negf %464 : vector<8x128xf32>
    %466 = math.exp %465 : vector<8x128xf32>
    %cst_72 = arith.constant 1.000000e+00 : f32
    %467 = vector.broadcast %cst_72 : f32 to vector<8x128xf32>
    %468 = arith.addf %467, %466 : vector<8x128xf32>
    %469 = arith.divf %467, %468 : vector<8x128xf32>
    %470 = vector.extract_strided_slice %453 {offsets = [0, 256], sizes = [8, 128], strides = [1, 1]} : vector<8x384xf32> to vector<8x128xf32>
    %471 = vector.extract_strided_slice %452 {offsets = [0, 256], sizes = [8, 128], strides = [1, 1]} : vector<8x384xf32> to vector<8x128xf32>
    %472 = arith.mulf %461, %471 : vector<8x128xf32>
    %473 = arith.addf %470, %472 : vector<8x128xf32>
    %474 = math.tanh %473 : vector<8x128xf32>
    %cst_73 = arith.constant 1.000000e+00 : f32
    %475 = vector.broadcast %cst_73 : f32 to vector<8x128xf32>
    %476 = arith.subf %475, %469 : vector<8x128xf32>
    %477 = arith.mulf %476, %474 : vector<8x128xf32>
    %478 = arith.mulf %469, %448 : vector<8x128xf32>
    %479 = arith.addf %477, %478 : vector<8x128xf32>
    %480 = vector.extract_strided_slice %18 {offsets = [0, 11], sizes = [8, 1], strides = [1, 1]} : vector<8x16xi1> to vector<8x1xi1>
    %cst_74 = arith.constant 0.000000e+00 : f32
    %481 = vector.shape_cast %480 : vector<8x1xi1> to vector<8x1xi1>
    %482 = vector.broadcast %481 : vector<8x1xi1> to vector<8x128xi1>
    %483 = vector.broadcast %cst_74 : f32 to vector<8x128xf32>
    %484 = arith.select %482, %479, %483 : vector<8x128xi1>, vector<8x128xf32>
    %485 = vector.shape_cast %480 : vector<8x1xi1> to vector<8x1xi1>
    %486 = vector.broadcast %485 : vector<8x1xi1> to vector<8x128xi1>
    %487 = arith.select %486, %479, %448 : vector<8x128xi1>, vector<8x128xf32>
    %488 = arith.truncf %487 : vector<8x128xf32> to vector<8x128xbf16>
    %cst_75 = arith.constant dense<0.000000e+00> : vector<8x384xf32>
    %489 = tpu.matmul %488, %10, %cst_75 {dimension_numbers = #tpu.dot_dimension_numbers<[1], [0], [0], [1], [0, 0, 1, 1], [], []>} : vector<8x128xbf16>, vector<128x384xbf16>, vector<8x384xf32> -> vector<8x384xf32>
    %490 = vector.broadcast %11 : vector<1x384xf32> to vector<8x384xf32>
    %491 = arith.addf %489, %490 : vector<8x384xf32>
    %492 = vector.extract_strided_slice %9 {offsets = [96, 0], sizes = [8, 384], strides = [1, 1]} : vector<128x384xf32> to vector<8x384xf32>
    %493 = vector.extract_strided_slice %492 {offsets = [0, 0], sizes = [8, 128], strides = [1, 1]} : vector<8x384xf32> to vector<8x128xf32>
    %494 = vector.extract_strided_slice %491 {offsets = [0, 0], sizes = [8, 128], strides = [1, 1]} : vector<8x384xf32> to vector<8x128xf32>
    %495 = arith.addf %493, %494 : vector<8x128xf32>
    %496 = arith.negf %495 : vector<8x128xf32>
    %497 = math.exp %496 : vector<8x128xf32>
    %cst_76 = arith.constant 1.000000e+00 : f32
    %498 = vector.broadcast %cst_76 : f32 to vector<8x128xf32>
    %499 = arith.addf %498, %497 : vector<8x128xf32>
    %500 = arith.divf %498, %499 : vector<8x128xf32>
    %501 = vector.extract_strided_slice %492 {offsets = [0, 128], sizes = [8, 128], strides = [1, 1]} : vector<8x384xf32> to vector<8x128xf32>
    %502 = vector.extract_strided_slice %491 {offsets = [0, 128], sizes = [8, 128], strides = [1, 1]} : vector<8x384xf32> to vector<8x128xf32>
    %503 = arith.addf %501, %502 : vector<8x128xf32>
    %504 = arith.negf %503 : vector<8x128xf32>
    %505 = math.exp %504 : vector<8x128xf32>
    %cst_77 = arith.constant 1.000000e+00 : f32
    %506 = vector.broadcast %cst_77 : f32 to vector<8x128xf32>
    %507 = arith.addf %506, %505 : vector<8x128xf32>
    %508 = arith.divf %506, %507 : vector<8x128xf32>
    %509 = vector.extract_strided_slice %492 {offsets = [0, 256], sizes = [8, 128], strides = [1, 1]} : vector<8x384xf32> to vector<8x128xf32>
    %510 = vector.extract_strided_slice %491 {offsets = [0, 256], sizes = [8, 128], strides = [1, 1]} : vector<8x384xf32> to vector<8x128xf32>
    %511 = arith.mulf %500, %510 : vector<8x128xf32>
    %512 = arith.addf %509, %511 : vector<8x128xf32>
    %513 = math.tanh %512 : vector<8x128xf32>
    %cst_78 = arith.constant 1.000000e+00 : f32
    %514 = vector.broadcast %cst_78 : f32 to vector<8x128xf32>
    %515 = arith.subf %514, %508 : vector<8x128xf32>
    %516 = arith.mulf %515, %513 : vector<8x128xf32>
    %517 = arith.mulf %508, %487 : vector<8x128xf32>
    %518 = arith.addf %516, %517 : vector<8x128xf32>
    %519 = vector.extract_strided_slice %18 {offsets = [0, 12], sizes = [8, 1], strides = [1, 1]} : vector<8x16xi1> to vector<8x1xi1>
    %cst_79 = arith.constant 0.000000e+00 : f32
    %520 = vector.shape_cast %519 : vector<8x1xi1> to vector<8x1xi1>
    %521 = vector.broadcast %520 : vector<8x1xi1> to vector<8x128xi1>
    %522 = vector.broadcast %cst_79 : f32 to vector<8x128xf32>
    %523 = arith.select %521, %518, %522 : vector<8x128xi1>, vector<8x128xf32>
    %524 = vector.shape_cast %519 : vector<8x1xi1> to vector<8x1xi1>
    %525 = vector.broadcast %524 : vector<8x1xi1> to vector<8x128xi1>
    %526 = arith.select %525, %518, %487 : vector<8x128xi1>, vector<8x128xf32>
    %527 = arith.truncf %526 : vector<8x128xf32> to vector<8x128xbf16>
    %cst_80 = arith.constant dense<0.000000e+00> : vector<8x384xf32>
    %528 = tpu.matmul %527, %10, %cst_80 {dimension_numbers = #tpu.dot_dimension_numbers<[1], [0], [0], [1], [0, 0, 1, 1], [], []>} : vector<8x128xbf16>, vector<128x384xbf16>, vector<8x384xf32> -> vector<8x384xf32>
    %529 = vector.broadcast %11 : vector<1x384xf32> to vector<8x384xf32>
    %530 = arith.addf %528, %529 : vector<8x384xf32>
    %531 = vector.extract_strided_slice %9 {offsets = [104, 0], sizes = [8, 384], strides = [1, 1]} : vector<128x384xf32> to vector<8x384xf32>
    %532 = vector.extract_strided_slice %531 {offsets = [0, 0], sizes = [8, 128], strides = [1, 1]} : vector<8x384xf32> to vector<8x128xf32>
    %533 = vector.extract_strided_slice %530 {offsets = [0, 0], sizes = [8, 128], strides = [1, 1]} : vector<8x384xf32> to vector<8x128xf32>
    %534 = arith.addf %532, %533 : vector<8x128xf32>
    %535 = arith.negf %534 : vector<8x128xf32>
    %536 = math.exp %535 : vector<8x128xf32>
    %cst_81 = arith.constant 1.000000e+00 : f32
    %537 = vector.broadcast %cst_81 : f32 to vector<8x128xf32>
    %538 = arith.addf %537, %536 : vector<8x128xf32>
    %539 = arith.divf %537, %538 : vector<8x128xf32>
    %540 = vector.extract_strided_slice %531 {offsets = [0, 128], sizes = [8, 128], strides = [1, 1]} : vector<8x384xf32> to vector<8x128xf32>
    %541 = vector.extract_strided_slice %530 {offsets = [0, 128], sizes = [8, 128], strides = [1, 1]} : vector<8x384xf32> to vector<8x128xf32>
    %542 = arith.addf %540, %541 : vector<8x128xf32>
    %543 = arith.negf %542 : vector<8x128xf32>
    %544 = math.exp %543 : vector<8x128xf32>
    %cst_82 = arith.constant 1.000000e+00 : f32
    %545 = vector.broadcast %cst_82 : f32 to vector<8x128xf32>
    %546 = arith.addf %545, %544 : vector<8x128xf32>
    %547 = arith.divf %545, %546 : vector<8x128xf32>
    %548 = vector.extract_strided_slice %531 {offsets = [0, 256], sizes = [8, 128], strides = [1, 1]} : vector<8x384xf32> to vector<8x128xf32>
    %549 = vector.extract_strided_slice %530 {offsets = [0, 256], sizes = [8, 128], strides = [1, 1]} : vector<8x384xf32> to vector<8x128xf32>
    %550 = arith.mulf %539, %549 : vector<8x128xf32>
    %551 = arith.addf %548, %550 : vector<8x128xf32>
    %552 = math.tanh %551 : vector<8x128xf32>
    %cst_83 = arith.constant 1.000000e+00 : f32
    %553 = vector.broadcast %cst_83 : f32 to vector<8x128xf32>
    %554 = arith.subf %553, %547 : vector<8x128xf32>
    %555 = arith.mulf %554, %552 : vector<8x128xf32>
    %556 = arith.mulf %547, %526 : vector<8x128xf32>
    %557 = arith.addf %555, %556 : vector<8x128xf32>
    %558 = vector.extract_strided_slice %18 {offsets = [0, 13], sizes = [8, 1], strides = [1, 1]} : vector<8x16xi1> to vector<8x1xi1>
    %cst_84 = arith.constant 0.000000e+00 : f32
    %559 = vector.shape_cast %558 : vector<8x1xi1> to vector<8x1xi1>
    %560 = vector.broadcast %559 : vector<8x1xi1> to vector<8x128xi1>
    %561 = vector.broadcast %cst_84 : f32 to vector<8x128xf32>
    %562 = arith.select %560, %557, %561 : vector<8x128xi1>, vector<8x128xf32>
    %563 = vector.shape_cast %558 : vector<8x1xi1> to vector<8x1xi1>
    %564 = vector.broadcast %563 : vector<8x1xi1> to vector<8x128xi1>
    %565 = arith.select %564, %557, %526 : vector<8x128xi1>, vector<8x128xf32>
    %566 = arith.truncf %565 : vector<8x128xf32> to vector<8x128xbf16>
    %cst_85 = arith.constant dense<0.000000e+00> : vector<8x384xf32>
    %567 = tpu.matmul %566, %10, %cst_85 {dimension_numbers = #tpu.dot_dimension_numbers<[1], [0], [0], [1], [0, 0, 1, 1], [], []>} : vector<8x128xbf16>, vector<128x384xbf16>, vector<8x384xf32> -> vector<8x384xf32>
    %568 = vector.broadcast %11 : vector<1x384xf32> to vector<8x384xf32>
    %569 = arith.addf %567, %568 : vector<8x384xf32>
    %570 = vector.extract_strided_slice %9 {offsets = [112, 0], sizes = [8, 384], strides = [1, 1]} : vector<128x384xf32> to vector<8x384xf32>
    %571 = vector.extract_strided_slice %570 {offsets = [0, 0], sizes = [8, 128], strides = [1, 1]} : vector<8x384xf32> to vector<8x128xf32>
    %572 = vector.extract_strided_slice %569 {offsets = [0, 0], sizes = [8, 128], strides = [1, 1]} : vector<8x384xf32> to vector<8x128xf32>
    %573 = arith.addf %571, %572 : vector<8x128xf32>
    %574 = arith.negf %573 : vector<8x128xf32>
    %575 = math.exp %574 : vector<8x128xf32>
    %cst_86 = arith.constant 1.000000e+00 : f32
    %576 = vector.broadcast %cst_86 : f32 to vector<8x128xf32>
    %577 = arith.addf %576, %575 : vector<8x128xf32>
    %578 = arith.divf %576, %577 : vector<8x128xf32>
    %579 = vector.extract_strided_slice %570 {offsets = [0, 128], sizes = [8, 128], strides = [1, 1]} : vector<8x384xf32> to vector<8x128xf32>
    %580 = vector.extract_strided_slice %569 {offsets = [0, 128], sizes = [8, 128], strides = [1, 1]} : vector<8x384xf32> to vector<8x128xf32>
    %581 = arith.addf %579, %580 : vector<8x128xf32>
    %582 = arith.negf %581 : vector<8x128xf32>
    %583 = math.exp %582 : vector<8x128xf32>
    %cst_87 = arith.constant 1.000000e+00 : f32
    %584 = vector.broadcast %cst_87 : f32 to vector<8x128xf32>
    %585 = arith.addf %584, %583 : vector<8x128xf32>
    %586 = arith.divf %584, %585 : vector<8x128xf32>
    %587 = vector.extract_strided_slice %570 {offsets = [0, 256], sizes = [8, 128], strides = [1, 1]} : vector<8x384xf32> to vector<8x128xf32>
    %588 = vector.extract_strided_slice %569 {offsets = [0, 256], sizes = [8, 128], strides = [1, 1]} : vector<8x384xf32> to vector<8x128xf32>
    %589 = arith.mulf %578, %588 : vector<8x128xf32>
    %590 = arith.addf %587, %589 : vector<8x128xf32>
    %591 = math.tanh %590 : vector<8x128xf32>
    %cst_88 = arith.constant 1.000000e+00 : f32
    %592 = vector.broadcast %cst_88 : f32 to vector<8x128xf32>
    %593 = arith.subf %592, %586 : vector<8x128xf32>
    %594 = arith.mulf %593, %591 : vector<8x128xf32>
    %595 = arith.mulf %586, %565 : vector<8x128xf32>
    %596 = arith.addf %594, %595 : vector<8x128xf32>
    %597 = vector.extract_strided_slice %18 {offsets = [0, 14], sizes = [8, 1], strides = [1, 1]} : vector<8x16xi1> to vector<8x1xi1>
    %cst_89 = arith.constant 0.000000e+00 : f32
    %598 = vector.shape_cast %597 : vector<8x1xi1> to vector<8x1xi1>
    %599 = vector.broadcast %598 : vector<8x1xi1> to vector<8x128xi1>
    %600 = vector.broadcast %cst_89 : f32 to vector<8x128xf32>
    %601 = arith.select %599, %596, %600 : vector<8x128xi1>, vector<8x128xf32>
    %602 = vector.shape_cast %597 : vector<8x1xi1> to vector<8x1xi1>
    %603 = vector.broadcast %602 : vector<8x1xi1> to vector<8x128xi1>
    %604 = arith.select %603, %596, %565 : vector<8x128xi1>, vector<8x128xf32>
    %605 = arith.truncf %604 : vector<8x128xf32> to vector<8x128xbf16>
    %cst_90 = arith.constant dense<0.000000e+00> : vector<8x384xf32>
    %606 = tpu.matmul %605, %10, %cst_90 {dimension_numbers = #tpu.dot_dimension_numbers<[1], [0], [0], [1], [0, 0, 1, 1], [], []>} : vector<8x128xbf16>, vector<128x384xbf16>, vector<8x384xf32> -> vector<8x384xf32>
    %607 = vector.broadcast %11 : vector<1x384xf32> to vector<8x384xf32>
    %608 = arith.addf %606, %607 : vector<8x384xf32>
    %609 = vector.extract_strided_slice %9 {offsets = [120, 0], sizes = [8, 384], strides = [1, 1]} : vector<128x384xf32> to vector<8x384xf32>
    %610 = vector.extract_strided_slice %609 {offsets = [0, 0], sizes = [8, 128], strides = [1, 1]} : vector<8x384xf32> to vector<8x128xf32>
    %611 = vector.extract_strided_slice %608 {offsets = [0, 0], sizes = [8, 128], strides = [1, 1]} : vector<8x384xf32> to vector<8x128xf32>
    %612 = arith.addf %610, %611 : vector<8x128xf32>
    %613 = arith.negf %612 : vector<8x128xf32>
    %614 = math.exp %613 : vector<8x128xf32>
    %cst_91 = arith.constant 1.000000e+00 : f32
    %615 = vector.broadcast %cst_91 : f32 to vector<8x128xf32>
    %616 = arith.addf %615, %614 : vector<8x128xf32>
    %617 = arith.divf %615, %616 : vector<8x128xf32>
    %618 = vector.extract_strided_slice %609 {offsets = [0, 128], sizes = [8, 128], strides = [1, 1]} : vector<8x384xf32> to vector<8x128xf32>
    %619 = vector.extract_strided_slice %608 {offsets = [0, 128], sizes = [8, 128], strides = [1, 1]} : vector<8x384xf32> to vector<8x128xf32>
    %620 = arith.addf %618, %619 : vector<8x128xf32>
    %621 = arith.negf %620 : vector<8x128xf32>
    %622 = math.exp %621 : vector<8x128xf32>
    %cst_92 = arith.constant 1.000000e+00 : f32
    %623 = vector.broadcast %cst_92 : f32 to vector<8x128xf32>
    %624 = arith.addf %623, %622 : vector<8x128xf32>
    %625 = arith.divf %623, %624 : vector<8x128xf32>
    %626 = vector.extract_strided_slice %609 {offsets = [0, 256], sizes = [8, 128], strides = [1, 1]} : vector<8x384xf32> to vector<8x128xf32>
    %627 = vector.extract_strided_slice %608 {offsets = [0, 256], sizes = [8, 128], strides = [1, 1]} : vector<8x384xf32> to vector<8x128xf32>
    %628 = arith.mulf %617, %627 : vector<8x128xf32>
    %629 = arith.addf %626, %628 : vector<8x128xf32>
    %630 = math.tanh %629 : vector<8x128xf32>
    %cst_93 = arith.constant 1.000000e+00 : f32
    %631 = vector.broadcast %cst_93 : f32 to vector<8x128xf32>
    %632 = arith.subf %631, %625 : vector<8x128xf32>
    %633 = arith.mulf %632, %630 : vector<8x128xf32>
    %634 = arith.mulf %625, %604 : vector<8x128xf32>
    %635 = arith.addf %633, %634 : vector<8x128xf32>
    %636 = vector.extract_strided_slice %18 {offsets = [0, 15], sizes = [8, 1], strides = [1, 1]} : vector<8x16xi1> to vector<8x1xi1>
    %cst_94 = arith.constant 0.000000e+00 : f32
    %637 = vector.shape_cast %636 : vector<8x1xi1> to vector<8x1xi1>
    %638 = vector.broadcast %637 : vector<8x1xi1> to vector<8x128xi1>
    %639 = vector.broadcast %cst_94 : f32 to vector<8x128xf32>
    %640 = arith.select %638, %635, %639 : vector<8x128xi1>, vector<8x128xf32>
    %641 = vector.shape_cast %636 : vector<8x1xi1> to vector<8x1xi1>
    %642 = vector.broadcast %641 : vector<8x1xi1> to vector<8x128xi1>
    %643 = arith.select %642, %635, %604 : vector<8x128xi1>, vector<8x128xf32>
    %644 = vector.shape_cast %55 : vector<8x128xf32> to vector<1x8x128xf32>
    %645 = vector.shape_cast %94 : vector<8x128xf32> to vector<1x8x128xf32>
    %646 = vector.shape_cast %133 : vector<8x128xf32> to vector<1x8x128xf32>
    %647 = vector.shape_cast %172 : vector<8x128xf32> to vector<1x8x128xf32>
    %648 = vector.shape_cast %211 : vector<8x128xf32> to vector<1x8x128xf32>
    %649 = vector.shape_cast %250 : vector<8x128xf32> to vector<1x8x128xf32>
    %650 = vector.shape_cast %289 : vector<8x128xf32> to vector<1x8x128xf32>
    %651 = vector.shape_cast %328 : vector<8x128xf32> to vector<1x8x128xf32>
    %652 = vector.shape_cast %367 : vector<8x128xf32> to vector<1x8x128xf32>
    %653 = vector.shape_cast %406 : vector<8x128xf32> to vector<1x8x128xf32>
    %654 = vector.shape_cast %445 : vector<8x128xf32> to vector<1x8x128xf32>
    %655 = vector.shape_cast %484 : vector<8x128xf32> to vector<1x8x128xf32>
    %656 = vector.shape_cast %523 : vector<8x128xf32> to vector<1x8x128xf32>
    %657 = vector.shape_cast %562 : vector<8x128xf32> to vector<1x8x128xf32>
    %658 = vector.shape_cast %601 : vector<8x128xf32> to vector<1x8x128xf32>
    %659 = vector.shape_cast %640 : vector<8x128xf32> to vector<1x8x128xf32>
    %660 = tpu.concatenate %644, %645, %646, %647, %648, %649, %650, %651, %652, %653, %654, %655, %656, %657, %658, %659 in 0 : vector<1x8x128xf32>, vector<1x8x128xf32>, vector<1x8x128xf32>, vector<1x8x128xf32>, vector<1x8x128xf32>, vector<1x8x128xf32>, vector<1x8x128xf32>, vector<1x8x128xf32>, vector<1x8x128xf32>, vector<1x8x128xf32>, vector<1x8x128xf32>, vector<1x8x128xf32>, vector<1x8x128xf32>, vector<1x8x128xf32>, vector<1x8x128xf32>, vector<1x8x128xf32> -> vector<16x8x128xf32>
    %661 = arith.truncf %660 : vector<16x8x128xf32> to vector<16x8x128xbf16>
    %c0_95 = arith.constant 0 : index
    %c0_96 = arith.constant 0 : index
    %c0_97 = arith.constant 0 : index
    %662 = vector.load %arg9[%c0_95, %c0_96, %c0_97] : memref<16x8x128xbf16, #tpu.memory_space<vmem>>, vector<16x8x128xbf16>
    tpu.vector_store %arg9[%c0_95, %c0_96, %c0_97], %661 {strides = array<i32>} : memref<16x8x128xbf16, #tpu.memory_space<vmem>>, vector<16x8x128xbf16>,
    %c0_98 = arith.constant 0 : index
    %c0_99 = arith.constant 0 : index
    %663 = vector.load %arg11[%c0_98, %c0_99] : memref<8x128xf32, #tpu.memory_space<vmem>>, vector<8x128xf32>
    tpu.vector_store %arg11[%c0_98, %c0_99], %643 {strides = array<i32>} : memref<8x128xf32, #tpu.memory_space<vmem>>, vector<8x128xf32>,
    %c0_i32_100 = arith.constant 0 : i32
    %664 = arith.cmpi eq, %arg1, %c0_i32_100 : i32
    %665 = arith.extui %664 : i1 to i32
    %c0_i32_101 = arith.constant 0 : i32
    %666 = arith.cmpi ne, %665, %c0_i32_101 : i32
    scf.if %666 {
      %c0_102 = arith.constant 0 : index
      %c0_103 = arith.constant 0 : index
      %667 = vector.load %arg10[%c0_102, %c0_103] : memref<8x128xf32, #tpu.memory_space<vmem>>, vector<8x128xf32>
      tpu.vector_store %arg10[%c0_102, %c0_103], %643 {strides = array<i32>} : memref<8x128xf32, #tpu.memory_space<vmem>>, vector<8x128xf32>,
    } else {
    }
    return
  }
  func.func @transform_0(%arg0: i32, %arg1: i32) -> (i32, i32) {
    %c0_i32 = arith.constant 0 : i32
    %c0_i32_0 = arith.constant 0 : i32
    return %arg0, %c0_i32 : i32, i32
  }
  func.func @transform_1(%arg0: i32, %arg1: i32) -> (i32, i32, i32) {
    %c0_i32 = arith.constant 0 : i32
    %c0_i32_0 = arith.constant 0 : i32
    return %arg1, %arg0, %c0_i32 : i32, i32, i32
  }
  func.func @transform_2(%arg0: i32, %arg1: i32) -> (i32, i32) {
    %c0_i32 = arith.constant 0 : i32
    %c0_i32_0 = arith.constant 0 : i32
    return %arg0, %c0_i32 : i32, i32
  }
  func.func @transform_3(%arg0: i32, %arg1: i32) -> (i32, i32) {
    %c0_i32 = arith.constant 0 : i32
    %c0_i32_0 = arith.constant 0 : i32
    %c0_i32_1 = arith.constant 0 : i32
    return %c0_i32, %c0_i32_0 : i32, i32
  }
  func.func @transform_4(%arg0: i32, %arg1: i32) -> (i32, i32) {
    %c0_i32 = arith.constant 0 : i32
    %c0_i32_0 = arith.constant 0 : i32
    %c0_i32_1 = arith.constant 0 : i32
    return %c0_i32, %c0_i32_0 : i32, i32
  }
  func.func @transform_5(%arg0: i32, %arg1: i32) -> (i32, i32) {
    %c0_i32 = arith.constant 0 : i32
    %c0_i32_0 = arith.constant 0 : i32
    %c0_i32_1 = arith.constant 0 : i32
    return %c0_i32, %c0_i32_0 : i32, i32
  }
  func.func @transform_6(%arg0: i32, %arg1: i32) -> (i32, i32) {
    %c0_i32 = arith.constant 0 : i32
    %c0_i32_0 = arith.constant 0 : i32
    %c0_i32_1 = arith.constant 0 : i32
    return %c0_i32, %c0_i32_0 : i32, i32
  }
  func.func @transform_7(%arg0: i32, %arg1: i32) -> (i32, i32, i32) {
    %c0_i32 = arith.constant 0 : i32
    %c0_i32_0 = arith.constant 0 : i32
    return %arg1, %arg0, %c0_i32 : i32, i32, i32
  }
  func.func @transform_8(%arg0: i32, %arg1: i32) -> (i32, i32) {
    %c0_i32 = arith.constant 0 : i32
    %c0_i32_0 = arith.constant 0 : i32
    return %arg0, %c0_i32 : i32, i32
  }
}

</mosaic_0001>

<llo_original>
// kernel: plain_decoder_forward.3
$region0: #{plain_decoder_forward.3}
  #allocation0 [shape = 'u32[]', space=smem, size = 0x4, offset = 0x4, fixed_abs, tag = 'smem constant byte address 0x4 - core index']
  #allocation1 [shape = 'u32[72,128]{1,0:T(1,128)}', space=vmem, size = 0x9000, scoped, tag = 'internal scratch']
  %s0 = inlined_call_operand.vmem [shape: bf16[128,128], index: 0, kind: input, shape index: {}]
  %s1 = inlined_call_operand.vmem [shape: bf16[128,128], index: 1, kind: input, shape index: {}]
  %s2 = inlined_call_operand.vmem [shape: f32[1,128], index: 2, kind: input, shape index: {}]
  %s3 = inlined_call_operand.vmem [shape: f32[128,128], index: 3, kind: output, shape index: {}]
  %s4 = sld [smem:[#allocation0]]
  $region22: #{plain_decoder_forward.3} parent=0
    _
  %s6 = ssub.s32 1, %s4
  %s7 = scalar_select 0, %s6, %s4
  // Predicated region
  $region2: #{plain_decoder_forward.3} parent=0 // pred_check
    _
  $region3: #{plain_decoder_forward.3} parent=0 // pred_check_branch
    %9 = sbr.rel (0) target = $region5
  $region4: #{plain_decoder_forward.3} parent=0 // pred_region
    _
  $region5: #{plain_decoder_forward.3} parent=0 // pred_fallthru
    _
  // Predicated region
  $region6: #{plain_decoder_forward.3} parent=0 // pred_check
    _
  $region7: #{plain_decoder_forward.3} parent=0 // pred_check_branch
    %11 = sbr.rel (0) target = $region9
  $region8: #{plain_decoder_forward.3} parent=0 // pred_region
    _
  $region9: #{plain_decoder_forward.3} parent=0 // pred_fallthru
    _
  // Predicated region
  $region10: #{plain_decoder_forward.3} parent=0 // pred_check
    _
  $region11: #{plain_decoder_forward.3} parent=0 // pred_check_branch
    %13 = sbr.rel (0) target = $region13
  $region12: #{plain_decoder_forward.3} parent=0 // pred_region
    _
  $region13: #{plain_decoder_forward.3} parent=0 // pred_fallthru
    _
  %v14 = vld [vmem:[%s0] sm:$0xf]
  %v15 = vld [vmem:[%s0 + $0x4] sm:$0xf]
  %v16 = vld [vmem:[%s0 + $0x8] sm:$0xf]
  %v17 = vld [vmem:[%s0 + $0xc] sm:$0xf]
  %v18 = vld [vmem:[%s0 + $0x10] sm:$0xf]
  %v19 = vld [vmem:[%s0 + $0x14] sm:$0xf]
  %v20 = vld [vmem:[%s0 + $0x18] sm:$0xf]
  %v21 = vld [vmem:[%s0 + $0x1c] sm:$0xf]
  %v22 = vld [vmem:[%s0 + $0x20] sm:$0xf]
  %v23 = vld [vmem:[%s0 + $0x24] sm:$0xf]
  %v24 = vld [vmem:[%s0 + $0x28] sm:$0xf]
  %v25 = vld [vmem:[%s0 + $0x2c] sm:$0xf]
  %v26 = vld [vmem:[%s0 + $0x30] sm:$0xf]
  %v27 = vld [vmem:[%s0 + $0x34] sm:$0xf]
  %v28 = vld [vmem:[%s0 + $0x38] sm:$0xf]
  %v29 = vld [vmem:[%s0 + $0x3c] sm:$0xf]
  %v30 = vld [vmem:[%s1] sm:$0xf]
  %v31 = vld [vmem:[%s1 + $0x4] sm:$0xf]
  %v32 = vld [vmem:[%s1 + $0x8] sm:$0xf]
  %v33 = vld [vmem:[%s1 + $0xc] sm:$0xf]
  %v34 = vld [vmem:[%s1 + $0x10] sm:$0xf]
  %v35 = vld [vmem:[%s1 + $0x14] sm:$0xf]
  %v36 = vld [vmem:[%s1 + $0x18] sm:$0xf]
  %v37 = vld [vmem:[%s1 + $0x1c] sm:$0xf]
  %v38 = vld [vmem:[%s1 + $0x20] sm:$0xf]
  %v39 = vld [vmem:[%s1 + $0x24] sm:$0xf]
  %v40 = vld [vmem:[%s1 + $0x28] sm:$0xf]
  %v41 = vld [vmem:[%s1 + $0x2c] sm:$0xf]
  %v42 = vld [vmem:[%s1 + $0x30] sm:$0xf]
  %v43 = vld [vmem:[%s1 + $0x34] sm:$0xf]
  %v44 = vld [vmem:[%s1 + $0x38] sm:$0xf]
  %v45 = vld [vmem:[%s1 + $0x3c] sm:$0xf]
  %v46 = vld [vmem:[%s2] sm:$0x1]
  %v48 = vperm.slane %v46, 0
  %v66 = vunpack.c.l.b16 %v14
  %v67 = vunpack.c.l.b16 %v15
  %v68 = vunpack.c.l.b16 %v16
  %v69 = vunpack.c.l.b16 %v17
  %v70 = vunpack.c.l.b16 %v18
  %v71 = vunpack.c.l.b16 %v19
  %v72 = vunpack.c.l.b16 %v20
  %v73 = vunpack.c.l.b16 %v21
  %v74 = vunpack.c.l.b16 %v22
  %v75 = vunpack.c.l.b16 %v23
  %v76 = vunpack.c.l.b16 %v24
  %v77 = vunpack.c.l.b16 %v25
  %v78 = vunpack.c.l.b16 %v26
  %v79 = vunpack.c.l.b16 %v27
  %v80 = vunpack.c.l.b16 %v28
  %v81 = vunpack.c.l.b16 %v29
  %v82 = vpack.c.b16 %v67, %v66
  %v83 = vpack.c.b16 %v69, %v68
  %v84 = vpack.c.b16 %v71, %v70
  %v85 = vpack.c.b16 %v73, %v72
  %v86 = vpack.c.b16 %v75, %v74
  %v87 = vpack.c.b16 %v77, %v76
  %v88 = vpack.c.b16 %v79, %v78
  %v89 = vpack.c.b16 %v81, %v80
  %v114 = vunpack.c.l.b16 %v30
  %v115 = vunpack.c.l.b16 %v31
  %v116 = vunpack.c.l.b16 %v32
  %v117 = vunpack.c.l.b16 %v33
  %v118 = vunpack.c.l.b16 %v34
  %v119 = vunpack.c.l.b16 %v35
  %v120 = vunpack.c.l.b16 %v36
  %v121 = vunpack.c.l.b16 %v37
  %v122 = vunpack.c.l.b16 %v38
  %v123 = vunpack.c.l.b16 %v39
  %v124 = vunpack.c.l.b16 %v40
  %v125 = vunpack.c.l.b16 %v41
  %v126 = vunpack.c.l.b16 %v42
  %v127 = vunpack.c.l.b16 %v43
  %v128 = vunpack.c.l.b16 %v44
  %v129 = vunpack.c.l.b16 %v45
  %v130 = vpack.c.b16 %v115, %v114
  %v131 = vpack.c.b16 %v117, %v116
  %v132 = vpack.c.b16 %v119, %v118
  %v133 = vpack.c.b16 %v121, %v120
  %v134 = vpack.c.b16 %v123, %v122
  %v135 = vpack.c.b16 %v125, %v124
  %v136 = vpack.c.b16 %v127, %v126
  %v137 = vpack.c.b16 %v129, %v128
  %146 = vmatpush.bf16.msra.mxu0 %v137
  %147 = vmatpush.bf16.msra.mxu0 %v136
  %148 = vmatpush.bf16.msra.mxu0 %v135
  %149 = vmatpush.bf16.msra.mxu0 %v134
  %150 = vmatpush.bf16.msra.mxu0 %v133
  %151 = vmatpush.bf16.msra.mxu0 %v132
  %152 = vmatpush.bf16.msra.mxu0 %v131
  %153 = vmatpush.bf16.msra.mxu0 %v130
  %154 = vmatmul.bf16.gmra.mxu0 %v82
  %v155 = vpop.f32.mrf.mxu0
  %v156 = vadd.f32 %v48, %v155
  %v157 = vpop.f32.mrf.mxu0
  %v158 = vadd.f32 %v48, %v157
  %159 = vmatmul.bf16.gmra.mxu0 %v83
  %v160 = vpop.f32.mrf.mxu0
  %v161 = vadd.f32 %v48, %v160
  %v162 = vpop.f32.mrf.mxu0
  %v163 = vadd.f32 %v48, %v162
  %164 = vmatmul.bf16.gmra.mxu0 %v84
  %v165 = vpop.f32.mrf.mxu0
  %v166 = vadd.f32 %v48, %v165
  %v167 = vpop.f32.mrf.mxu0
  %v168 = vadd.f32 %v48, %v167
  %169 = vmatmul.bf16.gmra.mxu0 %v85
  %v170 = vpop.f32.mrf.mxu0
  %v171 = vadd.f32 %v48, %v170
  %v172 = vpop.f32.mrf.mxu0
  %v173 = vadd.f32 %v48, %v172
  %174 = vmatmul.bf16.gmra.mxu0 %v86
  %v175 = vpop.f32.mrf.mxu0
  %v176 = vadd.f32 %v48, %v175
  %v177 = vpop.f32.mrf.mxu0
  %v178 = vadd.f32 %v48, %v177
  %179 = vmatmul.bf16.gmra.mxu0 %v87
  %v180 = vpop.f32.mrf.mxu0
  %v181 = vadd.f32 %v48, %v180
  %v182 = vpop.f32.mrf.mxu0
  %v183 = vadd.f32 %v48, %v182
  %184 = vmatmul.bf16.gmra.mxu0 %v88
  %v185 = vpop.f32.mrf.mxu0
  %v186 = vadd.f32 %v48, %v185
  %v187 = vpop.f32.mrf.mxu0
  %v188 = vadd.f32 %v48, %v187
  %189 = vmatmul.bf16.gmra.mxu0 %v89
  %v190 = vpop.f32.mrf.mxu0
  %v191 = vadd.f32 %v48, %v190
  %v192 = vpop.f32.mrf.mxu0
  %v193 = vadd.f32 %v48, %v192
  %194 = vdwg.mxu0
  %195 = vmax.xlane.f32.xlu0 %v156
  %v196 = vpop.xlane.xlu0 %195
  %197 = vmax.xlane.f32.xlu0 %v158
  %v198 = vpop.xlane.xlu0 %197
  %199 = vmax.xlane.f32.xlu0 %v161
  %v200 = vpop.xlane.xlu0 %199
  %201 = vmax.xlane.f32.xlu0 %v163
  %v202 = vpop.xlane.xlu0 %201
  %203 = vmax.xlane.f32.xlu0 %v166
  %v204 = vpop.xlane.xlu0 %203
  %205 = vmax.xlane.f32.xlu0 %v168
  %v206 = vpop.xlane.xlu0 %205
  %207 = vmax.xlane.f32.xlu0 %v171
  %v208 = vpop.xlane.xlu0 %207
  %209 = vmax.xlane.f32.xlu0 %v173
  %v210 = vpop.xlane.xlu0 %209
  %211 = vmax.xlane.f32.xlu0 %v176
  %v212 = vpop.xlane.xlu0 %211
  %213 = vmax.xlane.f32.xlu0 %v178
  %v214 = vpop.xlane.xlu0 %213
  %215 = vmax.xlane.f32.xlu0 %v181
  %v216 = vpop.xlane.xlu0 %215
  %217 = vmax.xlane.f32.xlu0 %v183
  %v218 = vpop.xlane.xlu0 %217
  %219 = vmax.xlane.f32.xlu0 %v186
  %v220 = vpop.xlane.xlu0 %219
  %221 = vmax.xlane.f32.xlu0 %v188
  %v222 = vpop.xlane.xlu0 %221
  %223 = vmax.xlane.f32.xlu0 %v191
  %v224 = vpop.xlane.xlu0 %223
  %225 = vmax.xlane.f32.xlu0 %v193
  %v226 = vpop.xlane.xlu0 %225
  %v227 = vsub.f32 %v156, %v196
  %v228 = vsub.f32 %v158, %v198
  %v229 = vsub.f32 %v161, %v200
  %v230 = vsub.f32 %v163, %v202
  %v231 = vsub.f32 %v166, %v204
  %v232 = vsub.f32 %v168, %v206
  %v233 = vsub.f32 %v171, %v208
  %v234 = vsub.f32 %v173, %v210
  %v235 = vsub.f32 %v176, %v212
  %v236 = vsub.f32 %v178, %v214
  %v237 = vsub.f32 %v181, %v216
  %v238 = vsub.f32 %v183, %v218
  %v239 = vsub.f32 %v186, %v220
  %v240 = vsub.f32 %v188, %v222
  %v241 = vsub.f32 %v191, %v224
  %v242 = vsub.f32 %v193, %v226
  %v243 = vmul.f32 %v227, 1.442695
  %v244 = vpow.pop %v243
  %v245 = vmul.f32 %v228, 1.442695
  %v246 = vpow.pop %v245
  %v247 = vmul.f32 %v229, 1.442695
  %v248 = vpow.pop %v247
  %v249 = vmul.f32 %v230, 1.442695
  %v250 = vpow.pop %v249
  %v251 = vmul.f32 %v231, 1.442695
  %v252 = vpow.pop %v251
  %v253 = vmul.f32 %v232, 1.442695
  %v254 = vpow.pop %v253
  %v255 = vmul.f32 %v233, 1.442695
  %v256 = vpow.pop %v255
  %v257 = vmul.f32 %v234, 1.442695
  %v258 = vpow.pop %v257
  %v259 = vmul.f32 %v235, 1.442695
  %v260 = vpow.pop %v259
  %v261 = vmul.f32 %v236, 1.442695
  %v262 = vpow.pop %v261
  %v263 = vmul.f32 %v237, 1.442695
  %v264 = vpow.pop %v263
  %v265 = vmul.f32 %v238, 1.442695
  %v266 = vpow.pop %v265
  %v267 = vmul.f32 %v239, 1.442695
  %v268 = vpow.pop %v267
  %v269 = vmul.f32 %v240, 1.442695
  %v270 = vpow.pop %v269
  %v271 = vmul.f32 %v241, 1.442695
  %v272 = vpow.pop %v271
  %v273 = vmul.f32 %v242, 1.442695
  %v274 = vpow.pop %v273
  %275 = vadd.xlane.f32.xlu0 %v244
  %v276 = vpop.xlane.xlu0 %275
  %277 = vadd.xlane.f32.xlu0 %v246
  %v278 = vpop.xlane.xlu0 %277
  %279 = vadd.xlane.f32.xlu0 %v248
  %v280 = vpop.xlane.xlu0 %279
  %281 = vadd.xlane.f32.xlu0 %v250
  %v282 = vpop.xlane.xlu0 %281
  %283 = vadd.xlane.f32.xlu0 %v252
  %v284 = vpop.xlane.xlu0 %283
  %285 = vadd.xlane.f32.xlu0 %v254
  %v286 = vpop.xlane.xlu0 %285
  %287 = vadd.xlane.f32.xlu0 %v256
  %v288 = vpop.xlane.xlu0 %287
  %289 = vadd.xlane.f32.xlu0 %v258
  %v290 = vpop.xlane.xlu0 %289
  %291 = vadd.xlane.f32.xlu0 %v260
  %v292 = vpop.xlane.xlu0 %291
  %293 = vadd.xlane.f32.xlu0 %v262
  %v294 = vpop.xlane.xlu0 %293
  %295 = vadd.xlane.f32.xlu0 %v264
  %v296 = vpop.xlane.xlu0 %295
  %297 = vadd.xlane.f32.xlu0 %v266
  %v298 = vpop.xlane.xlu0 %297
  %299 = vadd.xlane.f32.xlu0 %v268
  %v300 = vpop.xlane.xlu0 %299
  %301 = vadd.xlane.f32.xlu0 %v270
  %v302 = vpop.xlane.xlu0 %301
  %303 = vadd.xlane.f32.xlu0 %v272
  %v304 = vpop.xlane.xlu0 %303
  %305 = vadd.xlane.f32.xlu0 %v274
  %v306 = vpop.xlane.xlu0 %305
  %v307 = vlog2.pop %v276
  %v308 = vmul.f32 %v307, 0.6931472
  %v309 = vlog2.pop %v278
  %v310 = vmul.f32 %v309, 0.6931472
  %v311 = vlog2.pop %v280
  %v312 = vmul.f32 %v311, 0.6931472
  %v313 = vlog2.pop %v282
  %v314 = vmul.f32 %v313, 0.6931472
  %v315 = vlog2.pop %v284
  %v316 = vmul.f32 %v315, 0.6931472
  %v317 = vlog2.pop %v286
  %v318 = vmul.f32 %v317, 0.6931472
  %v319 = vlog2.pop %v288
  %v320 = vmul.f32 %v319, 0.6931472
  %v321 = vlog2.pop %v290
  %v322 = vmul.f32 %v321, 0.6931472
  %v323 = vlog2.pop %v292
  %v324 = vmul.f32 %v323, 0.6931472
  %v325 = vlog2.pop %v294
  %v326 = vmul.f32 %v325, 0.6931472
  %v327 = vlog2.pop %v296
  %v328 = vmul.f32 %v327, 0.6931472
  %v329 = vlog2.pop %v298
  %v330 = vmul.f32 %v329, 0.6931472
  %v331 = vlog2.pop %v300
  %v332 = vmul.f32 %v331, 0.6931472
  %v333 = vlog2.pop %v302
  %v334 = vmul.f32 %v333, 0.6931472
  %v335 = vlog2.pop %v304
  %v336 = vmul.f32 %v335, 0.6931472
  %v337 = vlog2.pop %v306
  %v338 = vmul.f32 %v337, 0.6931472
  %v339 = vadd.f32 %v196, %v308
  %v340 = vadd.f32 %v198, %v310
  %v341 = vadd.f32 %v200, %v312
  %v342 = vadd.f32 %v202, %v314
  %v343 = vadd.f32 %v204, %v316
  %v344 = vadd.f32 %v206, %v318
  %v345 = vadd.f32 %v208, %v320
  %v346 = vadd.f32 %v210, %v322
  %v347 = vadd.f32 %v212, %v324
  %v348 = vadd.f32 %v214, %v326
  %v349 = vadd.f32 %v216, %v328
  %v350 = vadd.f32 %v218, %v330
  %v351 = vadd.f32 %v220, %v332
  %v352 = vadd.f32 %v222, %v334
  %v353 = vadd.f32 %v224, %v336
  %v354 = vadd.f32 %v226, %v338
  %v355 = vsub.f32 %v156, %v339
  %v356 = vsub.f32 %v158, %v340
  %v357 = vsub.f32 %v161, %v341
  %v358 = vsub.f32 %v163, %v342
  %v359 = vsub.f32 %v166, %v343
  %v360 = vsub.f32 %v168, %v344
  %v361 = vsub.f32 %v171, %v345
  %v362 = vsub.f32 %v173, %v346
  %v363 = vsub.f32 %v176, %v347
  %v364 = vsub.f32 %v178, %v348
  %v365 = vsub.f32 %v181, %v349
  %v366 = vsub.f32 %v183, %v350
  %v367 = vsub.f32 %v186, %v351
  %v368 = vsub.f32 %v188, %v352
  %v369 = vsub.f32 %v191, %v353
  %v370 = vsub.f32 %v193, %v354
  %371 = vst [vmem:[%s3] sm:$0xff] %v355
  %372 = vst [vmem:[%s3 + $0x8] sm:$0xff] %v356
  %373 = vst [vmem:[%s3 + $0x10] sm:$0xff] %v357
  %374 = vst [vmem:[%s3 + $0x18] sm:$0xff] %v358
  %375 = vst [vmem:[%s3 + $0x20] sm:$0xff] %v359
  %376 = vst [vmem:[%s3 + $0x28] sm:$0xff] %v360
  %377 = vst [vmem:[%s3 + $0x30] sm:$0xff] %v361
  %378 = vst [vmem:[%s3 + $0x38] sm:$0xff] %v362
  %379 = vst [vmem:[%s3 + $0x40] sm:$0xff] %v363
  %380 = vst [vmem:[%s3 + $0x48] sm:$0xff] %v364
  %381 = vst [vmem:[%s3 + $0x50] sm:$0xff] %v365
  %382 = vst [vmem:[%s3 + $0x58] sm:$0xff] %v366
  %383 = vst [vmem:[%s3 + $0x60] sm:$0xff] %v367
  %384 = vst [vmem:[%s3 + $0x68] sm:$0xff] %v368
  %385 = vst [vmem:[%s3 + $0x70] sm:$0xff] %v369
  %386 = vst [vmem:[%s3 + $0x78] sm:$0xff] %v370
  // Predicated region
  $region14: #{plain_decoder_forward.3} parent=0 // pred_check
    _
  $region15: #{plain_decoder_forward.3} parent=0 // pred_check_branch
    %388 = sbr.rel (0) target = $region17
  $region16: #{plain_decoder_forward.3} parent=0 // pred_region
    _
  $region17: #{plain_decoder_forward.3} parent=0 // pred_fallthru
    _
  // Predicated region
  $region18: #{plain_decoder_forward.3} parent=0 // pred_check
    _
  $region19: #{plain_decoder_forward.3} parent=0 // pred_check_branch
    %390 = sbr.rel (0) target = $region21
  $region20: #{plain_decoder_forward.3} parent=0 // pred_region
    _
  $region21: #{plain_decoder_forward.3} parent=0 // pred_fallthru
    _

// kernel: plain_decoder_forward.2
$region0: #{plain_decoder_forward.2}
  #allocation0 [shape = 'u32[]', space=smem, size = 0x4, offset = 0x4, fixed_abs, tag = 'smem constant byte address 0x4 - core index']
  #allocation1 [shape = 'u32[72,128]{1,0:T(1,128)}', space=vmem, size = 0x9000, scoped, tag = 'internal scratch']
  #allocation2 [shape = 'f32[8,128]{1,0:T(8,128)}', space=vmem, size = 0x1000, scoped, tag = 'scratch operand']
  %s0 = inlined_call_operand.vmem [shape: s32[8,1], index: 0, kind: input, shape index: {}]
  %s1 = inlined_call_operand.vmem [shape: bf16[16,8,128], index: 1, kind: input, shape index: {}]
  %s2 = inlined_call_operand.vmem [shape: f32[8,128], index: 2, kind: input, shape index: {}]
  %s3 = inlined_call_operand.vmem [shape: bf16[128,384], index: 3, kind: input, shape index: {}]
  %s4 = inlined_call_operand.vmem [shape: bf16[128,384], index: 4, kind: input, shape index: {}]
  %s5 = inlined_call_operand.vmem [shape: f32[1,384], index: 5, kind: input, shape index: {}]
  %s6 = inlined_call_operand.vmem [shape: f32[1,384], index: 6, kind: input, shape index: {}]
  %s7 = inlined_call_operand.vmem [shape: bf16[16,8,128], index: 7, kind: output, shape index: {0}]
  %s8 = inlined_call_operand.vmem [shape: f32[8,128], index: 8, kind: output, shape index: {1}]
  %9 = xla_tuple %s7, %s8
  %s10 = sld [smem:[#allocation0]]
  $region54: #{plain_decoder_forward.2} parent=0
    _
  %s12 = ssub.s32 1, %s10
  %s13 = scalar_select 0, %s12, %s10
  // Predicated region
  $region2: #{plain_decoder_forward.2} parent=0 // pred_check
    _
  $region3: #{plain_decoder_forward.2} parent=0 // pred_check_branch
    %15 = sbr.rel (0) target = $region5
  $region4: #{plain_decoder_forward.2} parent=0 // pred_region
    _
  $region5: #{plain_decoder_forward.2} parent=0 // pred_fallthru
    _
  // Predicated region
  $region6: #{plain_decoder_forward.2} parent=0 // pred_check
    _
  $region7: #{plain_decoder_forward.2} parent=0 // pred_check_branch
    %17 = sbr.rel (0) target = $region9
  $region8: #{plain_decoder_forward.2} parent=0 // pred_region
    _
  $region9: #{plain_decoder_forward.2} parent=0 // pred_fallthru
    _
  // Predicated region
  $region10: #{plain_decoder_forward.2} parent=0 // pred_check
    _
  $region11: #{plain_decoder_forward.2} parent=0 // pred_check_branch
    %19 = sbr.rel (0) target = $region13
  $region12: #{plain_decoder_forward.2} parent=0 // pred_region
    _
  $region13: #{plain_decoder_forward.2} parent=0 // pred_fallthru
    _
  // Predicated region
  $region14: #{plain_decoder_forward.2} parent=0 // pred_check
    _
  $region15: #{plain_decoder_forward.2} parent=0 // pred_check_branch
    %21 = sbr.rel (0) target = $region17
  $region16: #{plain_decoder_forward.2} parent=0 // pred_region
    _
  $region17: #{plain_decoder_forward.2} parent=0 // pred_fallthru
    _
  // Predicated region
  $region18: #{plain_decoder_forward.2} parent=0 // pred_check
    _
  $region19: #{plain_decoder_forward.2} parent=0 // pred_check_branch
    %23 = sbr.rel (0) target = $region21
  $region20: #{plain_decoder_forward.2} parent=0 // pred_region
    _
  $region21: #{plain_decoder_forward.2} parent=0 // pred_fallthru
    _
  // Predicated region
  $region22: #{plain_decoder_forward.2} parent=0 // pred_check
    _
  $region23: #{plain_decoder_forward.2} parent=0 // pred_check_branch
    %25 = sbr.rel (0) target = $region25
  $region24: #{plain_decoder_forward.2} parent=0 // pred_region
    _
  $region25: #{plain_decoder_forward.2} parent=0 // pred_fallthru
    _
  // Predicated region
  $region26: #{plain_decoder_forward.2} parent=0 // pred_check
    _
  $region27: #{plain_decoder_forward.2} parent=0 // pred_check_branch
    %27 = sbr.rel (0) target = $region29
  $region28: #{plain_decoder_forward.2} parent=0 // pred_region
    _
  $region29: #{plain_decoder_forward.2} parent=0 // pred_fallthru
    _
  %p28 = scmp.eq.s32.totalorder 0, 0
  // Predicated region
  $region30: #{plain_decoder_forward.2} parent=0 // pred_check
    %p29 = pneg %p28
  $region31: #{plain_decoder_forward.2} parent=0 // pred_check_branch
    %31 = sbr.rel (%p29) target = $region33
  $region32: #{plain_decoder_forward.2} parent=0 // pred_region
    %v32 = vld [vmem:[%s2] sm:$0xff]
    %33 = vst [vmem:[#allocation2] sm:$0xff] %v32
  $region33: #{plain_decoder_forward.2} parent=0 // pred_fallthru
    _
  %v34 = vld [vmem:[%s1] sm:$0xf]
  %v35 = vld [vmem:[%s1 + $0x4] sm:$0xf]
  %v36 = vld [vmem:[%s1 + $0x8] sm:$0xf]
  %v37 = vld [vmem:[%s1 + $0xc] sm:$0xf]
  %v38 = vld [vmem:[%s1 + $0x10] sm:$0xf]
  %v39 = vld [vmem:[%s1 + $0x14] sm:$0xf]
  %v40 = vld [vmem:[%s1 + $0x18] sm:$0xf]
  %v41 = vld [vmem:[%s1 + $0x1c] sm:$0xf]
  %v42 = vld [vmem:[%s1 + $0x20] sm:$0xf]
  %v43 = vld [vmem:[%s1 + $0x24] sm:$0xf]
  %v44 = vld [vmem:[%s1 + $0x28] sm:$0xf]
  %v45 = vld [vmem:[%s1 + $0x2c] sm:$0xf]
  %v46 = vld [vmem:[%s1 + $0x30] sm:$0xf]
  %v47 = vld [vmem:[%s1 + $0x34] sm:$0xf]
  %v48 = vld [vmem:[%s1 + $0x38] sm:$0xf]
  %v49 = vld [vmem:[%s1 + $0x3c] sm:$0xf]
  %v50 = vld [vmem:[%s3] sm:$0xff]
  %v51 = vld [vmem:[%s3 + $0x8] sm:$0xf]
  %v52 = vld [vmem:[%s3 + $0xc] sm:$0xff]
  %v53 = vld [vmem:[%s3 + $0x14] sm:$0xf]
  %v54 = vld [vmem:[%s3 + $0x18] sm:$0xff]
  %v55 = vld [vmem:[%s3 + $0x20] sm:$0xf]
  %v56 = vld [vmem:[%s3 + $0x24] sm:$0xff]
  %v57 = vld [vmem:[%s3 + $0x2c] sm:$0xf]
  %v58 = vld [vmem:[%s3 + $0x30] sm:$0xff]
  %v59 = vld [vmem:[%s3 + $0x38] sm:$0xf]
  %v60 = vld [vmem:[%s3 + $0x3c] sm:$0xff]
  %v61 = vld [vmem:[%s3 + $0x44] sm:$0xf]
  %v62 = vld [vmem:[%s3 + $0x48] sm:$0xff]
  %v63 = vld [vmem:[%s3 + $0x50] sm:$0xf]
  %v64 = vld [vmem:[%s3 + $0x54] sm:$0xff]
  %v65 = vld [vmem:[%s3 + $0x5c] sm:$0xf]
  %v66 = vld [vmem:[%s3 + $0x60] sm:$0xff]
  %v67 = vld [vmem:[%s3 + $0x68] sm:$0xf]
  %v68 = vld [vmem:[%s3 + $0x6c] sm:$0xff]
  %v69 = vld [vmem:[%s3 + $0x74] sm:$0xf]
  %v70 = vld [vmem:[%s3 + $0x78] sm:$0xff]
  %v71 = vld [vmem:[%s3 + $0x80] sm:$0xf]
  %v72 = vld [vmem:[%s3 + $0x84] sm:$0xff]
  %v73 = vld [vmem:[%s3 + $0x8c] sm:$0xf]
  %v74 = vld [vmem:[%s3 + $0x90] sm:$0xff]
  %v75 = vld [vmem:[%s3 + $0x98] sm:$0xf]
  %v76 = vld [vmem:[%s3 + $0x9c] sm:$0xff]
  %v77 = vld [vmem:[%s3 + $0xa4] sm:$0xf]
  %v78 = vld [vmem:[%s3 + $0xa8] sm:$0xff]
  %v79 = vld [vmem:[%s3 + $0xb0] sm:$0xf]
  %v80 = vld [vmem:[%s3 + $0xb4] sm:$0xff]
  %v81 = vld [vmem:[%s3 + $0xbc] sm:$0xf]
  %v82 = vld [vmem:[%s5] sm:$0x7]
  %v84 = vperm.slane %v82, 0
  %v85 = vperm.slane %v82, 1
  %v86 = vperm.slane %v82, 2
  %v106 = vunpack.c.l.b16 %v34
  %v107 = vunpack.c.l.b16 %v35
  %v108 = vunpack.c.l.b16 %v36
  %v109 = vunpack.c.l.b16 %v37
  %v110 = vunpack.c.l.b16 %v38
  %v111 = vunpack.c.l.b16 %v39
  %v112 = vunpack.c.l.b16 %v40
  %v113 = vunpack.c.l.b16 %v41
  %v114 = vunpack.c.l.b16 %v42
  %v115 = vunpack.c.l.b16 %v43
  %v116 = vunpack.c.l.b16 %v44
  %v117 = vunpack.c.l.b16 %v45
  %v118 = vunpack.c.l.b16 %v46
  %v119 = vunpack.c.l.b16 %v47
  %v120 = vunpack.c.l.b16 %v48
  %v121 = vunpack.c.l.b16 %v49
  %v122 = vpack.c.b16 %v107, %v106
  %v123 = vpack.c.b16 %v109, %v108
  %v124 = vpack.c.b16 %v111, %v110
  %v125 = vpack.c.b16 %v113, %v112
  %v126 = vpack.c.b16 %v115, %v114
  %v127 = vpack.c.b16 %v117, %v116
  %v128 = vpack.c.b16 %v119, %v118
  %v129 = vpack.c.b16 %v121, %v120
  %v170 = vunpack.c.l.b16 %v50
  %v171 = vunpack.c.h.b16 %v50
  %v172 = vunpack.c.l.b16 %v51
  %v173 = vunpack.c.l.b16 %v52
  %v174 = vunpack.c.h.b16 %v52
  %v175 = vunpack.c.l.b16 %v53
  %v176 = vunpack.c.l.b16 %v54
  %v177 = vunpack.c.h.b16 %v54
  %v178 = vunpack.c.l.b16 %v55
  %v179 = vunpack.c.l.b16 %v56
  %v180 = vunpack.c.h.b16 %v56
  %v181 = vunpack.c.l.b16 %v57
  %v182 = vunpack.c.l.b16 %v58
  %v183 = vunpack.c.h.b16 %v58
  %v184 = vunpack.c.l.b16 %v59
  %v185 = vunpack.c.l.b16 %v60
  %v186 = vunpack.c.h.b16 %v60
  %v187 = vunpack.c.l.b16 %v61
  %v188 = vunpack.c.l.b16 %v62
  %v189 = vunpack.c.h.b16 %v62
  %v190 = vunpack.c.l.b16 %v63
  %v191 = vunpack.c.l.b16 %v64
  %v192 = vunpack.c.h.b16 %v64
  %v193 = vunpack.c.l.b16 %v65
  %v194 = vunpack.c.l.b16 %v66
  %v195 = vunpack.c.h.b16 %v66
  %v196 = vunpack.c.l.b16 %v67
  %v197 = vunpack.c.l.b16 %v68
  %v198 = vunpack.c.h.b16 %v68
  %v199 = vunpack.c.l.b16 %v69
  %v200 = vunpack.c.l.b16 %v70
  %v201 = vunpack.c.h.b16 %v70
  %v202 = vunpack.c.l.b16 %v71
  %v203 = vunpack.c.l.b16 %v72
  %v204 = vunpack.c.h.b16 %v72
  %v205 = vunpack.c.l.b16 %v73
  %v206 = vunpack.c.l.b16 %v74
  %v207 = vunpack.c.h.b16 %v74
  %v208 = vunpack.c.l.b16 %v75
  %v209 = vunpack.c.l.b16 %v76
  %v210 = vunpack.c.h.b16 %v76
  %v211 = vunpack.c.l.b16 %v77
  %v212 = vunpack.c.l.b16 %v78
  %v213 = vunpack.c.h.b16 %v78
  %v214 = vunpack.c.l.b16 %v79
  %v215 = vunpack.c.l.b16 %v80
  %v216 = vunpack.c.h.b16 %v80
  %v217 = vunpack.c.l.b16 %v81
  %v218 = vpack.c.b16 %v173, %v170
  %v219 = vpack.c.b16 %v174, %v171
  %v220 = vpack.c.b16 %v175, %v172
  %v221 = vpack.c.b16 %v179, %v176
  %v222 = vpack.c.b16 %v180, %v177
  %v223 = vpack.c.b16 %v181, %v178
  %v224 = vpack.c.b16 %v185, %v182
  %v225 = vpack.c.b16 %v186, %v183
  %v226 = vpack.c.b16 %v187, %v184
  %v227 = vpack.c.b16 %v191, %v188
  %v228 = vpack.c.b16 %v192, %v189
  %v229 = vpack.c.b16 %v193, %v190
  %v230 = vpack.c.b16 %v197, %v194
  %v231 = vpack.c.b16 %v198, %v195
  %v232 = vpack.c.b16 %v199, %v196
  %v233 = vpack.c.b16 %v203, %v200
  %v234 = vpack.c.b16 %v204, %v201
  %v235 = vpack.c.b16 %v205, %v202
  %v236 = vpack.c.b16 %v209, %v206
  %v237 = vpack.c.b16 %v210, %v207
  %v238 = vpack.c.b16 %v211, %v208
  %v239 = vpack.c.b16 %v215, %v212
  %v240 = vpack.c.b16 %v216, %v213
  %v241 = vpack.c.b16 %v217, %v214
  %266 = vmatpush.bf16.msra.mxu0 %v239
  %267 = vmatpush.bf16.msra.mxu0 %v236
  %268 = vmatpush.bf16.msra.mxu0 %v233
  %269 = vmatpush.bf16.msra.mxu0 %v230
  %270 = vmatpush.bf16.msra.mxu0 %v227
  %271 = vmatpush.bf16.msra.mxu0 %v224
  %272 = vmatpush.bf16.msra.mxu0 %v221
  %273 = vmatpush.bf16.msra.mxu0 %v218
  %274 = vmatmul.bf16.gmra.mxu0 %v122
  %v275 = vpop.f32.mrf.mxu0
  %v276 = vadd.f32 %v84, %v275
  %v277 = vpop.f32.mrf.mxu0
  %v278 = vadd.f32 %v84, %v277
  %279 = vmatmul.bf16.gmra.mxu0 %v123
  %v280 = vpop.f32.mrf.mxu0
  %v281 = vadd.f32 %v84, %v280
  %v282 = vpop.f32.mrf.mxu0
  %v283 = vadd.f32 %v84, %v282
  %284 = vmatmul.bf16.gmra.mxu0 %v124
  %v285 = vpop.f32.mrf.mxu0
  %v286 = vadd.f32 %v84, %v285
  %v287 = vpop.f32.mrf.mxu0
  %v288 = vadd.f32 %v84, %v287
  %289 = vmatmul.bf16.gmra.mxu0 %v125
  %v290 = vpop.f32.mrf.mxu0
  %v291 = vadd.f32 %v84, %v290
  %v292 = vpop.f32.mrf.mxu0
  %v293 = vadd.f32 %v84, %v292
  %294 = vmatmul.bf16.gmra.mxu0 %v126
  %v295 = vpop.f32.mrf.mxu0
  %v296 = vadd.f32 %v84, %v295
  %v297 = vpop.f32.mrf.mxu0
  %v298 = vadd.f32 %v84, %v297
  %299 = vmatmul.bf16.gmra.mxu0 %v127
  %v300 = vpop.f32.mrf.mxu0
  %v301 = vadd.f32 %v84, %v300
  %v302 = vpop.f32.mrf.mxu0
  %v303 = vadd.f32 %v84, %v302
  %304 = vmatmul.bf16.gmra.mxu0 %v128
  %v305 = vpop.f32.mrf.mxu0
  %v306 = vadd.f32 %v84, %v305
  %v307 = vpop.f32.mrf.mxu0
  %v308 = vadd.f32 %v84, %v307
  %309 = vmatmul.bf16.gmra.mxu0 %v129
  %v310 = vpop.f32.mrf.mxu0
  %v311 = vadd.f32 %v84, %v310
  %v312 = vpop.f32.mrf.mxu0
  %v313 = vadd.f32 %v84, %v312
  %314 = vdwg.mxu0
  %315 = vmatpush.bf16.msra.mxu0 %v240
  %316 = vmatpush.bf16.msra.mxu0 %v237
  %317 = vmatpush.bf16.msra.mxu0 %v234
  %318 = vmatpush.bf16.msra.mxu0 %v231
  %319 = vmatpush.bf16.msra.mxu0 %v228
  %320 = vmatpush.bf16.msra.mxu0 %v225
  %321 = vmatpush.bf16.msra.mxu0 %v222
  %322 = vmatpush.bf16.msra.mxu0 %v219
  %323 = vmatmul.bf16.gmra.mxu0 %v122
  %v324 = vpop.f32.mrf.mxu0
  %v325 = vadd.f32 %v85, %v324
  %v326 = vpop.f32.mrf.mxu0
  %v327 = vadd.f32 %v85, %v326
  %328 = vmatmul.bf16.gmra.mxu0 %v123
  %v329 = vpop.f32.mrf.mxu0
  %v330 = vadd.f32 %v85, %v329
  %v331 = vpop.f32.mrf.mxu0
  %v332 = vadd.f32 %v85, %v331
  %333 = vmatmul.bf16.gmra.mxu0 %v124
  %v334 = vpop.f32.mrf.mxu0
  %v335 = vadd.f32 %v85, %v334
  %v336 = vpop.f32.mrf.mxu0
  %v337 = vadd.f32 %v85, %v336
  %338 = vmatmul.bf16.gmra.mxu0 %v125
  %v339 = vpop.f32.mrf.mxu0
  %v340 = vadd.f32 %v85, %v339
  %v341 = vpop.f32.mrf.mxu0
  %v342 = vadd.f32 %v85, %v341
  %343 = vmatmul.bf16.gmra.mxu0 %v126
  %v344 = vpop.f32.mrf.mxu0
  %v345 = vadd.f32 %v85, %v344
  %v346 = vpop.f32.mrf.mxu0
  %v347 = vadd.f32 %v85, %v346
  %348 = vmatmul.bf16.gmra.mxu0 %v127
  %v349 = vpop.f32.mrf.mxu0
  %v350 = vadd.f32 %v85, %v349
  %v351 = vpop.f32.mrf.mxu0
  %v352 = vadd.f32 %v85, %v351
  %353 = vmatmul.bf16.gmra.mxu0 %v128
  %v354 = vpop.f32.mrf.mxu0
  %v355 = vadd.f32 %v85, %v354
  %v356 = vpop.f32.mrf.mxu0
  %v357 = vadd.f32 %v85, %v356
  %358 = vmatmul.bf16.gmra.mxu0 %v129
  %v359 = vpop.f32.mrf.mxu0
  %v360 = vadd.f32 %v85, %v359
  %v361 = vpop.f32.mrf.mxu0
  %v362 = vadd.f32 %v85, %v361
  %363 = vdwg.mxu0
  %364 = vmatpush.bf16.msra.mxu0 %v241
  %365 = vmatpush.bf16.msra.mxu0 %v238
  %366 = vmatpush.bf16.msra.mxu0 %v235
  %367 = vmatpush.bf16.msra.mxu0 %v232
  %368 = vmatpush.bf16.msra.mxu0 %v229
  %369 = vmatpush.bf16.msra.mxu0 %v226
  %370 = vmatpush.bf16.msra.mxu0 %v223
  %371 = vmatpush.bf16.msra.mxu0 %v220
  %372 = vmatmul.bf16.gmra.mxu0 %v122
  %v373 = vpop.f32.mrf.mxu0
  %v374 = vadd.f32 %v86, %v373
  %v375 = vpop.f32.mrf.mxu0
  %v376 = vadd.f32 %v86, %v375
  %377 = vmatmul.bf16.gmra.mxu0 %v123
  %v378 = vpop.f32.mrf.mxu0
  %v379 = vadd.f32 %v86, %v378
  %v380 = vpop.f32.mrf.mxu0
  %v381 = vadd.f32 %v86, %v380
  %382 = vmatmul.bf16.gmra.mxu0 %v124
  %v383 = vpop.f32.mrf.mxu0
  %v384 = vadd.f32 %v86, %v383
  %v385 = vpop.f32.mrf.mxu0
  %v386 = vadd.f32 %v86, %v385
  %387 = vmatmul.bf16.gmra.mxu0 %v125
  %v388 = vpop.f32.mrf.mxu0
  %v389 = vadd.f32 %v86, %v388
  %v390 = vpop.f32.mrf.mxu0
  %v391 = vadd.f32 %v86, %v390
  %392 = vmatmul.bf16.gmra.mxu0 %v126
  %v393 = vpop.f32.mrf.mxu0
  %v394 = vadd.f32 %v86, %v393
  %v395 = vpop.f32.mrf.mxu0
  %v396 = vadd.f32 %v86, %v395
  %397 = vmatmul.bf16.gmra.mxu0 %v127
  %v398 = vpop.f32.mrf.mxu0
  %v399 = vadd.f32 %v86, %v398
  %v400 = vpop.f32.mrf.mxu0
  %v401 = vadd.f32 %v86, %v400
  %402 = vmatmul.bf16.gmra.mxu0 %v128
  %v403 = vpop.f32.mrf.mxu0
  %v404 = vadd.f32 %v86, %v403
  %v405 = vpop.f32.mrf.mxu0
  %v406 = vadd.f32 %v86, %v405
  %407 = vmatmul.bf16.gmra.mxu0 %v129
  %v408 = vpop.f32.mrf.mxu0
  %v409 = vadd.f32 %v86, %v408
  %v410 = vpop.f32.mrf.mxu0
  %v411 = vadd.f32 %v86, %v410
  %412 = vdwg.mxu0
  %v413 = vld [vmem:[%s4] sm:$0xff]
  %v414 = vld [vmem:[%s4 + $0x8] sm:$0xf]
  %v415 = vld [vmem:[%s4 + $0xc] sm:$0xff]
  %v416 = vld [vmem:[%s4 + $0x14] sm:$0xf]
  %v417 = vld [vmem:[%s4 + $0x18] sm:$0xff]
  %v418 = vld [vmem:[%s4 + $0x20] sm:$0xf]
  %v419 = vld [vmem:[%s4 + $0x24] sm:$0xff]
  %v420 = vld [vmem:[%s4 + $0x2c] sm:$0xf]
  %v421 = vld [vmem:[%s4 + $0x30] sm:$0xff]
  %v422 = vld [vmem:[%s4 + $0x38] sm:$0xf]
  %v423 = vld [vmem:[%s4 + $0x3c] sm:$0xff]
  %v424 = vld [vmem:[%s4 + $0x44] sm:$0xf]
  %v425 = vld [vmem:[%s4 + $0x48] sm:$0xff]
  %v426 = vld [vmem:[%s4 + $0x50] sm:$0xf]
  %v427 = vld [vmem:[%s4 + $0x54] sm:$0xff]
  %v428 = vld [vmem:[%s4 + $0x5c] sm:$0xf]
  %v429 = vld [vmem:[%s4 + $0x60] sm:$0xff]
  %v430 = vld [vmem:[%s4 + $0x68] sm:$0xf]
  %v431 = vld [vmem:[%s4 + $0x6c] sm:$0xff]
  %v432 = vld [vmem:[%s4 + $0x74] sm:$0xf]
  %v433 = vld [vmem:[%s4 + $0x78] sm:$0xff]
  %v434 = vld [vmem:[%s4 + $0x80] sm:$0xf]
  %v435 = vld [vmem:[%s4 + $0x84] sm:$0xff]
  %v436 = vld [vmem:[%s4 + $0x8c] sm:$0xf]
  %v437 = vld [vmem:[%s4 + $0x90] sm:$0xff]
  %v438 = vld [vmem:[%s4 + $0x98] sm:$0xf]
  %v439 = vld [vmem:[%s4 + $0x9c] sm:$0xff]
  %v440 = vld [vmem:[%s4 + $0xa4] sm:$0xf]
  %v441 = vld [vmem:[%s4 + $0xa8] sm:$0xff]
  %v442 = vld [vmem:[%s4 + $0xb0] sm:$0xf]
  %v443 = vld [vmem:[%s4 + $0xb4] sm:$0xff]
  %v444 = vld [vmem:[%s4 + $0xbc] sm:$0xf]
  %v445 = vld [vmem:[%s6] sm:$0x7]
  %s446 = smul.u32 0, 16
  %v447 = vld [vmem:[%s0] sm:$0xff]
  %v448 = vlaneseq
  %v449 = vand.u32 %v448, 127
  %v450 = vstv %s446
  %v451 = vadd.s32 %v450, %v449
  %452 = vset.pattern.permute.xlu0 0
  %453 = vperm.xlu0 %452, %v447
  %v454 = vpop.permute.xlu0 %453
  %vm455 = vcmp.gt.s32.totalorder %v454, %v451
  %v456 = vld [vmem:[#allocation2] sm:$0xff]
  %v457 = vpack.c.bf16 %v456, %v456
  %v459 = vperm.slane %v445, 0
  %v460 = vperm.slane %v445, 1
  %v461 = vperm.slane %v445, 2
  %v497 = vunpack.c.l.b16 %v413
  %v498 = vunpack.c.h.b16 %v413
  %v499 = vunpack.c.l.b16 %v414
  %v500 = vunpack.c.l.b16 %v415
  %v501 = vunpack.c.h.b16 %v415
  %v502 = vunpack.c.l.b16 %v416
  %v503 = vunpack.c.l.b16 %v417
  %v504 = vunpack.c.h.b16 %v417
  %v505 = vunpack.c.l.b16 %v418
  %v506 = vunpack.c.l.b16 %v419
  %v507 = vunpack.c.h.b16 %v419
  %v508 = vunpack.c.l.b16 %v420
  %v509 = vunpack.c.l.b16 %v421
  %v510 = vunpack.c.h.b16 %v421
  %v511 = vunpack.c.l.b16 %v422
  %v512 = vunpack.c.l.b16 %v423
  %v513 = vunpack.c.h.b16 %v423
  %v514 = vunpack.c.l.b16 %v424
  %v515 = vunpack.c.l.b16 %v425
  %v516 = vunpack.c.h.b16 %v425
  %v517 = vunpack.c.l.b16 %v426
  %v518 = vunpack.c.l.b16 %v427
  %v519 = vunpack.c.h.b16 %v427
  %v520 = vunpack.c.l.b16 %v428
  %v521 = vunpack.c.l.b16 %v429
  %v522 = vunpack.c.h.b16 %v429
  %v523 = vunpack.c.l.b16 %v430
  %v524 = vunpack.c.l.b16 %v431
  %v525 = vunpack.c.h.b16 %v431
  %v526 = vunpack.c.l.b16 %v432
  %v527 = vunpack.c.l.b16 %v433
  %v528 = vunpack.c.h.b16 %v433
  %v529 = vunpack.c.l.b16 %v434
  %v530 = vunpack.c.l.b16 %v435
  %v531 = vunpack.c.h.b16 %v435
  %v532 = vunpack.c.l.b16 %v436
  %v533 = vunpack.c.l.b16 %v437
  %v534 = vunpack.c.h.b16 %v437
  %v535 = vunpack.c.l.b16 %v438
  %v536 = vunpack.c.l.b16 %v439
  %v537 = vunpack.c.h.b16 %v439
  %v538 = vunpack.c.l.b16 %v440
  %v539 = vunpack.c.l.b16 %v441
  %v540 = vunpack.c.h.b16 %v441
  %v541 = vunpack.c.l.b16 %v442
  %v542 = vunpack.c.l.b16 %v443
  %v543 = vunpack.c.h.b16 %v443
  %v544 = vunpack.c.l.b16 %v444
  %v545 = vpack.c.b16 %v500, %v497
  %v546 = vpack.c.b16 %v501, %v498
  %v547 = vpack.c.b16 %v502, %v499
  %v548 = vpack.c.b16 %v506, %v503
  %v549 = vpack.c.b16 %v507, %v504
  %v550 = vpack.c.b16 %v508, %v505
  %v551 = vpack.c.b16 %v512, %v509
  %v552 = vpack.c.b16 %v513, %v510
  %v553 = vpack.c.b16 %v514, %v511
  %v554 = vpack.c.b16 %v518, %v515
  %v555 = vpack.c.b16 %v519, %v516
  %v556 = vpack.c.b16 %v520, %v517
  %v557 = vpack.c.b16 %v524, %v521
  %v558 = vpack.c.b16 %v525, %v522
  %v559 = vpack.c.b16 %v526, %v523
  %v560 = vpack.c.b16 %v530, %v527
  %v561 = vpack.c.b16 %v531, %v528
  %v562 = vpack.c.b16 %v532, %v529
  %v563 = vpack.c.b16 %v536, %v533
  %v564 = vpack.c.b16 %v537, %v534
  %v565 = vpack.c.b16 %v538, %v535
  %v566 = vpack.c.b16 %v542, %v539
  %v567 = vpack.c.b16 %v543, %v540
  %v568 = vpack.c.b16 %v544, %v541
  %593 = vmatpush.bf16.msra.mxu0 %v566
  %594 = vmatpush.bf16.msra.mxu0 %v563
  %595 = vmatpush.bf16.msra.mxu0 %v560
  %596 = vmatpush.bf16.msra.mxu0 %v557
  %597 = vmatpush.bf16.msra.mxu0 %v554
  %598 = vmatpush.bf16.msra.mxu0 %v551
  %599 = vmatpush.bf16.msra.mxu0 %v548
  %600 = vmatpush.bf16.msra.mxu0 %v545
  %601 = vmatmul.bf16.gmra.mxu0 %v457
  %v602 = vpop.f32.mrf.mxu0
  %v603 = vadd.f32 %v459, %v602
  %v604 = vpop.f32.mrf.mxu0
  %605 = vdwg.mxu0
  %606 = vmatpush.bf16.msra.mxu0 %v567
  %607 = vmatpush.bf16.msra.mxu0 %v564
  %608 = vmatpush.bf16.msra.mxu0 %v561
  %609 = vmatpush.bf16.msra.mxu0 %v558
  %610 = vmatpush.bf16.msra.mxu0 %v555
  %611 = vmatpush.bf16.msra.mxu0 %v552
  %612 = vmatpush.bf16.msra.mxu0 %v549
  %613 = vmatpush.bf16.msra.mxu0 %v546
  %614 = vmatmul.bf16.gmra.mxu0 %v457
  %v615 = vpop.f32.mrf.mxu0
  %v616 = vadd.f32 %v460, %v615
  %v617 = vpop.f32.mrf.mxu0
  %618 = vdwg.mxu0
  %619 = vmatpush.bf16.msra.mxu0 %v568
  %620 = vmatpush.bf16.msra.mxu0 %v565
  %621 = vmatpush.bf16.msra.mxu0 %v562
  %622 = vmatpush.bf16.msra.mxu0 %v559
  %623 = vmatpush.bf16.msra.mxu0 %v556
  %624 = vmatpush.bf16.msra.mxu0 %v553
  %625 = vmatpush.bf16.msra.mxu0 %v550
  %626 = vmatpush.bf16.msra.mxu0 %v547
  %627 = vmatmul.bf16.gmra.mxu0 %v457
  %v628 = vpop.f32.mrf.mxu0
  %v629 = vadd.f32 %v461, %v628
  %v630 = vpop.f32.mrf.mxu0
  %631 = vdwg.mxu0
  %v632 = vadd.f32 %v276, %v603
  %v633 = vxor.u32 %v632, 2147483648
  %v634 = vmul.f32 %v633, 1.442695
  %v635 = vpow.pop %v634
  %v636 = vadd.f32 %v635, 1.0
  %v637 = vrcp.pop %v636
  %v638 = vmul.f32 %v636, %v637
  %v639 = vsub.f32 1.0, %v638
  %v640 = vmul.f32 %v637, %v639
  %v641 = vadd.f32 %v637, %v640
  %vm642 = vweird.f32 %v636
  %vm643 = vweird.f32 %v637
  %vm644 = vmor %vm642, %vm643
  %v645 = vsel %vm644, %v637, %v641
  %v646 = vand.u32 2147483647, %v636
  %vm647 = vcmp.eq.f32.partialorder %v646, 8.507059e+37
  %v648 = vand.u32 %v636, 2147483648
  %v649 = vor.u32 1.1754944e-38, %v648
  %v650 = vsel %vm647, %v649, %v645
  %v651 = vmul.f32 1.0, %v650
  %v652 = vadd.f32 %v325, %v616
  %v653 = vxor.u32 %v652, 2147483648
  %v654 = vmul.f32 %v653, 1.442695
  %v655 = vpow.pop %v654
  %v656 = vadd.f32 %v655, 1.0
  %v657 = vrcp.pop %v656
  %v658 = vmul.f32 %v656, %v657
  %v659 = vsub.f32 1.0, %v658
  %v660 = vmul.f32 %v657, %v659
  %v661 = vadd.f32 %v657, %v660
  %vm662 = vweird.f32 %v656
  %vm663 = vweird.f32 %v657
  %vm664 = vmor %vm662, %vm663
  %v665 = vsel %vm664, %v657, %v661
  %v666 = vand.u32 2147483647, %v656
  %vm667 = vcmp.eq.f32.partialorder %v666, 8.507059e+37
  %v668 = vand.u32 %v656, 2147483648
  %v669 = vor.u32 1.1754944e-38, %v668
  %v670 = vsel %vm667, %v669, %v665
  %v671 = vmul.f32 1.0, %v670
  %v672 = vmul.f32 %v651, %v629
  %v673 = vadd.f32 %v374, %v672
  %v674 = vtanh.pop %v673
  %v675 = vsub.f32 1.0, %v671
  %v676 = vmul.f32 %v675, %v674
  %v677 = vmul.f32 %v671, %v456
  %v678 = vadd.f32 %v676, %v677
  %v679 = vsel %vm455, 1, 0
  %680 = vset.pattern.permute.xlu0 0
  %681 = vperm.xlu0 %680, %v679
  %v682 = vpop.permute.xlu0 %681
  %vm683 = vcmp.eq.s32.totalorder %v682, 1
  %v684 = vsel %vm683, %v678, 0.0
  %v685 = vsel %vm683, %v678, %v456
  %v686 = vpack.c.bf16 %v685, %v685
  %687 = vmatpush.bf16.msra.mxu0 %v566
  %688 = vmatpush.bf16.msra.mxu0 %v563
  %689 = vmatpush.bf16.msra.mxu0 %v560
  %690 = vmatpush.bf16.msra.mxu0 %v557
  %691 = vmatpush.bf16.msra.mxu0 %v554
  %692 = vmatpush.bf16.msra.mxu0 %v551
  %693 = vmatpush.bf16.msra.mxu0 %v548
  %694 = vmatpush.bf16.msra.mxu0 %v545
  %695 = vmatmul.bf16.gmra.mxu0 %v686
  %v696 = vpop.f32.mrf.mxu0
  %v697 = vadd.f32 %v459, %v696
  %v698 = vpop.f32.mrf.mxu0
  %699 = vdwg.mxu0
  %700 = vmatpush.bf16.msra.mxu0 %v567
  %701 = vmatpush.bf16.msra.mxu0 %v564
  %702 = vmatpush.bf16.msra.mxu0 %v561
  %703 = vmatpush.bf16.msra.mxu0 %v558
  %704 = vmatpush.bf16.msra.mxu0 %v555
  %705 = vmatpush.bf16.msra.mxu0 %v552
  %706 = vmatpush.bf16.msra.mxu0 %v549
  %707 = vmatpush.bf16.msra.mxu0 %v546
  %708 = vmatmul.bf16.gmra.mxu0 %v686
  %v709 = vpop.f32.mrf.mxu0
  %v710 = vadd.f32 %v460, %v709
  %v711 = vpop.f32.mrf.mxu0
  %712 = vdwg.mxu0
  %713 = vmatpush.bf16.msra.mxu0 %v568
  %714 = vmatpush.bf16.msra.mxu0 %v565
  %715 = vmatpush.bf16.msra.mxu0 %v562
  %716 = vmatpush.bf16.msra.mxu0 %v559
  %717 = vmatpush.bf16.msra.mxu0 %v556
  %718 = vmatpush.bf16.msra.mxu0 %v553
  %719 = vmatpush.bf16.msra.mxu0 %v550
  %720 = vmatpush.bf16.msra.mxu0 %v547
  %721 = vmatmul.bf16.gmra.mxu0 %v686
  %v722 = vpop.f32.mrf.mxu0
  %v723 = vadd.f32 %v461, %v722
  %v724 = vpop.f32.mrf.mxu0
  %725 = vdwg.mxu0
  %v726 = vadd.f32 %v278, %v697
  %v727 = vxor.u32 %v726, 2147483648
  %v728 = vmul.f32 %v727, 1.442695
  %v729 = vpow.pop %v728
  %v730 = vadd.f32 %v729, 1.0
  %v731 = vrcp.pop %v730
  %v732 = vmul.f32 %v730, %v731
  %v733 = vsub.f32 1.0, %v732
  %v734 = vmul.f32 %v731, %v733
  %v735 = vadd.f32 %v731, %v734
  %vm736 = vweird.f32 %v730
  %vm737 = vweird.f32 %v731
  %vm738 = vmor %vm736, %vm737
  %v739 = vsel %vm738, %v731, %v735
  %v740 = vand.u32 2147483647, %v730
  %vm741 = vcmp.eq.f32.partialorder %v740, 8.507059e+37
  %v742 = vand.u32 %v730, 2147483648
  %v743 = vor.u32 1.1754944e-38, %v742
  %v744 = vsel %vm741, %v743, %v739
  %v745 = vmul.f32 1.0, %v744
  %v746 = vadd.f32 %v327, %v710
  %v747 = vxor.u32 %v746, 2147483648
  %v748 = vmul.f32 %v747, 1.442695
  %v749 = vpow.pop %v748
  %v750 = vadd.f32 %v749, 1.0
  %v751 = vrcp.pop %v750
  %v752 = vmul.f32 %v750, %v751
  %v753 = vsub.f32 1.0, %v752
  %v754 = vmul.f32 %v751, %v753
  %v755 = vadd.f32 %v751, %v754
  %vm756 = vweird.f32 %v750
  %vm757 = vweird.f32 %v751
  %vm758 = vmor %vm756, %vm757
  %v759 = vsel %vm758, %v751, %v755
  %v760 = vand.u32 2147483647, %v750
  %vm761 = vcmp.eq.f32.partialorder %v760, 8.507059e+37
  %v762 = vand.u32 %v750, 2147483648
  %v763 = vor.u32 1.1754944e-38, %v762
  %v764 = vsel %vm761, %v763, %v759
  %v765 = vmul.f32 1.0, %v764
  %v766 = vmul.f32 %v745, %v723
  %v767 = vadd.f32 %v376, %v766
  %v768 = vtanh.pop %v767
  %v769 = vsub.f32 1.0, %v765
  %v770 = vmul.f32 %v769, %v768
  %v771 = vmul.f32 %v765, %v685
  %v772 = vadd.f32 %v770, %v771
  %773 = vset.pattern.permute.xlu0 1
  %774 = vperm.xlu0 %773, %v679
  %v775 = vpop.permute.xlu0 %774
  %vm776 = vcmp.eq.s32.totalorder %v775, 1
  %v777 = vsel %vm776, %v772, 0.0
  %v778 = vsel %vm776, %v772, %v685
  %v779 = vpack.c.bf16 %v778, %v778
  %780 = vmatpush.bf16.msra.mxu0 %v566
  %781 = vmatpush.bf16.msra.mxu0 %v563
  %782 = vmatpush.bf16.msra.mxu0 %v560
  %783 = vmatpush.bf16.msra.mxu0 %v557
  %784 = vmatpush.bf16.msra.mxu0 %v554
  %785 = vmatpush.bf16.msra.mxu0 %v551
  %786 = vmatpush.bf16.msra.mxu0 %v548
  %787 = vmatpush.bf16.msra.mxu0 %v545
  %788 = vmatmul.bf16.gmra.mxu0 %v779
  %v789 = vpop.f32.mrf.mxu0
  %v790 = vadd.f32 %v459, %v789
  %v791 = vpop.f32.mrf.mxu0
  %792 = vdwg.mxu0
  %793 = vmatpush.bf16.msra.mxu0 %v567
  %794 = vmatpush.bf16.msra.mxu0 %v564
  %795 = vmatpush.bf16.msra.mxu0 %v561
  %796 = vmatpush.bf16.msra.mxu0 %v558
  %797 = vmatpush.bf16.msra.mxu0 %v555
  %798 = vmatpush.bf16.msra.mxu0 %v552
  %799 = vmatpush.bf16.msra.mxu0 %v549
  %800 = vmatpush.bf16.msra.mxu0 %v546
  %801 = vmatmul.bf16.gmra.mxu0 %v779
  %v802 = vpop.f32.mrf.mxu0
  %v803 = vadd.f32 %v460, %v802
  %v804 = vpop.f32.mrf.mxu0
  %805 = vdwg.mxu0
  %806 = vmatpush.bf16.msra.mxu0 %v568
  %807 = vmatpush.bf16.msra.mxu0 %v565
  %808 = vmatpush.bf16.msra.mxu0 %v562
  %809 = vmatpush.bf16.msra.mxu0 %v559
  %810 = vmatpush.bf16.msra.mxu0 %v556
  %811 = vmatpush.bf16.msra.mxu0 %v553
  %812 = vmatpush.bf16.msra.mxu0 %v550
  %813 = vmatpush.bf16.msra.mxu0 %v547
  %814 = vmatmul.bf16.gmra.mxu0 %v779
  %v815 = vpop.f32.mrf.mxu0
  %v816 = vadd.f32 %v461, %v815
  %v817 = vpop.f32.mrf.mxu0
  %818 = vdwg.mxu0
  %v819 = vadd.f32 %v281, %v790
  %v820 = vxor.u32 %v819, 2147483648
  %v821 = vmul.f32 %v820, 1.442695
  %v822 = vpow.pop %v821
  %v823 = vadd.f32 %v822, 1.0
  %v824 = vrcp.pop %v823
  %v825 = vmul.f32 %v823, %v824
  %v826 = vsub.f32 1.0, %v825
  %v827 = vmul.f32 %v824, %v826
  %v828 = vadd.f32 %v824, %v827
  %vm829 = vweird.f32 %v823
  %vm830 = vweird.f32 %v824
  %vm831 = vmor %vm829, %vm830
  %v832 = vsel %vm831, %v824, %v828
  %v833 = vand.u32 2147483647, %v823
  %vm834 = vcmp.eq.f32.partialorder %v833, 8.507059e+37
  %v835 = vand.u32 %v823, 2147483648
  %v836 = vor.u32 1.1754944e-38, %v835
  %v837 = vsel %vm834, %v836, %v832
  %v838 = vmul.f32 1.0, %v837
  %v839 = vadd.f32 %v330, %v803
  %v840 = vxor.u32 %v839, 2147483648
  %v841 = vmul.f32 %v840, 1.442695
  %v842 = vpow.pop %v841
  %v843 = vadd.f32 %v842, 1.0
  %v844 = vrcp.pop %v843
  %v845 = vmul.f32 %v843, %v844
  %v846 = vsub.f32 1.0, %v845
  %v847 = vmul.f32 %v844, %v846
  %v848 = vadd.f32 %v844, %v847
  %vm849 = vweird.f32 %v843
  %vm850 = vweird.f32 %v844
  %vm851 = vmor %vm849, %vm850
  %v852 = vsel %vm851, %v844, %v848
  %v853 = vand.u32 2147483647, %v843
  %vm854 = vcmp.eq.f32.partialorder %v853, 8.507059e+37
  %v855 = vand.u32 %v843, 2147483648
  %v856 = vor.u32 1.1754944e-38, %v855
  %v857 = vsel %vm854, %v856, %v852
  %v858 = vmul.f32 1.0, %v857
  %v859 = vmul.f32 %v838, %v816
  %v860 = vadd.f32 %v379, %v859
  %v861 = vtanh.pop %v860
  %v862 = vsub.f32 1.0, %v858
  %v863 = vmul.f32 %v862, %v861
  %v864 = vmul.f32 %v858, %v778
  %v865 = vadd.f32 %v863, %v864
  %866 = vset.pattern.permute.xlu0 2
  %867 = vperm.xlu0 %866, %v679
  %v868 = vpop.permute.xlu0 %867
  %vm869 = vcmp.eq.s32.totalorder %v868, 1
  %v870 = vsel %vm869, %v865, 0.0
  %v871 = vsel %vm869, %v865, %v778
  %v872 = vpack.c.bf16 %v871, %v871
  %873 = vmatpush.bf16.msra.mxu0 %v566
  %874 = vmatpush.bf16.msra.mxu0 %v563
  %875 = vmatpush.bf16.msra.mxu0 %v560
  %876 = vmatpush.bf16.msra.mxu0 %v557
  %877 = vmatpush.bf16.msra.mxu0 %v554
  %878 = vmatpush.bf16.msra.mxu0 %v551
  %879 = vmatpush.bf16.msra.mxu0 %v548
  %880 = vmatpush.bf16.msra.mxu0 %v545
  %881 = vmatmul.bf16.gmra.mxu0 %v872
  %v882 = vpop.f32.mrf.mxu0
  %v883 = vadd.f32 %v459, %v882
  %v884 = vpop.f32.mrf.mxu0
  %885 = vdwg.mxu0
  %886 = vmatpush.bf16.msra.mxu0 %v567
  %887 = vmatpush.bf16.msra.mxu0 %v564
  %888 = vmatpush.bf16.msra.mxu0 %v561
  %889 = vmatpush.bf16.msra.mxu0 %v558
  %890 = vmatpush.bf16.msra.mxu0 %v555
  %891 = vmatpush.bf16.msra.mxu0 %v552
  %892 = vmatpush.bf16.msra.mxu0 %v549
  %893 = vmatpush.bf16.msra.mxu0 %v546
  %894 = vmatmul.bf16.gmra.mxu0 %v872
  %v895 = vpop.f32.mrf.mxu0
  %v896 = vadd.f32 %v460, %v895
  %v897 = vpop.f32.mrf.mxu0
  %898 = vdwg.mxu0
  %899 = vmatpush.bf16.msra.mxu0 %v568
  %900 = vmatpush.bf16.msra.mxu0 %v565
  %901 = vmatpush.bf16.msra.mxu0 %v562
  %902 = vmatpush.bf16.msra.mxu0 %v559
  %903 = vmatpush.bf16.msra.mxu0 %v556
  %904 = vmatpush.bf16.msra.mxu0 %v553
  %905 = vmatpush.bf16.msra.mxu0 %v550
  %906 = vmatpush.bf16.msra.mxu0 %v547
  %907 = vmatmul.bf16.gmra.mxu0 %v872
  %v908 = vpop.f32.mrf.mxu0
  %v909 = vadd.f32 %v461, %v908
  %v910 = vpop.f32.mrf.mxu0
  %911 = vdwg.mxu0
  %v912 = vadd.f32 %v283, %v883
  %v913 = vxor.u32 %v912, 2147483648
  %v914 = vmul.f32 %v913, 1.442695
  %v915 = vpow.pop %v914
  %v916 = vadd.f32 %v915, 1.0
  %v917 = vrcp.pop %v916
  %v918 = vmul.f32 %v916, %v917
  %v919 = vsub.f32 1.0, %v918
  %v920 = vmul.f32 %v917, %v919
  %v921 = vadd.f32 %v917, %v920
  %vm922 = vweird.f32 %v916
  %vm923 = vweird.f32 %v917
  %vm924 = vmor %vm922, %vm923
  %v925 = vsel %vm924, %v917, %v921
  %v926 = vand.u32 2147483647, %v916
  %vm927 = vcmp.eq.f32.partialorder %v926, 8.507059e+37
  %v928 = vand.u32 %v916, 2147483648
  %v929 = vor.u32 1.1754944e-38, %v928
  %v930 = vsel %vm927, %v929, %v925
  %v931 = vmul.f32 1.0, %v930
  %v932 = vadd.f32 %v332, %v896
  %v933 = vxor.u32 %v932, 2147483648
  %v934 = vmul.f32 %v933, 1.442695
  %v935 = vpow.pop %v934
  %v936 = vadd.f32 %v935, 1.0
  %v937 = vrcp.pop %v936
  %v938 = vmul.f32 %v936, %v937
  %v939 = vsub.f32 1.0, %v938
  %v940 = vmul.f32 %v937, %v939
  %v941 = vadd.f32 %v937, %v940
  %vm942 = vweird.f32 %v936
  %vm943 = vweird.f32 %v937
  %vm944 = vmor %vm942, %vm943
  %v945 = vsel %vm944, %v937, %v941
  %v946 = vand.u32 2147483647, %v936
  %vm947 = vcmp.eq.f32.partialorder %v946, 8.507059e+37
  %v948 = vand.u32 %v936, 2147483648
  %v949 = vor.u32 1.1754944e-38, %v948
  %v950 = vsel %vm947, %v949, %v945
  %v951 = vmul.f32 1.0, %v950
  %v952 = vmul.f32 %v931, %v909
  %v953 = vadd.f32 %v381, %v952
  %v954 = vtanh.pop %v953
  %v955 = vsub.f32 1.0, %v951
  %v956 = vmul.f32 %v955, %v954
  %v957 = vmul.f32 %v951, %v871
  %v958 = vadd.f32 %v956, %v957
  %959 = vset.pattern.permute.xlu0 3
  %960 = vperm.xlu0 %959, %v679
  %v961 = vpop.permute.xlu0 %960
  %vm962 = vcmp.eq.s32.totalorder %v961, 1
  %v963 = vsel %vm962, %v958, 0.0
  %v964 = vsel %vm962, %v958, %v871
  %v965 = vpack.c.bf16 %v964, %v964
  %966 = vmatpush.bf16.msra.mxu0 %v566
  %967 = vmatpush.bf16.msra.mxu0 %v563
  %968 = vmatpush.bf16.msra.mxu0 %v560
  %969 = vmatpush.bf16.msra.mxu0 %v557
  %970 = vmatpush.bf16.msra.mxu0 %v554
  %971 = vmatpush.bf16.msra.mxu0 %v551
  %972 = vmatpush.bf16.msra.mxu0 %v548
  %973 = vmatpush.bf16.msra.mxu0 %v545
  %974 = vmatmul.bf16.gmra.mxu0 %v965
  %v975 = vpop.f32.mrf.mxu0
  %v976 = vadd.f32 %v459, %v975
  %v977 = vpop.f32.mrf.mxu0
  %978 = vdwg.mxu0
  %979 = vmatpush.bf16.msra.mxu0 %v567
  %980 = vmatpush.bf16.msra.mxu0 %v564
  %981 = vmatpush.bf16.msra.mxu0 %v561
  %982 = vmatpush.bf16.msra.mxu0 %v558
  %983 = vmatpush.bf16.msra.mxu0 %v555
  %984 = vmatpush.bf16.msra.mxu0 %v552
  %985 = vmatpush.bf16.msra.mxu0 %v549
  %986 = vmatpush.bf16.msra.mxu0 %v546
  %987 = vmatmul.bf16.gmra.mxu0 %v965
  %v988 = vpop.f32.mrf.mxu0
  %v989 = vadd.f32 %v460, %v988
  %v990 = vpop.f32.mrf.mxu0
  %991 = vdwg.mxu0
  %992 = vmatpush.bf16.msra.mxu0 %v568
  %993 = vmatpush.bf16.msra.mxu0 %v565
  %994 = vmatpush.bf16.msra.mxu0 %v562
  %995 = vmatpush.bf16.msra.mxu0 %v559
  %996 = vmatpush.bf16.msra.mxu0 %v556
  %997 = vmatpush.bf16.msra.mxu0 %v553
  %998 = vmatpush.bf16.msra.mxu0 %v550
  %999 = vmatpush.bf16.msra.mxu0 %v547
  %1000 = vmatmul.bf16.gmra.mxu0 %v965
  %v1001 = vpop.f32.mrf.mxu0
  %v1002 = vadd.f32 %v461, %v1001
  %v1003 = vpop.f32.mrf.mxu0
  %1004 = vdwg.mxu0
  %v1005 = vadd.f32 %v286, %v976
  %v1006 = vxor.u32 %v1005, 2147483648
  %v1007 = vmul.f32 %v1006, 1.442695
  %v1008 = vpow.pop %v1007
  %v1009 = vadd.f32 %v1008, 1.0
  %v1010 = vrcp.pop %v1009
  %v1011 = vmul.f32 %v1009, %v1010
  %v1012 = vsub.f32 1.0, %v1011
  %v1013 = vmul.f32 %v1010, %v1012
  %v1014 = vadd.f32 %v1010, %v1013
  %vm1015 = vweird.f32 %v1009
  %vm1016 = vweird.f32 %v1010
  %vm1017 = vmor %vm1015, %vm1016
  %v1018 = vsel %vm1017, %v1010, %v1014
  %v1019 = vand.u32 2147483647, %v1009
  %vm1020 = vcmp.eq.f32.partialorder %v1019, 8.507059e+37
  %v1021 = vand.u32 %v1009, 2147483648
  %v1022 = vor.u32 1.1754944e-38, %v1021
  %v1023 = vsel %vm1020, %v1022, %v1018
  %v1024 = vmul.f32 1.0, %v1023
  %v1025 = vadd.f32 %v335, %v989
  %v1026 = vxor.u32 %v1025, 2147483648
  %v1027 = vmul.f32 %v1026, 1.442695
  %v1028 = vpow.pop %v1027
  %v1029 = vadd.f32 %v1028, 1.0
  %v1030 = vrcp.pop %v1029
  %v1031 = vmul.f32 %v1029, %v1030
  %v1032 = vsub.f32 1.0, %v1031
  %v1033 = vmul.f32 %v1030, %v1032
  %v1034 = vadd.f32 %v1030, %v1033
  %vm1035 = vweird.f32 %v1029
  %vm1036 = vweird.f32 %v1030
  %vm1037 = vmor %vm1035, %vm1036
  %v1038 = vsel %vm1037, %v1030, %v1034
  %v1039 = vand.u32 2147483647, %v1029
  %vm1040 = vcmp.eq.f32.partialorder %v1039, 8.507059e+37
  %v1041 = vand.u32 %v1029, 2147483648
  %v1042 = vor.u32 1.1754944e-38, %v1041
  %v1043 = vsel %vm1040, %v1042, %v1038
  %v1044 = vmul.f32 1.0, %v1043
  %v1045 = vmul.f32 %v1024, %v1002
  %v1046 = vadd.f32 %v384, %v1045
  %v1047 = vtanh.pop %v1046
  %v1048 = vsub.f32 1.0, %v1044
  %v1049 = vmul.f32 %v1048, %v1047
  %v1050 = vmul.f32 %v1044, %v964
  %v1051 = vadd.f32 %v1049, %v1050
  %1052 = vset.pattern.permute.xlu0 4
  %1053 = vperm.xlu0 %1052, %v679
  %v1054 = vpop.permute.xlu0 %1053
  %vm1055 = vcmp.eq.s32.totalorder %v1054, 1
  %v1056 = vsel %vm1055, %v1051, 0.0
  %v1057 = vsel %vm1055, %v1051, %v964
  %v1058 = vpack.c.bf16 %v1057, %v1057
  %1059 = vmatpush.bf16.msra.mxu0 %v566
  %1060 = vmatpush.bf16.msra.mxu0 %v563
  %1061 = vmatpush.bf16.msra.mxu0 %v560
  %1062 = vmatpush.bf16.msra.mxu0 %v557
  %1063 = vmatpush.bf16.msra.mxu0 %v554
  %1064 = vmatpush.bf16.msra.mxu0 %v551
  %1065 = vmatpush.bf16.msra.mxu0 %v548
  %1066 = vmatpush.bf16.msra.mxu0 %v545
  %1067 = vmatmul.bf16.gmra.mxu0 %v1058
  %v1068 = vpop.f32.mrf.mxu0
  %v1069 = vadd.f32 %v459, %v1068
  %v1070 = vpop.f32.mrf.mxu0
  %1071 = vdwg.mxu0
  %1072 = vmatpush.bf16.msra.mxu0 %v567
  %1073 = vmatpush.bf16.msra.mxu0 %v564
  %1074 = vmatpush.bf16.msra.mxu0 %v561
  %1075 = vmatpush.bf16.msra.mxu0 %v558
  %1076 = vmatpush.bf16.msra.mxu0 %v555
  %1077 = vmatpush.bf16.msra.mxu0 %v552
  %1078 = vmatpush.bf16.msra.mxu0 %v549
  %1079 = vmatpush.bf16.msra.mxu0 %v546
  %1080 = vmatmul.bf16.gmra.mxu0 %v1058
  %v1081 = vpop.f32.mrf.mxu0
  %v1082 = vadd.f32 %v460, %v1081
  %v1083 = vpop.f32.mrf.mxu0
  %1084 = vdwg.mxu0
  %1085 = vmatpush.bf16.msra.mxu0 %v568
  %1086 = vmatpush.bf16.msra.mxu0 %v565
  %1087 = vmatpush.bf16.msra.mxu0 %v562
  %1088 = vmatpush.bf16.msra.mxu0 %v559
  %1089 = vmatpush.bf16.msra.mxu0 %v556
  %1090 = vmatpush.bf16.msra.mxu0 %v553
  %1091 = vmatpush.bf16.msra.mxu0 %v550
  %1092 = vmatpush.bf16.msra.mxu0 %v547
  %1093 = vmatmul.bf16.gmra.mxu0 %v1058
  %v1094 = vpop.f32.mrf.mxu0
  %v1095 = vadd.f32 %v461, %v1094
  %v1096 = vpop.f32.mrf.mxu0
  %1097 = vdwg.mxu0
  %v1098 = vadd.f32 %v288, %v1069
  %v1099 = vxor.u32 %v1098, 2147483648
  %v1100 = vmul.f32 %v1099, 1.442695
  %v1101 = vpow.pop %v1100
  %v1102 = vadd.f32 %v1101, 1.0
  %v1103 = vrcp.pop %v1102
  %v1104 = vmul.f32 %v1102, %v1103
  %v1105 = vsub.f32 1.0, %v1104
  %v1106 = vmul.f32 %v1103, %v1105
  %v1107 = vadd.f32 %v1103, %v1106
  %vm1108 = vweird.f32 %v1102
  %vm1109 = vweird.f32 %v1103
  %vm1110 = vmor %vm1108, %vm1109
  %v1111 = vsel %vm1110, %v1103, %v1107
  %v1112 = vand.u32 2147483647, %v1102
  %vm1113 = vcmp.eq.f32.partialorder %v1112, 8.507059e+37
  %v1114 = vand.u32 %v1102, 2147483648
  %v1115 = vor.u32 1.1754944e-38, %v1114
  %v1116 = vsel %vm1113, %v1115, %v1111
  %v1117 = vmul.f32 1.0, %v1116
  %v1118 = vadd.f32 %v337, %v1082
  %v1119 = vxor.u32 %v1118, 2147483648
  %v1120 = vmul.f32 %v1119, 1.442695
  %v1121 = vpow.pop %v1120
  %v1122 = vadd.f32 %v1121, 1.0
  %v1123 = vrcp.pop %v1122
  %v1124 = vmul.f32 %v1122, %v1123
  %v1125 = vsub.f32 1.0, %v1124
  %v1126 = vmul.f32 %v1123, %v1125
  %v1127 = vadd.f32 %v1123, %v1126
  %vm1128 = vweird.f32 %v1122
  %vm1129 = vweird.f32 %v1123
  %vm1130 = vmor %vm1128, %vm1129
  %v1131 = vsel %vm1130, %v1123, %v1127
  %v1132 = vand.u32 2147483647, %v1122
  %vm1133 = vcmp.eq.f32.partialorder %v1132, 8.507059e+37
  %v1134 = vand.u32 %v1122, 2147483648
  %v1135 = vor.u32 1.1754944e-38, %v1134
  %v1136 = vsel %vm1133, %v1135, %v1131
  %v1137 = vmul.f32 1.0, %v1136
  %v1138 = vmul.f32 %v1117, %v1095
  %v1139 = vadd.f32 %v386, %v1138
  %v1140 = vtanh.pop %v1139
  %v1141 = vsub.f32 1.0, %v1137
  %v1142 = vmul.f32 %v1141, %v1140
  %v1143 = vmul.f32 %v1137, %v1057
  %v1144 = vadd.f32 %v1142, %v1143
  %1145 = vset.pattern.permute.xlu0 5
  %1146 = vperm.xlu0 %1145, %v679
  %v1147 = vpop.permute.xlu0 %1146
  %vm1148 = vcmp.eq.s32.totalorder %v1147, 1
  %v1149 = vsel %vm1148, %v1144, 0.0
  %v1150 = vsel %vm1148, %v1144, %v1057
  %v1151 = vpack.c.bf16 %v1150, %v1150
  %1152 = vmatpush.bf16.msra.mxu0 %v566
  %1153 = vmatpush.bf16.msra.mxu0 %v563
  %1154 = vmatpush.bf16.msra.mxu0 %v560
  %1155 = vmatpush.bf16.msra.mxu0 %v557
  %1156 = vmatpush.bf16.msra.mxu0 %v554
  %1157 = vmatpush.bf16.msra.mxu0 %v551
  %1158 = vmatpush.bf16.msra.mxu0 %v548
  %1159 = vmatpush.bf16.msra.mxu0 %v545
  %1160 = vmatmul.bf16.gmra.mxu0 %v1151
  %v1161 = vpop.f32.mrf.mxu0
  %v1162 = vadd.f32 %v459, %v1161
  %v1163 = vpop.f32.mrf.mxu0
  %1164 = vdwg.mxu0
  %1165 = vmatpush.bf16.msra.mxu0 %v567
  %1166 = vmatpush.bf16.msra.mxu0 %v564
  %1167 = vmatpush.bf16.msra.mxu0 %v561
  %1168 = vmatpush.bf16.msra.mxu0 %v558
  %1169 = vmatpush.bf16.msra.mxu0 %v555
  %1170 = vmatpush.bf16.msra.mxu0 %v552
  %1171 = vmatpush.bf16.msra.mxu0 %v549
  %1172 = vmatpush.bf16.msra.mxu0 %v546
  %1173 = vmatmul.bf16.gmra.mxu0 %v1151
  %v1174 = vpop.f32.mrf.mxu0
  %v1175 = vadd.f32 %v460, %v1174
  %v1176 = vpop.f32.mrf.mxu0
  %1177 = vdwg.mxu0
  %1178 = vmatpush.bf16.msra.mxu0 %v568
  %1179 = vmatpush.bf16.msra.mxu0 %v565
  %1180 = vmatpush.bf16.msra.mxu0 %v562
  %1181 = vmatpush.bf16.msra.mxu0 %v559
  %1182 = vmatpush.bf16.msra.mxu0 %v556
  %1183 = vmatpush.bf16.msra.mxu0 %v553
  %1184 = vmatpush.bf16.msra.mxu0 %v550
  %1185 = vmatpush.bf16.msra.mxu0 %v547
  %1186 = vmatmul.bf16.gmra.mxu0 %v1151
  %v1187 = vpop.f32.mrf.mxu0
  %v1188 = vadd.f32 %v461, %v1187
  %v1189 = vpop.f32.mrf.mxu0
  %1190 = vdwg.mxu0
  %v1191 = vadd.f32 %v291, %v1162
  %v1192 = vxor.u32 %v1191, 2147483648
  %v1193 = vmul.f32 %v1192, 1.442695
  %v1194 = vpow.pop %v1193
  %v1195 = vadd.f32 %v1194, 1.0
  %v1196 = vrcp.pop %v1195
  %v1197 = vmul.f32 %v1195, %v1196
  %v1198 = vsub.f32 1.0, %v1197
  %v1199 = vmul.f32 %v1196, %v1198
  %v1200 = vadd.f32 %v1196, %v1199
  %vm1201 = vweird.f32 %v1195
  %vm1202 = vweird.f32 %v1196
  %vm1203 = vmor %vm1201, %vm1202
  %v1204 = vsel %vm1203, %v1196, %v1200
  %v1205 = vand.u32 2147483647, %v1195
  %vm1206 = vcmp.eq.f32.partialorder %v1205, 8.507059e+37
  %v1207 = vand.u32 %v1195, 2147483648
  %v1208 = vor.u32 1.1754944e-38, %v1207
  %v1209 = vsel %vm1206, %v1208, %v1204
  %v1210 = vmul.f32 1.0, %v1209
  %v1211 = vadd.f32 %v340, %v1175
  %v1212 = vxor.u32 %v1211, 2147483648
  %v1213 = vmul.f32 %v1212, 1.442695
  %v1214 = vpow.pop %v1213
  %v1215 = vadd.f32 %v1214, 1.0
  %v1216 = vrcp.pop %v1215
  %v1217 = vmul.f32 %v1215, %v1216
  %v1218 = vsub.f32 1.0, %v1217
  %v1219 = vmul.f32 %v1216, %v1218
  %v1220 = vadd.f32 %v1216, %v1219
  %vm1221 = vweird.f32 %v1215
  %vm1222 = vweird.f32 %v1216
  %vm1223 = vmor %vm1221, %vm1222
  %v1224 = vsel %vm1223, %v1216, %v1220
  %v1225 = vand.u32 2147483647, %v1215
  %vm1226 = vcmp.eq.f32.partialorder %v1225, 8.507059e+37
  %v1227 = vand.u32 %v1215, 2147483648
  %v1228 = vor.u32 1.1754944e-38, %v1227
  %v1229 = vsel %vm1226, %v1228, %v1224
  %v1230 = vmul.f32 1.0, %v1229
  %v1231 = vmul.f32 %v1210, %v1188
  %v1232 = vadd.f32 %v389, %v1231
  %v1233 = vtanh.pop %v1232
  %v1234 = vsub.f32 1.0, %v1230
  %v1235 = vmul.f32 %v1234, %v1233
  %v1236 = vmul.f32 %v1230, %v1150
  %v1237 = vadd.f32 %v1235, %v1236
  %1238 = vset.pattern.permute.xlu0 6
  %1239 = vperm.xlu0 %1238, %v679
  %v1240 = vpop.permute.xlu0 %1239
  %vm1241 = vcmp.eq.s32.totalorder %v1240, 1
  %v1242 = vsel %vm1241, %v1237, 0.0
  %v1243 = vsel %vm1241, %v1237, %v1150
  %v1244 = vpack.c.bf16 %v1243, %v1243
  %1245 = vmatpush.bf16.msra.mxu0 %v566
  %1246 = vmatpush.bf16.msra.mxu0 %v563
  %1247 = vmatpush.bf16.msra.mxu0 %v560
  %1248 = vmatpush.bf16.msra.mxu0 %v557
  %1249 = vmatpush.bf16.msra.mxu0 %v554
  %1250 = vmatpush.bf16.msra.mxu0 %v551
  %1251 = vmatpush.bf16.msra.mxu0 %v548
  %1252 = vmatpush.bf16.msra.mxu0 %v545
  %1253 = vmatmul.bf16.gmra.mxu0 %v1244
  %v1254 = vpop.f32.mrf.mxu0
  %v1255 = vadd.f32 %v459, %v1254
  %v1256 = vpop.f32.mrf.mxu0
  %1257 = vdwg.mxu0
  %1258 = vmatpush.bf16.msra.mxu0 %v567
  %1259 = vmatpush.bf16.msra.mxu0 %v564
  %1260 = vmatpush.bf16.msra.mxu0 %v561
  %1261 = vmatpush.bf16.msra.mxu0 %v558
  %1262 = vmatpush.bf16.msra.mxu0 %v555
  %1263 = vmatpush.bf16.msra.mxu0 %v552
  %1264 = vmatpush.bf16.msra.mxu0 %v549
  %1265 = vmatpush.bf16.msra.mxu0 %v546
  %1266 = vmatmul.bf16.gmra.mxu0 %v1244
  %v1267 = vpop.f32.mrf.mxu0
  %v1268 = vadd.f32 %v460, %v1267
  %v1269 = vpop.f32.mrf.mxu0
  %1270 = vdwg.mxu0
  %1271 = vmatpush.bf16.msra.mxu0 %v568
  %1272 = vmatpush.bf16.msra.mxu0 %v565
  %1273 = vmatpush.bf16.msra.mxu0 %v562
  %1274 = vmatpush.bf16.msra.mxu0 %v559
  %1275 = vmatpush.bf16.msra.mxu0 %v556
  %1276 = vmatpush.bf16.msra.mxu0 %v553
  %1277 = vmatpush.bf16.msra.mxu0 %v550
  %1278 = vmatpush.bf16.msra.mxu0 %v547
  %1279 = vmatmul.bf16.gmra.mxu0 %v1244
  %v1280 = vpop.f32.mrf.mxu0
  %v1281 = vadd.f32 %v461, %v1280
  %v1282 = vpop.f32.mrf.mxu0
  %1283 = vdwg.mxu0
  %v1284 = vadd.f32 %v293, %v1255
  %v1285 = vxor.u32 %v1284, 2147483648
  %v1286 = vmul.f32 %v1285, 1.442695
  %v1287 = vpow.pop %v1286
  %v1288 = vadd.f32 %v1287, 1.0
  %v1289 = vrcp.pop %v1288
  %v1290 = vmul.f32 %v1288, %v1289
  %v1291 = vsub.f32 1.0, %v1290
  %v1292 = vmul.f32 %v1289, %v1291
  %v1293 = vadd.f32 %v1289, %v1292
  %vm1294 = vweird.f32 %v1288
  %vm1295 = vweird.f32 %v1289
  %vm1296 = vmor %vm1294, %vm1295
  %v1297 = vsel %vm1296, %v1289, %v1293
  %v1298 = vand.u32 2147483647, %v1288
  %vm1299 = vcmp.eq.f32.partialorder %v1298, 8.507059e+37
  %v1300 = vand.u32 %v1288, 2147483648
  %v1301 = vor.u32 1.1754944e-38, %v1300
  %v1302 = vsel %vm1299, %v1301, %v1297
  %v1303 = vmul.f32 1.0, %v1302
  %v1304 = vadd.f32 %v342, %v1268
  %v1305 = vxor.u32 %v1304, 2147483648
  %v1306 = vmul.f32 %v1305, 1.442695
  %v1307 = vpow.pop %v1306
  %v1308 = vadd.f32 %v1307, 1.0
  %v1309 = vrcp.pop %v1308
  %v1310 = vmul.f32 %v1308, %v1309
  %v1311 = vsub.f32 1.0, %v1310
  %v1312 = vmul.f32 %v1309, %v1311
  %v1313 = vadd.f32 %v1309, %v1312
  %vm1314 = vweird.f32 %v1308
  %vm1315 = vweird.f32 %v1309
  %vm1316 = vmor %vm1314, %vm1315
  %v1317 = vsel %vm1316, %v1309, %v1313
  %v1318 = vand.u32 2147483647, %v1308
  %vm1319 = vcmp.eq.f32.partialorder %v1318, 8.507059e+37
  %v1320 = vand.u32 %v1308, 2147483648
  %v1321 = vor.u32 1.1754944e-38, %v1320
  %v1322 = vsel %vm1319, %v1321, %v1317
  %v1323 = vmul.f32 1.0, %v1322
  %v1324 = vmul.f32 %v1303, %v1281
  %v1325 = vadd.f32 %v391, %v1324
  %v1326 = vtanh.pop %v1325
  %v1327 = vsub.f32 1.0, %v1323
  %v1328 = vmul.f32 %v1327, %v1326
  %v1329 = vmul.f32 %v1323, %v1243
  %v1330 = vadd.f32 %v1328, %v1329
  %1331 = vset.pattern.permute.xlu0 7
  %1332 = vperm.xlu0 %1331, %v679
  %v1333 = vpop.permute.xlu0 %1332
  %vm1334 = vcmp.eq.s32.totalorder %v1333, 1
  %v1335 = vsel %vm1334, %v1330, 0.0
  %v1336 = vsel %vm1334, %v1330, %v1243
  %v1337 = vpack.c.bf16 %v1336, %v1336
  %1338 = vmatpush.bf16.msra.mxu0 %v566
  %1339 = vmatpush.bf16.msra.mxu0 %v563
  %1340 = vmatpush.bf16.msra.mxu0 %v560
  %1341 = vmatpush.bf16.msra.mxu0 %v557
  %1342 = vmatpush.bf16.msra.mxu0 %v554
  %1343 = vmatpush.bf16.msra.mxu0 %v551
  %1344 = vmatpush.bf16.msra.mxu0 %v548
  %1345 = vmatpush.bf16.msra.mxu0 %v545
  %1346 = vmatmul.bf16.gmra.mxu0 %v1337
  %v1347 = vpop.f32.mrf.mxu0
  %v1348 = vadd.f32 %v459, %v1347
  %v1349 = vpop.f32.mrf.mxu0
  %1350 = vdwg.mxu0
  %1351 = vmatpush.bf16.msra.mxu0 %v567
  %1352 = vmatpush.bf16.msra.mxu0 %v564
  %1353 = vmatpush.bf16.msra.mxu0 %v561
  %1354 = vmatpush.bf16.msra.mxu0 %v558
  %1355 = vmatpush.bf16.msra.mxu0 %v555
  %1356 = vmatpush.bf16.msra.mxu0 %v552
  %1357 = vmatpush.bf16.msra.mxu0 %v549
  %1358 = vmatpush.bf16.msra.mxu0 %v546
  %1359 = vmatmul.bf16.gmra.mxu0 %v1337
  %v1360 = vpop.f32.mrf.mxu0
  %v1361 = vadd.f32 %v460, %v1360
  %v1362 = vpop.f32.mrf.mxu0
  %1363 = vdwg.mxu0
  %1364 = vmatpush.bf16.msra.mxu0 %v568
  %1365 = vmatpush.bf16.msra.mxu0 %v565
  %1366 = vmatpush.bf16.msra.mxu0 %v562
  %1367 = vmatpush.bf16.msra.mxu0 %v559
  %1368 = vmatpush.bf16.msra.mxu0 %v556
  %1369 = vmatpush.bf16.msra.mxu0 %v553
  %1370 = vmatpush.bf16.msra.mxu0 %v550
  %1371 = vmatpush.bf16.msra.mxu0 %v547
  %1372 = vmatmul.bf16.gmra.mxu0 %v1337
  %v1373 = vpop.f32.mrf.mxu0
  %v1374 = vadd.f32 %v461, %v1373
  %v1375 = vpop.f32.mrf.mxu0
  %1376 = vdwg.mxu0
  %v1377 = vadd.f32 %v296, %v1348
  %v1378 = vxor.u32 %v1377, 2147483648
  %v1379 = vmul.f32 %v1378, 1.442695
  %v1380 = vpow.pop %v1379
  %v1381 = vadd.f32 %v1380, 1.0
  %v1382 = vrcp.pop %v1381
  %v1383 = vmul.f32 %v1381, %v1382
  %v1384 = vsub.f32 1.0, %v1383
  %v1385 = vmul.f32 %v1382, %v1384
  %v1386 = vadd.f32 %v1382, %v1385
  %vm1387 = vweird.f32 %v1381
  %vm1388 = vweird.f32 %v1382
  %vm1389 = vmor %vm1387, %vm1388
  %v1390 = vsel %vm1389, %v1382, %v1386
  %v1391 = vand.u32 2147483647, %v1381
  %vm1392 = vcmp.eq.f32.partialorder %v1391, 8.507059e+37
  %v1393 = vand.u32 %v1381, 2147483648
  %v1394 = vor.u32 1.1754944e-38, %v1393
  %v1395 = vsel %vm1392, %v1394, %v1390
  %v1396 = vmul.f32 1.0, %v1395
  %v1397 = vadd.f32 %v345, %v1361
  %v1398 = vxor.u32 %v1397, 2147483648
  %v1399 = vmul.f32 %v1398, 1.442695
  %v1400 = vpow.pop %v1399
  %v1401 = vadd.f32 %v1400, 1.0
  %v1402 = vrcp.pop %v1401
  %v1403 = vmul.f32 %v1401, %v1402
  %v1404 = vsub.f32 1.0, %v1403
  %v1405 = vmul.f32 %v1402, %v1404
  %v1406 = vadd.f32 %v1402, %v1405
  %vm1407 = vweird.f32 %v1401
  %vm1408 = vweird.f32 %v1402
  %vm1409 = vmor %vm1407, %vm1408
  %v1410 = vsel %vm1409, %v1402, %v1406
  %v1411 = vand.u32 2147483647, %v1401
  %vm1412 = vcmp.eq.f32.partialorder %v1411, 8.507059e+37
  %v1413 = vand.u32 %v1401, 2147483648
  %v1414 = vor.u32 1.1754944e-38, %v1413
  %v1415 = vsel %vm1412, %v1414, %v1410
  %v1416 = vmul.f32 1.0, %v1415
  %v1417 = vmul.f32 %v1396, %v1374
  %v1418 = vadd.f32 %v394, %v1417
  %v1419 = vtanh.pop %v1418
  %v1420 = vsub.f32 1.0, %v1416
  %v1421 = vmul.f32 %v1420, %v1419
  %v1422 = vmul.f32 %v1416, %v1336
  %v1423 = vadd.f32 %v1421, %v1422
  %1424 = vset.pattern.permute.xlu0 8
  %1425 = vperm.xlu0 %1424, %v679
  %v1426 = vpop.permute.xlu0 %1425
  %vm1427 = vcmp.eq.s32.totalorder %v1426, 1
  %v1428 = vsel %vm1427, %v1423, 0.0
  %v1429 = vsel %vm1427, %v1423, %v1336
  %v1430 = vpack.c.bf16 %v1429, %v1429
  %1431 = vmatpush.bf16.msra.mxu0 %v566
  %1432 = vmatpush.bf16.msra.mxu0 %v563
  %1433 = vmatpush.bf16.msra.mxu0 %v560
  %1434 = vmatpush.bf16.msra.mxu0 %v557
  %1435 = vmatpush.bf16.msra.mxu0 %v554
  %1436 = vmatpush.bf16.msra.mxu0 %v551
  %1437 = vmatpush.bf16.msra.mxu0 %v548
  %1438 = vmatpush.bf16.msra.mxu0 %v545
  %1439 = vmatmul.bf16.gmra.mxu0 %v1430
  %v1440 = vpop.f32.mrf.mxu0
  %v1441 = vadd.f32 %v459, %v1440
  %v1442 = vpop.f32.mrf.mxu0
  %1443 = vdwg.mxu0
  %1444 = vmatpush.bf16.msra.mxu0 %v567
  %1445 = vmatpush.bf16.msra.mxu0 %v564
  %1446 = vmatpush.bf16.msra.mxu0 %v561
  %1447 = vmatpush.bf16.msra.mxu0 %v558
  %1448 = vmatpush.bf16.msra.mxu0 %v555
  %1449 = vmatpush.bf16.msra.mxu0 %v552
  %1450 = vmatpush.bf16.msra.mxu0 %v549
  %1451 = vmatpush.bf16.msra.mxu0 %v546
  %1452 = vmatmul.bf16.gmra.mxu0 %v1430
  %v1453 = vpop.f32.mrf.mxu0
  %v1454 = vadd.f32 %v460, %v1453
  %v1455 = vpop.f32.mrf.mxu0
  %1456 = vdwg.mxu0
  %1457 = vmatpush.bf16.msra.mxu0 %v568
  %1458 = vmatpush.bf16.msra.mxu0 %v565
  %1459 = vmatpush.bf16.msra.mxu0 %v562
  %1460 = vmatpush.bf16.msra.mxu0 %v559
  %1461 = vmatpush.bf16.msra.mxu0 %v556
  %1462 = vmatpush.bf16.msra.mxu0 %v553
  %1463 = vmatpush.bf16.msra.mxu0 %v550
  %1464 = vmatpush.bf16.msra.mxu0 %v547
  %1465 = vmatmul.bf16.gmra.mxu0 %v1430
  %v1466 = vpop.f32.mrf.mxu0
  %v1467 = vadd.f32 %v461, %v1466
  %v1468 = vpop.f32.mrf.mxu0
  %1469 = vdwg.mxu0
  %v1470 = vadd.f32 %v298, %v1441
  %v1471 = vxor.u32 %v1470, 2147483648
  %v1472 = vmul.f32 %v1471, 1.442695
  %v1473 = vpow.pop %v1472
  %v1474 = vadd.f32 %v1473, 1.0
  %v1475 = vrcp.pop %v1474
  %v1476 = vmul.f32 %v1474, %v1475
  %v1477 = vsub.f32 1.0, %v1476
  %v1478 = vmul.f32 %v1475, %v1477
  %v1479 = vadd.f32 %v1475, %v1478
  %vm1480 = vweird.f32 %v1474
  %vm1481 = vweird.f32 %v1475
  %vm1482 = vmor %vm1480, %vm1481
  %v1483 = vsel %vm1482, %v1475, %v1479
  %v1484 = vand.u32 2147483647, %v1474
  %vm1485 = vcmp.eq.f32.partialorder %v1484, 8.507059e+37
  %v1486 = vand.u32 %v1474, 2147483648
  %v1487 = vor.u32 1.1754944e-38, %v1486
  %v1488 = vsel %vm1485, %v1487, %v1483
  %v1489 = vmul.f32 1.0, %v1488
  %v1490 = vadd.f32 %v347, %v1454
  %v1491 = vxor.u32 %v1490, 2147483648
  %v1492 = vmul.f32 %v1491, 1.442695
  %v1493 = vpow.pop %v1492
  %v1494 = vadd.f32 %v1493, 1.0
  %v1495 = vrcp.pop %v1494
  %v1496 = vmul.f32 %v1494, %v1495
  %v1497 = vsub.f32 1.0, %v1496
  %v1498 = vmul.f32 %v1495, %v1497
  %v1499 = vadd.f32 %v1495, %v1498
  %vm1500 = vweird.f32 %v1494
  %vm1501 = vweird.f32 %v1495
  %vm1502 = vmor %vm1500, %vm1501
  %v1503 = vsel %vm1502, %v1495, %v1499
  %v1504 = vand.u32 2147483647, %v1494
  %vm1505 = vcmp.eq.f32.partialorder %v1504, 8.507059e+37
  %v1506 = vand.u32 %v1494, 2147483648
  %v1507 = vor.u32 1.1754944e-38, %v1506
  %v1508 = vsel %vm1505, %v1507, %v1503
  %v1509 = vmul.f32 1.0, %v1508
  %v1510 = vmul.f32 %v1489, %v1467
  %v1511 = vadd.f32 %v396, %v1510
  %v1512 = vtanh.pop %v1511
  %v1513 = vsub.f32 1.0, %v1509
  %v1514 = vmul.f32 %v1513, %v1512
  %v1515 = vmul.f32 %v1509, %v1429
  %v1516 = vadd.f32 %v1514, %v1515
  %1517 = vset.pattern.permute.xlu0 9
  %1518 = vperm.xlu0 %1517, %v679
  %v1519 = vpop.permute.xlu0 %1518
  %vm1520 = vcmp.eq.s32.totalorder %v1519, 1
  %v1521 = vsel %vm1520, %v1516, 0.0
  %v1522 = vsel %vm1520, %v1516, %v1429
  %v1523 = vpack.c.bf16 %v1522, %v1522
  %1524 = vmatpush.bf16.msra.mxu0 %v566
  %1525 = vmatpush.bf16.msra.mxu0 %v563
  %1526 = vmatpush.bf16.msra.mxu0 %v560
  %1527 = vmatpush.bf16.msra.mxu0 %v557
  %1528 = vmatpush.bf16.msra.mxu0 %v554
  %1529 = vmatpush.bf16.msra.mxu0 %v551
  %1530 = vmatpush.bf16.msra.mxu0 %v548
  %1531 = vmatpush.bf16.msra.mxu0 %v545
  %1532 = vmatmul.bf16.gmra.mxu0 %v1523
  %v1533 = vpop.f32.mrf.mxu0
  %v1534 = vadd.f32 %v459, %v1533
  %v1535 = vpop.f32.mrf.mxu0
  %1536 = vdwg.mxu0
  %1537 = vmatpush.bf16.msra.mxu0 %v567
  %1538 = vmatpush.bf16.msra.mxu0 %v564
  %1539 = vmatpush.bf16.msra.mxu0 %v561
  %1540 = vmatpush.bf16.msra.mxu0 %v558
  %1541 = vmatpush.bf16.msra.mxu0 %v555
  %1542 = vmatpush.bf16.msra.mxu0 %v552
  %1543 = vmatpush.bf16.msra.mxu0 %v549
  %1544 = vmatpush.bf16.msra.mxu0 %v546
  %1545 = vmatmul.bf16.gmra.mxu0 %v1523
  %v1546 = vpop.f32.mrf.mxu0
  %v1547 = vadd.f32 %v460, %v1546
  %v1548 = vpop.f32.mrf.mxu0
  %1549 = vdwg.mxu0
  %1550 = vmatpush.bf16.msra.mxu0 %v568
  %1551 = vmatpush.bf16.msra.mxu0 %v565
  %1552 = vmatpush.bf16.msra.mxu0 %v562
  %1553 = vmatpush.bf16.msra.mxu0 %v559
  %1554 = vmatpush.bf16.msra.mxu0 %v556
  %1555 = vmatpush.bf16.msra.mxu0 %v553
  %1556 = vmatpush.bf16.msra.mxu0 %v550
  %1557 = vmatpush.bf16.msra.mxu0 %v547
  %1558 = vmatmul.bf16.gmra.mxu0 %v1523
  %v1559 = vpop.f32.mrf.mxu0
  %v1560 = vadd.f32 %v461, %v1559
  %v1561 = vpop.f32.mrf.mxu0
  %1562 = vdwg.mxu0
  %v1563 = vadd.f32 %v301, %v1534
  %v1564 = vxor.u32 %v1563, 2147483648
  %v1565 = vmul.f32 %v1564, 1.442695
  %v1566 = vpow.pop %v1565
  %v1567 = vadd.f32 %v1566, 1.0
  %v1568 = vrcp.pop %v1567
  %v1569 = vmul.f32 %v1567, %v1568
  %v1570 = vsub.f32 1.0, %v1569
  %v1571 = vmul.f32 %v1568, %v1570
  %v1572 = vadd.f32 %v1568, %v1571
  %vm1573 = vweird.f32 %v1567
  %vm1574 = vweird.f32 %v1568
  %vm1575 = vmor %vm1573, %vm1574
  %v1576 = vsel %vm1575, %v1568, %v1572
  %v1577 = vand.u32 2147483647, %v1567
  %vm1578 = vcmp.eq.f32.partialorder %v1577, 8.507059e+37
  %v1579 = vand.u32 %v1567, 2147483648
  %v1580 = vor.u32 1.1754944e-38, %v1579
  %v1581 = vsel %vm1578, %v1580, %v1576
  %v1582 = vmul.f32 1.0, %v1581
  %v1583 = vadd.f32 %v350, %v1547
  %v1584 = vxor.u32 %v1583, 2147483648
  %v1585 = vmul.f32 %v1584, 1.442695
  %v1586 = vpow.pop %v1585
  %v1587 = vadd.f32 %v1586, 1.0
  %v1588 = vrcp.pop %v1587
  %v1589 = vmul.f32 %v1587, %v1588
  %v1590 = vsub.f32 1.0, %v1589
  %v1591 = vmul.f32 %v1588, %v1590
  %v1592 = vadd.f32 %v1588, %v1591
  %vm1593 = vweird.f32 %v1587
  %vm1594 = vweird.f32 %v1588
  %vm1595 = vmor %vm1593, %vm1594
  %v1596 = vsel %vm1595, %v1588, %v1592
  %v1597 = vand.u32 2147483647, %v1587
  %vm1598 = vcmp.eq.f32.partialorder %v1597, 8.507059e+37
  %v1599 = vand.u32 %v1587, 2147483648
  %v1600 = vor.u32 1.1754944e-38, %v1599
  %v1601 = vsel %vm1598, %v1600, %v1596
  %v1602 = vmul.f32 1.0, %v1601
  %v1603 = vmul.f32 %v1582, %v1560
  %v1604 = vadd.f32 %v399, %v1603
  %v1605 = vtanh.pop %v1604
  %v1606 = vsub.f32 1.0, %v1602
  %v1607 = vmul.f32 %v1606, %v1605
  %v1608 = vmul.f32 %v1602, %v1522
  %v1609 = vadd.f32 %v1607, %v1608
  %1610 = vset.pattern.permute.xlu0 10
  %1611 = vperm.xlu0 %1610, %v679
  %v1612 = vpop.permute.xlu0 %1611
  %vm1613 = vcmp.eq.s32.totalorder %v1612, 1
  %v1614 = vsel %vm1613, %v1609, 0.0
  %v1615 = vsel %vm1613, %v1609, %v1522
  %v1616 = vpack.c.bf16 %v1615, %v1615
  %1617 = vmatpush.bf16.msra.mxu0 %v566
  %1618 = vmatpush.bf16.msra.mxu0 %v563
  %1619 = vmatpush.bf16.msra.mxu0 %v560
  %1620 = vmatpush.bf16.msra.mxu0 %v557
  %1621 = vmatpush.bf16.msra.mxu0 %v554
  %1622 = vmatpush.bf16.msra.mxu0 %v551
  %1623 = vmatpush.bf16.msra.mxu0 %v548
  %1624 = vmatpush.bf16.msra.mxu0 %v545
  %1625 = vmatmul.bf16.gmra.mxu0 %v1616
  %v1626 = vpop.f32.mrf.mxu0
  %v1627 = vadd.f32 %v459, %v1626
  %v1628 = vpop.f32.mrf.mxu0
  %1629 = vdwg.mxu0
  %1630 = vmatpush.bf16.msra.mxu0 %v567
  %1631 = vmatpush.bf16.msra.mxu0 %v564
  %1632 = vmatpush.bf16.msra.mxu0 %v561
  %1633 = vmatpush.bf16.msra.mxu0 %v558
  %1634 = vmatpush.bf16.msra.mxu0 %v555
  %1635 = vmatpush.bf16.msra.mxu0 %v552
  %1636 = vmatpush.bf16.msra.mxu0 %v549
  %1637 = vmatpush.bf16.msra.mxu0 %v546
  %1638 = vmatmul.bf16.gmra.mxu0 %v1616
  %v1639 = vpop.f32.mrf.mxu0
  %v1640 = vadd.f32 %v460, %v1639
  %v1641 = vpop.f32.mrf.mxu0
  %1642 = vdwg.mxu0
  %1643 = vmatpush.bf16.msra.mxu0 %v568
  %1644 = vmatpush.bf16.msra.mxu0 %v565
  %1645 = vmatpush.bf16.msra.mxu0 %v562
  %1646 = vmatpush.bf16.msra.mxu0 %v559
  %1647 = vmatpush.bf16.msra.mxu0 %v556
  %1648 = vmatpush.bf16.msra.mxu0 %v553
  %1649 = vmatpush.bf16.msra.mxu0 %v550
  %1650 = vmatpush.bf16.msra.mxu0 %v547
  %1651 = vmatmul.bf16.gmra.mxu0 %v1616
  %v1652 = vpop.f32.mrf.mxu0
  %v1653 = vadd.f32 %v461, %v1652
  %v1654 = vpop.f32.mrf.mxu0
  %1655 = vdwg.mxu0
  %v1656 = vadd.f32 %v303, %v1627
  %v1657 = vxor.u32 %v1656, 2147483648
  %v1658 = vmul.f32 %v1657, 1.442695
  %v1659 = vpow.pop %v1658
  %v1660 = vadd.f32 %v1659, 1.0
  %v1661 = vrcp.pop %v1660
  %v1662 = vmul.f32 %v1660, %v1661
  %v1663 = vsub.f32 1.0, %v1662
  %v1664 = vmul.f32 %v1661, %v1663
  %v1665 = vadd.f32 %v1661, %v1664
  %vm1666 = vweird.f32 %v1660
  %vm1667 = vweird.f32 %v1661
  %vm1668 = vmor %vm1666, %vm1667
  %v1669 = vsel %vm1668, %v1661, %v1665
  %v1670 = vand.u32 2147483647, %v1660
  %vm1671 = vcmp.eq.f32.partialorder %v1670, 8.507059e+37
  %v1672 = vand.u32 %v1660, 2147483648
  %v1673 = vor.u32 1.1754944e-38, %v1672
  %v1674 = vsel %vm1671, %v1673, %v1669
  %v1675 = vmul.f32 1.0, %v1674
  %v1676 = vadd.f32 %v352, %v1640
  %v1677 = vxor.u32 %v1676, 2147483648
  %v1678 = vmul.f32 %v1677, 1.442695
  %v1679 = vpow.pop %v1678
  %v1680 = vadd.f32 %v1679, 1.0
  %v1681 = vrcp.pop %v1680
  %v1682 = vmul.f32 %v1680, %v1681
  %v1683 = vsub.f32 1.0, %v1682
  %v1684 = vmul.f32 %v1681, %v1683
  %v1685 = vadd.f32 %v1681, %v1684
  %vm1686 = vweird.f32 %v1680
  %vm1687 = vweird.f32 %v1681
  %vm1688 = vmor %vm1686, %vm1687
  %v1689 = vsel %vm1688, %v1681, %v1685
  %v1690 = vand.u32 2147483647, %v1680
  %vm1691 = vcmp.eq.f32.partialorder %v1690, 8.507059e+37
  %v1692 = vand.u32 %v1680, 2147483648
  %v1693 = vor.u32 1.1754944e-38, %v1692
  %v1694 = vsel %vm1691, %v1693, %v1689
  %v1695 = vmul.f32 1.0, %v1694
  %v1696 = vmul.f32 %v1675, %v1653
  %v1697 = vadd.f32 %v401, %v1696
  %v1698 = vtanh.pop %v1697
  %v1699 = vsub.f32 1.0, %v1695
  %v1700 = vmul.f32 %v1699, %v1698
  %v1701 = vmul.f32 %v1695, %v1615
  %v1702 = vadd.f32 %v1700, %v1701
  %1703 = vset.pattern.permute.xlu0 11
  %1704 = vperm.xlu0 %1703, %v679
  %v1705 = vpop.permute.xlu0 %1704
  %vm1706 = vcmp.eq.s32.totalorder %v1705, 1
  %v1707 = vsel %vm1706, %v1702, 0.0
  %v1708 = vsel %vm1706, %v1702, %v1615
  %v1709 = vpack.c.bf16 %v1708, %v1708
  %1710 = vmatpush.bf16.msra.mxu0 %v566
  %1711 = vmatpush.bf16.msra.mxu0 %v563
  %1712 = vmatpush.bf16.msra.mxu0 %v560
  %1713 = vmatpush.bf16.msra.mxu0 %v557
  %1714 = vmatpush.bf16.msra.mxu0 %v554
  %1715 = vmatpush.bf16.msra.mxu0 %v551
  %1716 = vmatpush.bf16.msra.mxu0 %v548
  %1717 = vmatpush.bf16.msra.mxu0 %v545
  %1718 = vmatmul.bf16.gmra.mxu0 %v1709
  %v1719 = vpop.f32.mrf.mxu0
  %v1720 = vadd.f32 %v459, %v1719
  %v1721 = vpop.f32.mrf.mxu0
  %1722 = vdwg.mxu0
  %1723 = vmatpush.bf16.msra.mxu0 %v567
  %1724 = vmatpush.bf16.msra.mxu0 %v564
  %1725 = vmatpush.bf16.msra.mxu0 %v561
  %1726 = vmatpush.bf16.msra.mxu0 %v558
  %1727 = vmatpush.bf16.msra.mxu0 %v555
  %1728 = vmatpush.bf16.msra.mxu0 %v552
  %1729 = vmatpush.bf16.msra.mxu0 %v549
  %1730 = vmatpush.bf16.msra.mxu0 %v546
  %1731 = vmatmul.bf16.gmra.mxu0 %v1709
  %v1732 = vpop.f32.mrf.mxu0
  %v1733 = vadd.f32 %v460, %v1732
  %v1734 = vpop.f32.mrf.mxu0
  %1735 = vdwg.mxu0
  %1736 = vmatpush.bf16.msra.mxu0 %v568
  %1737 = vmatpush.bf16.msra.mxu0 %v565
  %1738 = vmatpush.bf16.msra.mxu0 %v562
  %1739 = vmatpush.bf16.msra.mxu0 %v559
  %1740 = vmatpush.bf16.msra.mxu0 %v556
  %1741 = vmatpush.bf16.msra.mxu0 %v553
  %1742 = vmatpush.bf16.msra.mxu0 %v550
  %1743 = vmatpush.bf16.msra.mxu0 %v547
  %1744 = vmatmul.bf16.gmra.mxu0 %v1709
  %v1745 = vpop.f32.mrf.mxu0
  %v1746 = vadd.f32 %v461, %v1745
  %v1747 = vpop.f32.mrf.mxu0
  %1748 = vdwg.mxu0
  %v1749 = vadd.f32 %v306, %v1720
  %v1750 = vxor.u32 %v1749, 2147483648
  %v1751 = vmul.f32 %v1750, 1.442695
  %v1752 = vpow.pop %v1751
  %v1753 = vadd.f32 %v1752, 1.0
  %v1754 = vrcp.pop %v1753
  %v1755 = vmul.f32 %v1753, %v1754
  %v1756 = vsub.f32 1.0, %v1755
  %v1757 = vmul.f32 %v1754, %v1756
  %v1758 = vadd.f32 %v1754, %v1757
  %vm1759 = vweird.f32 %v1753
  %vm1760 = vweird.f32 %v1754
  %vm1761 = vmor %vm1759, %vm1760
  %v1762 = vsel %vm1761, %v1754, %v1758
  %v1763 = vand.u32 2147483647, %v1753
  %vm1764 = vcmp.eq.f32.partialorder %v1763, 8.507059e+37
  %v1765 = vand.u32 %v1753, 2147483648
  %v1766 = vor.u32 1.1754944e-38, %v1765
  %v1767 = vsel %vm1764, %v1766, %v1762
  %v1768 = vmul.f32 1.0, %v1767
  %v1769 = vadd.f32 %v355, %v1733
  %v1770 = vxor.u32 %v1769, 2147483648
  %v1771 = vmul.f32 %v1770, 1.442695
  %v1772 = vpow.pop %v1771
  %v1773 = vadd.f32 %v1772, 1.0
  %v1774 = vrcp.pop %v1773
  %v1775 = vmul.f32 %v1773, %v1774
  %v1776 = vsub.f32 1.0, %v1775
  %v1777 = vmul.f32 %v1774, %v1776
  %v1778 = vadd.f32 %v1774, %v1777
  %vm1779 = vweird.f32 %v1773
  %vm1780 = vweird.f32 %v1774
  %vm1781 = vmor %vm1779, %vm1780
  %v1782 = vsel %vm1781, %v1774, %v1778
  %v1783 = vand.u32 2147483647, %v1773
  %vm1784 = vcmp.eq.f32.partialorder %v1783, 8.507059e+37
  %v1785 = vand.u32 %v1773, 2147483648
  %v1786 = vor.u32 1.1754944e-38, %v1785
  %v1787 = vsel %vm1784, %v1786, %v1782
  %v1788 = vmul.f32 1.0, %v1787
  %v1789 = vmul.f32 %v1768, %v1746
  %v1790 = vadd.f32 %v404, %v1789
  %v1791 = vtanh.pop %v1790
  %v1792 = vsub.f32 1.0, %v1788
  %v1793 = vmul.f32 %v1792, %v1791
  %v1794 = vmul.f32 %v1788, %v1708
  %v1795 = vadd.f32 %v1793, %v1794
  %1796 = vset.pattern.permute.xlu0 12
  %1797 = vperm.xlu0 %1796, %v679
  %v1798 = vpop.permute.xlu0 %1797
  %vm1799 = vcmp.eq.s32.totalorder %v1798, 1
  %v1800 = vsel %vm1799, %v1795, 0.0
  %v1801 = vsel %vm1799, %v1795, %v1708
  %v1802 = vpack.c.bf16 %v1801, %v1801
  %1803 = vmatpush.bf16.msra.mxu0 %v566
  %1804 = vmatpush.bf16.msra.mxu0 %v563
  %1805 = vmatpush.bf16.msra.mxu0 %v560
  %1806 = vmatpush.bf16.msra.mxu0 %v557
  %1807 = vmatpush.bf16.msra.mxu0 %v554
  %1808 = vmatpush.bf16.msra.mxu0 %v551
  %1809 = vmatpush.bf16.msra.mxu0 %v548
  %1810 = vmatpush.bf16.msra.mxu0 %v545
  %1811 = vmatmul.bf16.gmra.mxu0 %v1802
  %v1812 = vpop.f32.mrf.mxu0
  %v1813 = vadd.f32 %v459, %v1812
  %v1814 = vpop.f32.mrf.mxu0
  %1815 = vdwg.mxu0
  %1816 = vmatpush.bf16.msra.mxu0 %v567
  %1817 = vmatpush.bf16.msra.mxu0 %v564
  %1818 = vmatpush.bf16.msra.mxu0 %v561
  %1819 = vmatpush.bf16.msra.mxu0 %v558
  %1820 = vmatpush.bf16.msra.mxu0 %v555
  %1821 = vmatpush.bf16.msra.mxu0 %v552
  %1822 = vmatpush.bf16.msra.mxu0 %v549
  %1823 = vmatpush.bf16.msra.mxu0 %v546
  %1824 = vmatmul.bf16.gmra.mxu0 %v1802
  %v1825 = vpop.f32.mrf.mxu0
  %v1826 = vadd.f32 %v460, %v1825
  %v1827 = vpop.f32.mrf.mxu0
  %1828 = vdwg.mxu0
  %1829 = vmatpush.bf16.msra.mxu0 %v568
  %1830 = vmatpush.bf16.msra.mxu0 %v565
  %1831 = vmatpush.bf16.msra.mxu0 %v562
  %1832 = vmatpush.bf16.msra.mxu0 %v559
  %1833 = vmatpush.bf16.msra.mxu0 %v556
  %1834 = vmatpush.bf16.msra.mxu0 %v553
  %1835 = vmatpush.bf16.msra.mxu0 %v550
  %1836 = vmatpush.bf16.msra.mxu0 %v547
  %1837 = vmatmul.bf16.gmra.mxu0 %v1802
  %v1838 = vpop.f32.mrf.mxu0
  %v1839 = vadd.f32 %v461, %v1838
  %v1840 = vpop.f32.mrf.mxu0
  %1841 = vdwg.mxu0
  %v1842 = vadd.f32 %v308, %v1813
  %v1843 = vxor.u32 %v1842, 2147483648
  %v1844 = vmul.f32 %v1843, 1.442695
  %v1845 = vpow.pop %v1844
  %v1846 = vadd.f32 %v1845, 1.0
  %v1847 = vrcp.pop %v1846
  %v1848 = vmul.f32 %v1846, %v1847
  %v1849 = vsub.f32 1.0, %v1848
  %v1850 = vmul.f32 %v1847, %v1849
  %v1851 = vadd.f32 %v1847, %v1850
  %vm1852 = vweird.f32 %v1846
  %vm1853 = vweird.f32 %v1847
  %vm1854 = vmor %vm1852, %vm1853
  %v1855 = vsel %vm1854, %v1847, %v1851
  %v1856 = vand.u32 2147483647, %v1846
  %vm1857 = vcmp.eq.f32.partialorder %v1856, 8.507059e+37
  %v1858 = vand.u32 %v1846, 2147483648
  %v1859 = vor.u32 1.1754944e-38, %v1858
  %v1860 = vsel %vm1857, %v1859, %v1855
  %v1861 = vmul.f32 1.0, %v1860
  %v1862 = vadd.f32 %v357, %v1826
  %v1863 = vxor.u32 %v1862, 2147483648
  %v1864 = vmul.f32 %v1863, 1.442695
  %v1865 = vpow.pop %v1864
  %v1866 = vadd.f32 %v1865, 1.0
  %v1867 = vrcp.pop %v1866
  %v1868 = vmul.f32 %v1866, %v1867
  %v1869 = vsub.f32 1.0, %v1868
  %v1870 = vmul.f32 %v1867, %v1869
  %v1871 = vadd.f32 %v1867, %v1870
  %vm1872 = vweird.f32 %v1866
  %vm1873 = vweird.f32 %v1867
  %vm1874 = vmor %vm1872, %vm1873
  %v1875 = vsel %vm1874, %v1867, %v1871
  %v1876 = vand.u32 2147483647, %v1866
  %vm1877 = vcmp.eq.f32.partialorder %v1876, 8.507059e+37
  %v1878 = vand.u32 %v1866, 2147483648
  %v1879 = vor.u32 1.1754944e-38, %v1878
  %v1880 = vsel %vm1877, %v1879, %v1875
  %v1881 = vmul.f32 1.0, %v1880
  %v1882 = vmul.f32 %v1861, %v1839
  %v1883 = vadd.f32 %v406, %v1882
  %v1884 = vtanh.pop %v1883
  %v1885 = vsub.f32 1.0, %v1881
  %v1886 = vmul.f32 %v1885, %v1884
  %v1887 = vmul.f32 %v1881, %v1801
  %v1888 = vadd.f32 %v1886, %v1887
  %1889 = vset.pattern.permute.xlu0 13
  %1890 = vperm.xlu0 %1889, %v679
  %v1891 = vpop.permute.xlu0 %1890
  %vm1892 = vcmp.eq.s32.totalorder %v1891, 1
  %v1893 = vsel %vm1892, %v1888, 0.0
  %v1894 = vsel %vm1892, %v1888, %v1801
  %v1895 = vpack.c.bf16 %v1894, %v1894
  %1896 = vmatpush.bf16.msra.mxu0 %v566
  %1897 = vmatpush.bf16.msra.mxu0 %v563
  %1898 = vmatpush.bf16.msra.mxu0 %v560
  %1899 = vmatpush.bf16.msra.mxu0 %v557
  %1900 = vmatpush.bf16.msra.mxu0 %v554
  %1901 = vmatpush.bf16.msra.mxu0 %v551
  %1902 = vmatpush.bf16.msra.mxu0 %v548
  %1903 = vmatpush.bf16.msra.mxu0 %v545
  %1904 = vmatmul.bf16.gmra.mxu0 %v1895
  %v1905 = vpop.f32.mrf.mxu0
  %v1906 = vadd.f32 %v459, %v1905
  %v1907 = vpop.f32.mrf.mxu0
  %1908 = vdwg.mxu0
  %1909 = vmatpush.bf16.msra.mxu0 %v567
  %1910 = vmatpush.bf16.msra.mxu0 %v564
  %1911 = vmatpush.bf16.msra.mxu0 %v561
  %1912 = vmatpush.bf16.msra.mxu0 %v558
  %1913 = vmatpush.bf16.msra.mxu0 %v555
  %1914 = vmatpush.bf16.msra.mxu0 %v552
  %1915 = vmatpush.bf16.msra.mxu0 %v549
  %1916 = vmatpush.bf16.msra.mxu0 %v546
  %1917 = vmatmul.bf16.gmra.mxu0 %v1895
  %v1918 = vpop.f32.mrf.mxu0
  %v1919 = vadd.f32 %v460, %v1918
  %v1920 = vpop.f32.mrf.mxu0
  %1921 = vdwg.mxu0
  %1922 = vmatpush.bf16.msra.mxu0 %v568
  %1923 = vmatpush.bf16.msra.mxu0 %v565
  %1924 = vmatpush.bf16.msra.mxu0 %v562
  %1925 = vmatpush.bf16.msra.mxu0 %v559
  %1926 = vmatpush.bf16.msra.mxu0 %v556
  %1927 = vmatpush.bf16.msra.mxu0 %v553
  %1928 = vmatpush.bf16.msra.mxu0 %v550
  %1929 = vmatpush.bf16.msra.mxu0 %v547
  %1930 = vmatmul.bf16.gmra.mxu0 %v1895
  %v1931 = vpop.f32.mrf.mxu0
  %v1932 = vadd.f32 %v461, %v1931
  %v1933 = vpop.f32.mrf.mxu0
  %1934 = vdwg.mxu0
  %v1935 = vadd.f32 %v311, %v1906
  %v1936 = vxor.u32 %v1935, 2147483648
  %v1937 = vmul.f32 %v1936, 1.442695
  %v1938 = vpow.pop %v1937
  %v1939 = vadd.f32 %v1938, 1.0
  %v1940 = vrcp.pop %v1939
  %v1941 = vmul.f32 %v1939, %v1940
  %v1942 = vsub.f32 1.0, %v1941
  %v1943 = vmul.f32 %v1940, %v1942
  %v1944 = vadd.f32 %v1940, %v1943
  %vm1945 = vweird.f32 %v1939
  %vm1946 = vweird.f32 %v1940
  %vm1947 = vmor %vm1945, %vm1946
  %v1948 = vsel %vm1947, %v1940, %v1944
  %v1949 = vand.u32 2147483647, %v1939
  %vm1950 = vcmp.eq.f32.partialorder %v1949, 8.507059e+37
  %v1951 = vand.u32 %v1939, 2147483648
  %v1952 = vor.u32 1.1754944e-38, %v1951
  %v1953 = vsel %vm1950, %v1952, %v1948
  %v1954 = vmul.f32 1.0, %v1953
  %v1955 = vadd.f32 %v360, %v1919
  %v1956 = vxor.u32 %v1955, 2147483648
  %v1957 = vmul.f32 %v1956, 1.442695
  %v1958 = vpow.pop %v1957
  %v1959 = vadd.f32 %v1958, 1.0
  %v1960 = vrcp.pop %v1959
  %v1961 = vmul.f32 %v1959, %v1960
  %v1962 = vsub.f32 1.0, %v1961
  %v1963 = vmul.f32 %v1960, %v1962
  %v1964 = vadd.f32 %v1960, %v1963
  %vm1965 = vweird.f32 %v1959
  %vm1966 = vweird.f32 %v1960
  %vm1967 = vmor %vm1965, %vm1966
  %v1968 = vsel %vm1967, %v1960, %v1964
  %v1969 = vand.u32 2147483647, %v1959
  %vm1970 = vcmp.eq.f32.partialorder %v1969, 8.507059e+37
  %v1971 = vand.u32 %v1959, 2147483648
  %v1972 = vor.u32 1.1754944e-38, %v1971
  %v1973 = vsel %vm1970, %v1972, %v1968
  %v1974 = vmul.f32 1.0, %v1973
  %v1975 = vmul.f32 %v1954, %v1932
  %v1976 = vadd.f32 %v409, %v1975
  %v1977 = vtanh.pop %v1976
  %v1978 = vsub.f32 1.0, %v1974
  %v1979 = vmul.f32 %v1978, %v1977
  %v1980 = vmul.f32 %v1974, %v1894
  %v1981 = vadd.f32 %v1979, %v1980
  %1982 = vset.pattern.permute.xlu0 14
  %1983 = vperm.xlu0 %1982, %v679
  %v1984 = vpop.permute.xlu0 %1983
  %vm1985 = vcmp.eq.s32.totalorder %v1984, 1
  %v1986 = vsel %vm1985, %v1981, 0.0
  %v1987 = vsel %vm1985, %v1981, %v1894
  %v1988 = vpack.c.bf16 %v1987, %v1987
  %1989 = vmatpush.bf16.msra.mxu0 %v566
  %1990 = vmatpush.bf16.msra.mxu0 %v563
  %1991 = vmatpush.bf16.msra.mxu0 %v560
  %1992 = vmatpush.bf16.msra.mxu0 %v557
  %1993 = vmatpush.bf16.msra.mxu0 %v554
  %1994 = vmatpush.bf16.msra.mxu0 %v551
  %1995 = vmatpush.bf16.msra.mxu0 %v548
  %1996 = vmatpush.bf16.msra.mxu0 %v545
  %1997 = vmatmul.bf16.gmra.mxu0 %v1988
  %v1998 = vpop.f32.mrf.mxu0
  %v1999 = vadd.f32 %v459, %v1998
  %v2000 = vpop.f32.mrf.mxu0
  %2001 = vdwg.mxu0
  %2002 = vmatpush.bf16.msra.mxu0 %v567
  %2003 = vmatpush.bf16.msra.mxu0 %v564
  %2004 = vmatpush.bf16.msra.mxu0 %v561
  %2005 = vmatpush.bf16.msra.mxu0 %v558
  %2006 = vmatpush.bf16.msra.mxu0 %v555
  %2007 = vmatpush.bf16.msra.mxu0 %v552
  %2008 = vmatpush.bf16.msra.mxu0 %v549
  %2009 = vmatpush.bf16.msra.mxu0 %v546
  %2010 = vmatmul.bf16.gmra.mxu0 %v1988
  %v2011 = vpop.f32.mrf.mxu0
  %v2012 = vadd.f32 %v460, %v2011
  %v2013 = vpop.f32.mrf.mxu0
  %2014 = vdwg.mxu0
  %2015 = vmatpush.bf16.msra.mxu0 %v568
  %2016 = vmatpush.bf16.msra.mxu0 %v565
  %2017 = vmatpush.bf16.msra.mxu0 %v562
  %2018 = vmatpush.bf16.msra.mxu0 %v559
  %2019 = vmatpush.bf16.msra.mxu0 %v556
  %2020 = vmatpush.bf16.msra.mxu0 %v553
  %2021 = vmatpush.bf16.msra.mxu0 %v550
  %2022 = vmatpush.bf16.msra.mxu0 %v547
  %2023 = vmatmul.bf16.gmra.mxu0 %v1988
  %v2024 = vpop.f32.mrf.mxu0
  %v2025 = vadd.f32 %v461, %v2024
  %v2026 = vpop.f32.mrf.mxu0
  %2027 = vdwg.mxu0
  %v2028 = vadd.f32 %v313, %v1999
  %v2029 = vxor.u32 %v2028, 2147483648
  %v2030 = vmul.f32 %v2029, 1.442695
  %v2031 = vpow.pop %v2030
  %v2032 = vadd.f32 %v2031, 1.0
  %v2033 = vrcp.pop %v2032
  %v2034 = vmul.f32 %v2032, %v2033
  %v2035 = vsub.f32 1.0, %v2034
  %v2036 = vmul.f32 %v2033, %v2035
  %v2037 = vadd.f32 %v2033, %v2036
  %vm2038 = vweird.f32 %v2032
  %vm2039 = vweird.f32 %v2033
  %vm2040 = vmor %vm2038, %vm2039
  %v2041 = vsel %vm2040, %v2033, %v2037
  %v2042 = vand.u32 2147483647, %v2032
  %vm2043 = vcmp.eq.f32.partialorder %v2042, 8.507059e+37
  %v2044 = vand.u32 %v2032, 2147483648
  %v2045 = vor.u32 1.1754944e-38, %v2044
  %v2046 = vsel %vm2043, %v2045, %v2041
  %v2047 = vmul.f32 1.0, %v2046
  %v2048 = vadd.f32 %v362, %v2012
  %v2049 = vxor.u32 %v2048, 2147483648
  %v2050 = vmul.f32 %v2049, 1.442695
  %v2051 = vpow.pop %v2050
  %v2052 = vadd.f32 %v2051, 1.0
  %v2053 = vrcp.pop %v2052
  %v2054 = vmul.f32 %v2052, %v2053
  %v2055 = vsub.f32 1.0, %v2054
  %v2056 = vmul.f32 %v2053, %v2055
  %v2057 = vadd.f32 %v2053, %v2056
  %vm2058 = vweird.f32 %v2052
  %vm2059 = vweird.f32 %v2053
  %vm2060 = vmor %vm2058, %vm2059
  %v2061 = vsel %vm2060, %v2053, %v2057
  %v2062 = vand.u32 2147483647, %v2052
  %vm2063 = vcmp.eq.f32.partialorder %v2062, 8.507059e+37
  %v2064 = vand.u32 %v2052, 2147483648
  %v2065 = vor.u32 1.1754944e-38, %v2064
  %v2066 = vsel %vm2063, %v2065, %v2061
  %v2067 = vmul.f32 1.0, %v2066
  %v2068 = vmul.f32 %v2047, %v2025
  %v2069 = vadd.f32 %v411, %v2068
  %v2070 = vtanh.pop %v2069
  %v2071 = vsub.f32 1.0, %v2067
  %v2072 = vmul.f32 %v2071, %v2070
  %v2073 = vmul.f32 %v2067, %v1987
  %v2074 = vadd.f32 %v2072, %v2073
  %2075 = vset.pattern.permute.xlu0 15
  %2076 = vperm.xlu0 %2075, %v679
  %v2077 = vpop.permute.xlu0 %2076
  %vm2078 = vcmp.eq.s32.totalorder %v2077, 1
  %v2079 = vsel %vm2078, %v2074, 0.0
  %v2080 = vsel %vm2078, %v2074, %v1987
  %v2081 = vpack.c.bf16 %v684, %v684
  %v2082 = vpack.c.bf16 %v777, %v777
  %v2083 = vpack.c.bf16 %v870, %v870
  %v2084 = vpack.c.bf16 %v963, %v963
  %v2085 = vpack.c.bf16 %v1056, %v1056
  %v2086 = vpack.c.bf16 %v1149, %v1149
  %v2087 = vpack.c.bf16 %v1242, %v1242
  %v2088 = vpack.c.bf16 %v1335, %v1335
  %v2089 = vpack.c.bf16 %v1428, %v1428
  %v2090 = vpack.c.bf16 %v1521, %v1521
  %v2091 = vpack.c.bf16 %v1614, %v1614
  %v2092 = vpack.c.bf16 %v1707, %v1707
  %v2093 = vpack.c.bf16 %v1800, %v1800
  %v2094 = vpack.c.bf16 %v1893, %v1893
  %v2095 = vpack.c.bf16 %v1986, %v1986
  %v2096 = vpack.c.bf16 %v2079, %v2079
  %2097 = vst [vmem:[%s7] sm:$0xf] %v2081
  %2098 = vst [vmem:[%s7 + $0x4] sm:$0xf] %v2082
  %2099 = vst [vmem:[%s7 + $0x8] sm:$0xf] %v2083
  %2100 = vst [vmem:[%s7 + $0xc] sm:$0xf] %v2084
  %2101 = vst [vmem:[%s7 + $0x10] sm:$0xf] %v2085
  %2102 = vst [vmem:[%s7 + $0x14] sm:$0xf] %v2086
  %2103 = vst [vmem:[%s7 + $0x18] sm:$0xf] %v2087
  %2104 = vst [vmem:[%s7 + $0x1c] sm:$0xf] %v2088
  %2105 = vst [vmem:[%s7 + $0x20] sm:$0xf] %v2089
  %2106 = vst [vmem:[%s7 + $0x24] sm:$0xf] %v2090
  %2107 = vst [vmem:[%s7 + $0x28] sm:$0xf] %v2091
  %2108 = vst [vmem:[%s7 + $0x2c] sm:$0xf] %v2092
  %2109 = vst [vmem:[%s7 + $0x30] sm:$0xf] %v2093
  %2110 = vst [vmem:[%s7 + $0x34] sm:$0xf] %v2094
  %2111 = vst [vmem:[%s7 + $0x38] sm:$0xf] %v2095
  %2112 = vst [vmem:[%s7 + $0x3c] sm:$0xf] %v2096
  %2113 = vst [vmem:[#allocation2] sm:$0xff] %v2080
  // Predicated region
  $region34: #{plain_decoder_forward.2} parent=0 // pred_check
    %p2114 = pneg %p28
  $region35: #{plain_decoder_forward.2} parent=0 // pred_check_branch
    %2116 = sbr.rel (%p2114) target = $region37
  $region36: #{plain_decoder_forward.2} parent=0 // pred_region
    %2117 = vst [vmem:[%s8] sm:$0xff] %v2080
  $region37: #{plain_decoder_forward.2} parent=0 // pred_fallthru
    _
  // Predicated region
  $region38: #{plain_decoder_forward.2} parent=0 // pred_check
    _
  $region39: #{plain_decoder_forward.2} parent=0 // pred_check_branch
    %2119 = sbr.rel (0) target = $region41
  $region40: #{plain_decoder_forward.2} parent=0 // pred_region
    _
  $region41: #{plain_decoder_forward.2} parent=0 // pred_fallthru
    _
  // Predicated region
  $region42: #{plain_decoder_forward.2} parent=0 // pred_check
    _
  $region43: #{plain_decoder_forward.2} parent=0 // pred_check_branch
    %2121 = sbr.rel (0) target = $region45
  $region44: #{plain_decoder_forward.2} parent=0 // pred_region
    _
  $region45: #{plain_decoder_forward.2} parent=0 // pred_fallthru
    _
  // Predicated region
  $region46: #{plain_decoder_forward.2} parent=0 // pred_check
    _
  $region47: #{plain_decoder_forward.2} parent=0 // pred_check_branch
    %2123 = sbr.rel (0) target = $region49
  $region48: #{plain_decoder_forward.2} parent=0 // pred_region
    _
  $region49: #{plain_decoder_forward.2} parent=0 // pred_fallthru
    _
  // Predicated region
  $region50: #{plain_decoder_forward.2} parent=0 // pred_check
    _
  $region51: #{plain_decoder_forward.2} parent=0 // pred_check_branch
    %2125 = sbr.rel (0) target = $region53
  $region52: #{plain_decoder_forward.2} parent=0 // pred_region
    _
  $region53: #{plain_decoder_forward.2} parent=0 // pred_fallthru
    _

</llo_original>
